<compile_context>
chip_gen: v7x
topology: tpu7x:2x2x1
jax: 0.10.0
libtpu: 0.0.40
codegen_flags: <defaults>
</compile_context>

<pallas_src>
import functools

import jax
import jax.numpy as jnp
from jax.experimental import pallas as pl
from jax.experimental.pallas import tpu as pltpu

D_IN = 784
D_H1, D_H2, D_H3 = 512, 256, 128
D_OUT = 10
D_OUT_PAD = 128       # lane-dense output slab, sliced back to 10 in the wrapper


def autoencoder_kernel(x_ref,
                       w1_ref, b1_ref,
                       w2_ref, b2_ref,
                       w3_ref, b3_ref,
                       w4_ref, b4_ref,
                       o_ref):
    # encoder: Linear(784,512) -> ReLU -> Linear(512,256) -> ReLU -> Linear(256,128)
    # MXU runs native bf16 x bf16 -> f32 accumulation; bias add + ReLU stay f32
    # on the VPU.  Biases are (1, N) and broadcast row-wise (no (tile_m, N) copies).
    bf16 = jnp.bfloat16
    x = x_ref[...].astype(bf16)
    h = jnp.dot(x, w1_ref[...], preferred_element_type=jnp.float32) + b1_ref[...]
    h = jnp.maximum(h, 0.0)
    h = jnp.dot(h.astype(bf16), w2_ref[...],
                preferred_element_type=jnp.float32) + b2_ref[...]
    h = jnp.maximum(h, 0.0)
    h = jnp.dot(h.astype(bf16), w3_ref[...],
                preferred_element_type=jnp.float32) + b3_ref[...]
    # forward(): x = F.relu(self.encoder(x))
    h = jnp.maximum(h, 0.0)
    # output = self.output(x) -> Linear(128, 10), stored lane-padded to 128.
    o_ref[...] = (jnp.dot(h.astype(bf16), w4_ref[...],
                          preferred_element_type=jnp.float32) + b4_ref[...])


def _round_up(n, m):
    return ((n + m - 1) // m) * m


def _vmem_limit_bytes(tile_m):
    """Scoped-VMEM request from the actual footprint: double-buffered x/out
    tiles, (double-buffered) resident bf16 weights, f32/bf16 layer temporaries,
    plus headroom for Mosaic internal scratch.  Floored at 32 MiB (v5e's scoped
    default is 16 MiB), capped well under the smallest physical VMEM (v7x 64 MiB)."""
    x_b = 2 * tile_m * D_IN * 4                       # f32 input tile, 2 bufs
    o_b = 2 * tile_m * D_OUT_PAD * 4                  # f32 output tile, 2 bufs
    w_b = 2 * 2 * (D_IN * D_H1 + D_H1 * D_H2 + D_H2 * D_H3 + D_H3 * D_OUT_PAD)
    b_b = 2 * 4 * (D_H1 + D_H2 + D_H3 + D_OUT_PAD)
    tmp = tile_m * 4 * (D_H1 + D_H2 + D_H3 + D_OUT_PAD)   # f32 layer outputs
    tmp += tile_m * 2 * (D_IN + D_H1 + D_H2 + D_H3)       # bf16 matmul inputs
    total = x_b + o_b + w_b + b_b + tmp
    return max(32 << 20, min(int(total * 1.4) + (4 << 20), 48 << 20))


def prepare_padded_params(params):
    """One-time prep: cast weights to bf16 (MXU-native) and lane-pad the last
    layer 10 -> 128.  Mathematically a no-op for the padded columns (zero weight
    columns + zero bias -> exact-zero padded outputs, sliced away).  Biases stay
    f32 so the bias add / ReLU path is full precision."""
    bf16 = jnp.bfloat16
    w4 = jnp.pad(params["w4"], ((0, 0), (0, D_OUT_PAD - D_OUT)))
    b4 = jnp.pad(params["b4"], ((0, 0), (0, D_OUT_PAD - D_OUT)))
    return {
        "w1": params["w1"].astype(bf16), "b1": params["b1"],
        "w2": params["w2"].astype(bf16), "b2": params["b2"],
        "w3": params["w3"].astype(bf16), "b3": params["b3"],
        "w4": w4.astype(bf16), "b4": b4,
    }


@functools.partial(jax.jit, static_argnames=("tile_m",))
def autoencoder_forward(x, padded_params, *, tile_m=1024):
    """x: (B, 784) float32. padded_params: output of prepare_padded_params."""
    B, d_in = x.shape
    assert d_in == D_IN
    p = padded_params

    # Tile sizing:
    #  * big tiles amortize the ~0.35us per-grid-step pipeline overhead,
    #  * keep >= 2 grid steps when the batch allows so v7x's two TensorCores
    #    each get tiles (the grid axis is "parallel"),
    #  * but never split below 128 rows just to manufacture a second step,
    #  * and never exceed the (8-rounded) batch itself.
    tile_m = min(tile_m, max(128, _round_up(pl.cdiv(B, 2), 8)))
    tile_m = min(tile_m, _round_up(B, 8))
    grid_m = pl.cdiv(B, tile_m)   # ragged last block: loads padded, stores masked

    full = lambda arr: pl.BlockSpec(arr.shape, lambda i: (0, 0))

    flops = 2 * B * (D_IN * D_H1 + D_H1 * D_H2 + D_H2 * D_H3 + D_H3 * D_OUT)
    param_bytes = sum(int(v.size) * v.dtype.itemsize for v in p.values())
    bytes_accessed = (int(x.size) * x.dtype.itemsize + param_bytes
                      + B * D_OUT_PAD * 4)

    out = pl.pallas_call(
        autoencoder_kernel,
        out_shape=jax.ShapeDtypeStruct((B, D_OUT_PAD), jnp.float32),
        grid_spec=pltpu.PrefetchScalarGridSpec(
            num_scalar_prefetch=0,
            grid=(grid_m,),
            in_specs=[
                # (tile_m, 784): full-extent last dim is a legal block even
                # though 784 % 128 != 0; Mosaic lane-pads the layout internally,
                # so no explicit K padding (saves an HBM round trip of x).
                pl.BlockSpec((tile_m, D_IN), lambda i: (i, 0)),
                full(p["w1"]), full(p["b1"]),
                full(p["w2"]), full(p["b2"]),
                full(p["w3"]), full(p["b3"]),
                full(p["w4"]), full(p["b4"]),
            ],
            out_specs=pl.BlockSpec((tile_m, D_OUT_PAD), lambda i: (i, 0)),
        ),
        compiler_params=pltpu.CompilerParams(
            dimension_semantics=("parallel",),   # megacore sharding on v7x
            vmem_limit_bytes=_vmem_limit_bytes(tile_m),
        ),
        cost_estimate=pl.CostEstimate(
            flops=flops, transcendentals=0, bytes_accessed=bytes_accessed),
    )(x, p["w1"], p["b1"], p["w2"], p["b2"], p["w3"], p["b3"],
      p["w4"], p["b4"])

    # Slice off the lane padding of the last layer (batch dim is exact).
    return out[:, :D_OUT]


def init_params(key):
    """Deterministic init mimicking nn.Linear shapes. Weights stored as (in, out)."""
    dims = [(D_IN, D_H1), (D_H1, D_H2), (D_H2, D_H3), (D_H3, D_OUT)]
    params = {}
    for idx, (fan_in, fan_out) in enumerate(dims, start=1):
        key, kw, kb = jax.random.split(key, 3)
        bound = 1.0 / jnp.sqrt(jnp.float32(fan_in))
        w = jax.random.uniform(kw, (fan_in, fan_out), jnp.float32, -bound, bound)
        b = jax.random.uniform(kb, (1, fan_out), jnp.float32, -bound, bound)
        params[f"w{idx}"] = w
        params[f"b{idx}"] = b
    return params


def reference_forward(x, params):
    """Exact f32 reference (PyTorch semantics)."""
    h = jnp.maximum(x @ params["w1"] + params["b1"], 0.0)
    h = jnp.maximum(h @ params["w2"] + params["b2"], 0.0)
    h = jnp.maximum(h @ params["w3"] + params["b3"], 0.0)
    return h @ params["w4"] + params["b4"]


def reference_forward_bf16(x, params):
    """Same arithmetic as the kernel: bf16 MXU inputs, f32 accumulation/bias/ReLU."""
    bf16 = jnp.bfloat16

    def lin(h, w, b):
        return jnp.dot(h.astype(bf16), w.astype(bf16),
                       preferred_element_type=jnp.float32) + b

    h = jnp.maximum(lin(x, params["w1"], params["b1"]), 0.0)
    h = jnp.maximum(lin(h, params["w2"], params["b2"]), 0.0)
    h = jnp.maximum(lin(h, params["w3"], params["b3"]), 0.0)
    return lin(h, params["w4"], params["b4"])


if __name__ == "__main__":
    key = jax.random.PRNGKey(0)
    key, kx1, kx2, kx3 = jax.random.split(key, 4)
    params = init_params(key)
    padded = prepare_padded_params(params)

    def run_and_check(x, tag):
        out = jax.block_until_ready(autoencoder_forward(x, padded))
        assert out.shape == (x.shape[0], D_OUT), tag
        # Tight check vs a reference using the kernel's own bf16-in / f32-acc math.
        ref16 = reference_forward_bf16(x, params)
        assert jnp.allclose(out, ref16, atol=5e-3, rtol=5e-3), f"{tag}: bf16 ref mismatch"
        # Loose check vs the exact f32 reference (bounded bf16 quantization error).
        ref32 = reference_forward(x, params)
        assert jnp.allclose(out, ref32, atol=1e-2, rtol=1e-2), f"{tag}: f32 ref mismatch"

    # Multi-tile path: B=512 -> tile_m=256, grid=2 (both v7x TensorCores busy).
    run_and_check(jax.random.normal(kx1, (512, D_IN), jnp.float32), "B=512")
    # Ragged-batch path: B=37 -> tile_m=40, one masked partial block (no wrapper pad).
    run_and_check(jax.random.normal(kx2, (37, D_IN), jnp.float32), "B=37")
    # Tiny-batch path: single 8-row tile.
    run_and_check(jax.random.normal(kx3, (8, D_IN), jnp.float32), "B=8")

    print("KERNEL_OK")
</pallas_src>

<mosaic_0001>
module attributes {stable_mosaic.version = 11 : i64} {
  func.func @autoencoder_kernel(%arg0: i32, %arg1: memref<256x784xf32, #tpu.memory_space<vmem>>, %arg2: memref<784x512xbf16, #tpu.memory_space<vmem>>, %arg3: memref<1x512xf32, #tpu.memory_space<vmem>>, %arg4: memref<512x256xbf16, #tpu.memory_space<vmem>>, %arg5: memref<1x256xf32, #tpu.memory_space<vmem>>, %arg6: memref<256x128xbf16, #tpu.memory_space<vmem>>, %arg7: memref<1x128xf32, #tpu.memory_space<vmem>>, %arg8: memref<128x128xbf16, #tpu.memory_space<vmem>>, %arg9: memref<1x128xf32, #tpu.memory_space<vmem>>, %arg10: memref<256x128xf32, #tpu.memory_space<vmem>>) attributes {dimension_semantics = [#tpu.dimension_semantics<parallel>], iteration_bounds = array<i64: 2>, scalar_prefetch = 0 : i64, scratch_operands = 0 : i64, tpu.core_type = #tpu.core_type<tc>, window_params = [{transform_indices = @transform_0, window_bounds = array<i64: 256, 784>}, {pipeline_mode = #tpu.pipeline_mode<synchronous>, transform_indices = @transform_1, window_bounds = array<i64: 784, 512>}, {pipeline_mode = #tpu.pipeline_mode<synchronous>, transform_indices = @transform_2, window_bounds = array<i64: 1, 512>}, {pipeline_mode = #tpu.pipeline_mode<synchronous>, transform_indices = @transform_3, window_bounds = array<i64: 512, 256>}, {pipeline_mode = #tpu.pipeline_mode<synchronous>, transform_indices = @transform_4, window_bounds = array<i64: 1, 256>}, {pipeline_mode = #tpu.pipeline_mode<synchronous>, transform_indices = @transform_5, window_bounds = array<i64: 256, 128>}, {pipeline_mode = #tpu.pipeline_mode<synchronous>, transform_indices = @transform_6, window_bounds = array<i64: 1, 128>}, {pipeline_mode = #tpu.pipeline_mode<synchronous>, transform_indices = @transform_7, window_bounds = array<i64: 128, 128>}, {pipeline_mode = #tpu.pipeline_mode<synchronous>, transform_indices = @transform_8, window_bounds = array<i64: 1, 128>}, {transform_indices = @transform_9, window_bounds = array<i64: 256, 128>}]} {
    %c0 = arith.constant 0 : index
    %c0_0 = arith.constant 0 : index
    %0 = vector.load %arg1[%c0, %c0_0] : memref<256x784xf32, #tpu.memory_space<vmem>>, vector<256x784xf32>
    %1 = arith.truncf %0 : vector<256x784xf32> to vector<256x784xbf16>
    %c0_1 = arith.constant 0 : index
    %c0_2 = arith.constant 0 : index
    %2 = vector.load %arg2[%c0_1, %c0_2] : memref<784x512xbf16, #tpu.memory_space<vmem>>, vector<784x512xbf16>
    %cst = arith.constant dense<0.000000e+00> : vector<256x512xf32>
    %3 = tpu.matmul %1, %2, %cst {dimension_numbers = #tpu.dot_dimension_numbers<[1], [0], [0], [1], [0, 0, 1, 1], [], []>} : vector<256x784xbf16>, vector<784x512xbf16>, vector<256x512xf32> -> vector<256x512xf32>
    %c0_3 = arith.constant 0 : index
    %c0_4 = arith.constant 0 : index
    %4 = vector.load %arg3[%c0_3, %c0_4] : memref<1x512xf32, #tpu.memory_space<vmem>>, vector<1x512xf32>
    %5 = vector.broadcast %4 : vector<1x512xf32> to vector<256x512xf32>
    %6 = arith.addf %3, %5 : vector<256x512xf32>
    %cst_5 = arith.constant 0.000000e+00 : f32
    %7 = vector.broadcast %cst_5 : f32 to vector<256x512xf32>
    %8 = arith.maximumf %6, %7 : vector<256x512xf32>
    %9 = arith.truncf %8 : vector<256x512xf32> to vector<256x512xbf16>
    %c0_6 = arith.constant 0 : index
    %c0_7 = arith.constant 0 : index
    %10 = vector.load %arg4[%c0_6, %c0_7] : memref<512x256xbf16, #tpu.memory_space<vmem>>, vector<512x256xbf16>
    %cst_8 = arith.constant dense<0.000000e+00> : vector<256x256xf32>
    %11 = tpu.matmul %9, %10, %cst_8 {dimension_numbers = #tpu.dot_dimension_numbers<[1], [0], [0], [1], [0, 0, 1, 1], [], []>} : vector<256x512xbf16>, vector<512x256xbf16>, vector<256x256xf32> -> vector<256x256xf32>
    %c0_9 = arith.constant 0 : index
    %c0_10 = arith.constant 0 : index
    %12 = vector.load %arg5[%c0_9, %c0_10] : memref<1x256xf32, #tpu.memory_space<vmem>>, vector<1x256xf32>
    %13 = vector.broadcast %12 : vector<1x256xf32> to vector<256x256xf32>
    %14 = arith.addf %11, %13 : vector<256x256xf32>
    %cst_11 = arith.constant 0.000000e+00 : f32
    %15 = vector.broadcast %cst_11 : f32 to vector<256x256xf32>
    %16 = arith.maximumf %14, %15 : vector<256x256xf32>
    %17 = arith.truncf %16 : vector<256x256xf32> to vector<256x256xbf16>
    %c0_12 = arith.constant 0 : index
    %c0_13 = arith.constant 0 : index
    %18 = vector.load %arg6[%c0_12, %c0_13] : memref<256x128xbf16, #tpu.memory_space<vmem>>, vector<256x128xbf16>
    %cst_14 = arith.constant dense<0.000000e+00> : vector<256x128xf32>
    %19 = tpu.matmul %17, %18, %cst_14 {dimension_numbers = #tpu.dot_dimension_numbers<[1], [0], [0], [1], [0, 0, 1, 1], [], []>} : vector<256x256xbf16>, vector<256x128xbf16>, vector<256x128xf32> -> vector<256x128xf32>
    %c0_15 = arith.constant 0 : index
    %c0_16 = arith.constant 0 : index
    %20 = vector.load %arg7[%c0_15, %c0_16] : memref<1x128xf32, #tpu.memory_space<vmem>>, vector<1x128xf32>
    %21 = vector.broadcast %20 : vector<1x128xf32> to vector<256x128xf32>
    %22 = arith.addf %19, %21 : vector<256x128xf32>
    %cst_17 = arith.constant 0.000000e+00 : f32
    %23 = vector.broadcast %cst_17 : f32 to vector<256x128xf32>
    %24 = arith.maximumf %22, %23 : vector<256x128xf32>
    %25 = arith.truncf %24 : vector<256x128xf32> to vector<256x128xbf16>
    %c0_18 = arith.constant 0 : index
    %c0_19 = arith.constant 0 : index
    %26 = vector.load %arg8[%c0_18, %c0_19] : memref<128x128xbf16, #tpu.memory_space<vmem>>, vector<128x128xbf16>
    %cst_20 = arith.constant dense<0.000000e+00> : vector<256x128xf32>
    %27 = tpu.matmul %25, %26, %cst_20 {dimension_numbers = #tpu.dot_dimension_numbers<[1], [0], [0], [1], [0, 0, 1, 1], [], []>} : vector<256x128xbf16>, vector<128x128xbf16>, vector<256x128xf32> -> vector<256x128xf32>
    %c0_21 = arith.constant 0 : index
    %c0_22 = arith.constant 0 : index
    %28 = vector.load %arg9[%c0_21, %c0_22] : memref<1x128xf32, #tpu.memory_space<vmem>>, vector<1x128xf32>
    %29 = vector.broadcast %28 : vector<1x128xf32> to vector<256x128xf32>
    %30 = arith.addf %27, %29 : vector<256x128xf32>
    %c0_23 = arith.constant 0 : index
    %c0_24 = arith.constant 0 : index
    %31 = vector.load %arg10[%c0_23, %c0_24] : memref<256x128xf32, #tpu.memory_space<vmem>>, vector<256x128xf32>
    tpu.vector_store %arg10[%c0_23, %c0_24], %30 {strides = array<i32>} : memref<256x128xf32, #tpu.memory_space<vmem>>, vector<256x128xf32>,
    return
  }
  func.func @transform_0(%arg0: i32) -> (i32, i32) {
    %c0_i32 = arith.constant 0 : i32
    %c0_i32_0 = arith.constant 0 : i32
    return %arg0, %c0_i32 : i32, i32
  }
  func.func @transform_1(%arg0: i32) -> (i32, i32) {
    %c0_i32 = arith.constant 0 : i32
    %c0_i32_0 = arith.constant 0 : i32
    %c0_i32_1 = arith.constant 0 : i32
    return %c0_i32, %c0_i32_0 : i32, i32
  }
  func.func @transform_2(%arg0: i32) -> (i32, i32) {
    %c0_i32 = arith.constant 0 : i32
    %c0_i32_0 = arith.constant 0 : i32
    %c0_i32_1 = arith.constant 0 : i32
    return %c0_i32, %c0_i32_0 : i32, i32
  }
  func.func @transform_3(%arg0: i32) -> (i32, i32) {
    %c0_i32 = arith.constant 0 : i32
    %c0_i32_0 = arith.constant 0 : i32
    %c0_i32_1 = arith.constant 0 : i32
    return %c0_i32, %c0_i32_0 : i32, i32
  }
  func.func @transform_4(%arg0: i32) -> (i32, i32) {
    %c0_i32 = arith.constant 0 : i32
    %c0_i32_0 = arith.constant 0 : i32
    %c0_i32_1 = arith.constant 0 : i32
    return %c0_i32, %c0_i32_0 : i32, i32
  }
  func.func @transform_5(%arg0: i32) -> (i32, i32) {
    %c0_i32 = arith.constant 0 : i32
    %c0_i32_0 = arith.constant 0 : i32
    %c0_i32_1 = arith.constant 0 : i32
    return %c0_i32, %c0_i32_0 : i32, i32
  }
  func.func @transform_6(%arg0: i32) -> (i32, i32) {
    %c0_i32 = arith.constant 0 : i32
    %c0_i32_0 = arith.constant 0 : i32
    %c0_i32_1 = arith.constant 0 : i32
    return %c0_i32, %c0_i32_0 : i32, i32
  }
  func.func @transform_7(%arg0: i32) -> (i32, i32) {
    %c0_i32 = arith.constant 0 : i32
    %c0_i32_0 = arith.constant 0 : i32
    %c0_i32_1 = arith.constant 0 : i32
    return %c0_i32, %c0_i32_0 : i32, i32
  }
  func.func @transform_8(%arg0: i32) -> (i32, i32) {
    %c0_i32 = arith.constant 0 : i32
    %c0_i32_0 = arith.constant 0 : i32
    %c0_i32_1 = arith.constant 0 : i32
    return %c0_i32, %c0_i32_0 : i32, i32
  }
  func.func @transform_9(%arg0: i32) -> (i32, i32) {
    %c0_i32 = arith.constant 0 : i32
    %c0_i32_0 = arith.constant 0 : i32
    return %arg0, %c0_i32 : i32, i32
  }
}

</mosaic_0001>

<llo_original>
// kernel: autoencoder_forward.1
$region0: #{autoencoder_forward.1}
  #allocation0 [shape = 'u32[]', space=smem, size = 0x4, offset = 0x4, fixed_abs, tag = 'smem constant byte address 0x4 - core index']
  #allocation1 [shape = 'u32[144,128]{1,0:T(1,128)}', space=vmem, size = 0x12000, scoped, tag = 'internal scratch']
  %s0 = inlined_call_operand.vmem [shape: f32[512,784], index: 0, kind: input, shape index: {}]
  %s1 = inlined_call_operand.vmem [shape: bf16[784,512], index: 1, kind: input, shape index: {}]
  %s2 = inlined_call_operand.vmem [shape: f32[1,512], index: 2, kind: input, shape index: {}]
  %s3 = inlined_call_operand.vmem [shape: bf16[512,256], index: 3, kind: input, shape index: {}]
  %s4 = inlined_call_operand.vmem [shape: f32[1,256], index: 4, kind: input, shape index: {}]
  %s5 = inlined_call_operand.vmem [shape: bf16[256,128], index: 5, kind: input, shape index: {}]
  %s6 = inlined_call_operand.vmem [shape: f32[1,128], index: 6, kind: input, shape index: {}]
  %s7 = inlined_call_operand.vmem [shape: bf16[128,128], index: 7, kind: input, shape index: {}]
  %s8 = inlined_call_operand.vmem [shape: f32[1,128], index: 8, kind: input, shape index: {}]
  %s9 = inlined_call_operand.vmem [shape: f32[512,128], index: 9, kind: output, shape index: {}]
  %s10 = sld [smem:[#allocation0]]
  $region69: #{autoencoder_forward.1} parent=0
    _
  %s12 = ssub.s32 1, %s10
  %s13 = scalar_select 0, %s12, %s10
  loop: start=0, step=1, limit=4
  $region2: #{autoencoder_forward.1} parent=0 // loop_pre_header
    _
  $region3: #{autoencoder_forward.1} parent=0 // loop_header
    %s15 = sphi 0, %s19
    %p16 = scmp.ge.s32.totalorder %s15, 4
    %s25 = sphi 0, %s27
    %s28 = sphi 0, %s25
    %s29 = sphi 0, %s28
    %s45 = sphi 0, %s29
    %s49 = sphi 0, %s49
    %s51 = sphi 0, %s49
    %s52 = sphi 0, %s51
    %s66 = sphi 0, %s52
    %s70 = sphi 0, %s70
    %s72 = sphi 0, %s70
    %s73 = sphi 0, %s72
    %s87 = sphi 0, %s73
    %s91 = sphi 0, %s91
    %s93 = sphi 0, %s91
    %s94 = sphi 0, %s93
    %s108 = sphi 0, %s94
    %s112 = sphi 0, %s112
    %s114 = sphi 0, %s112
    %s115 = sphi 0, %s114
    %s129 = sphi 0, %s115
    %s133 = sphi 0, %s133
    %s135 = sphi 0, %s133
    %s136 = sphi 0, %s135
    %s150 = sphi 0, %s136
    %s154 = sphi 0, %s154
    %s156 = sphi 0, %s154
    %s157 = sphi 0, %s156
    %s171 = sphi 0, %s157
    %s175 = sphi 0, %s175
    %s177 = sphi 0, %s175
    %s178 = sphi 0, %s177
    %s192 = sphi 0, %s178
    %s196 = sphi 0, %s196
    %s198 = sphi 0, %s196
    %s199 = sphi 0, %s198
    %s213 = sphi 0, %s199
    %s219 = sphi 0, %s221
    %s222 = sphi 0, %s219
    %s223 = sphi 0, %s222
    %s239 = sphi 0, %s223
  $region4: #{autoencoder_forward.1} parent=0 // loop_header_branch
    %18 = sbr.rel (%p16) target = $region8
  $region5: #{autoencoder_forward.1} parent=0 // loop_body
    %s20 = ssub.s32 %s15, 1
    %s21 = ssub.s32 %s15, 2
    %s22 = sadd.s32 %s15, 1
    %s23 = ssub.s32 %s15, %s22
    %p24 = scmp.eq.s32.totalorder %s23, 0
    %s26 = sadd.s32 %s25, 1
    %s27 = scalar_select %p24, %s25, %s26
    %p30 = pneg %p24
    %p31 = scmp.eq.s32.totalorder %s15, 1
    %p32 = por %p30, %p31
    %p33 = scmp.ne.s32.totalorder %s25, %s28
    %p34 = scmp.eq.s32.totalorder %s15, 0
    %p35 = por %p33, %p34
    %p36 = scmp.ne.s32.totalorder %s25, %s28
    %p37 = scmp.eq.s32.totalorder %s20, 1
    %p38 = por %p36, %p37
    %p39 = scmp.ne.s32.totalorder %s28, %s29
    %p40 = scmp.eq.s32.totalorder %s20, 0
    %p41 = por %p39, %p40
    %p42 = scmp.ne.s32.totalorder %s28, %s29
    %p43 = scmp.eq.s32.totalorder %s21, 1
    %p44 = por %p42, %p43
    %p46 = scmp.ne.s32.totalorder %s29, %s45
    %p47 = scmp.eq.s32.totalorder %s21, 0
    %p48 = por %p46, %p47
    %s50 = sadd.s32 %s49, 1
    %p53 = scmp.eq.s32.totalorder %s15, 1
    %p54 = scmp.ne.s32.totalorder %s49, %s51
    %p55 = scmp.eq.s32.totalorder %s15, 0
    %p56 = por %p54, %p55
    %p57 = scmp.ne.s32.totalorder %s49, %s51
    %p58 = scmp.eq.s32.totalorder %s20, 1
    %p59 = por %p57, %p58
    %p60 = scmp.ne.s32.totalorder %s51, %s52
    %p61 = scmp.eq.s32.totalorder %s20, 0
    %p62 = por %p60, %p61
    %p63 = scmp.ne.s32.totalorder %s51, %s52
    %p64 = scmp.eq.s32.totalorder %s21, 1
    %p65 = por %p63, %p64
    %p67 = scmp.ne.s32.totalorder %s52, %s66
    %p68 = scmp.eq.s32.totalorder %s21, 0
    %p69 = por %p67, %p68
    %s71 = sadd.s32 %s70, 1
    %p74 = scmp.eq.s32.totalorder %s15, 1
    %p75 = scmp.ne.s32.totalorder %s70, %s72
    %p76 = scmp.eq.s32.totalorder %s15, 0
    %p77 = por %p75, %p76
    %p78 = scmp.ne.s32.totalorder %s70, %s72
    %p79 = scmp.eq.s32.totalorder %s20, 1
    %p80 = por %p78, %p79
    %p81 = scmp.ne.s32.totalorder %s72, %s73
    %p82 = scmp.eq.s32.totalorder %s20, 0
    %p83 = por %p81, %p82
    %p84 = scmp.ne.s32.totalorder %s72, %s73
    %p85 = scmp.eq.s32.totalorder %s21, 1
    %p86 = por %p84, %p85
    %p88 = scmp.ne.s32.totalorder %s73, %s87
    %p89 = scmp.eq.s32.totalorder %s21, 0
    %p90 = por %p88, %p89
    %s92 = sadd.s32 %s91, 1
    %p95 = scmp.eq.s32.totalorder %s15, 1
    %p96 = scmp.ne.s32.totalorder %s91, %s93
    %p97 = scmp.eq.s32.totalorder %s15, 0
    %p98 = por %p96, %p97
    %p99 = scmp.ne.s32.totalorder %s91, %s93
    %p100 = scmp.eq.s32.totalorder %s20, 1
    %p101 = por %p99, %p100
    %p102 = scmp.ne.s32.totalorder %s93, %s94
    %p103 = scmp.eq.s32.totalorder %s20, 0
    %p104 = por %p102, %p103
    %p105 = scmp.ne.s32.totalorder %s93, %s94
    %p106 = scmp.eq.s32.totalorder %s21, 1
    %p107 = por %p105, %p106
    %p109 = scmp.ne.s32.totalorder %s94, %s108
    %p110 = scmp.eq.s32.totalorder %s21, 0
    %p111 = por %p109, %p110
    %s113 = sadd.s32 %s112, 1
    %p116 = scmp.eq.s32.totalorder %s15, 1
    %p117 = scmp.ne.s32.totalorder %s112, %s114
    %p118 = scmp.eq.s32.totalorder %s15, 0
    %p119 = por %p117, %p118
    %p120 = scmp.ne.s32.totalorder %s112, %s114
    %p121 = scmp.eq.s32.totalorder %s20, 1
    %p122 = por %p120, %p121
    %p123 = scmp.ne.s32.totalorder %s114, %s115
    %p124 = scmp.eq.s32.totalorder %s20, 0
    %p125 = por %p123, %p124
    %p126 = scmp.ne.s32.totalorder %s114, %s115
    %p127 = scmp.eq.s32.totalorder %s21, 1
    %p128 = por %p126, %p127
    %p130 = scmp.ne.s32.totalorder %s115, %s129
    %p131 = scmp.eq.s32.totalorder %s21, 0
    %p132 = por %p130, %p131
    %s134 = sadd.s32 %s133, 1
    %p137 = scmp.eq.s32.totalorder %s15, 1
    %p138 = scmp.ne.s32.totalorder %s133, %s135
    %p139 = scmp.eq.s32.totalorder %s15, 0
    %p140 = por %p138, %p139
    %p141 = scmp.ne.s32.totalorder %s133, %s135
    %p142 = scmp.eq.s32.totalorder %s20, 1
    %p143 = por %p141, %p142
    %p144 = scmp.ne.s32.totalorder %s135, %s136
    %p145 = scmp.eq.s32.totalorder %s20, 0
    %p146 = por %p144, %p145
    %p147 = scmp.ne.s32.totalorder %s135, %s136
    %p148 = scmp.eq.s32.totalorder %s21, 1
    %p149 = por %p147, %p148
    %p151 = scmp.ne.s32.totalorder %s136, %s150
    %p152 = scmp.eq.s32.totalorder %s21, 0
    %p153 = por %p151, %p152
    %s155 = sadd.s32 %s154, 1
    %p158 = scmp.eq.s32.totalorder %s15, 1
    %p159 = scmp.ne.s32.totalorder %s154, %s156
    %p160 = scmp.eq.s32.totalorder %s15, 0
    %p161 = por %p159, %p160
    %p162 = scmp.ne.s32.totalorder %s154, %s156
    %p163 = scmp.eq.s32.totalorder %s20, 1
    %p164 = por %p162, %p163
    %p165 = scmp.ne.s32.totalorder %s156, %s157
    %p166 = scmp.eq.s32.totalorder %s20, 0
    %p167 = por %p165, %p166
    %p168 = scmp.ne.s32.totalorder %s156, %s157
    %p169 = scmp.eq.s32.totalorder %s21, 1
    %p170 = por %p168, %p169
    %p172 = scmp.ne.s32.totalorder %s157, %s171
    %p173 = scmp.eq.s32.totalorder %s21, 0
    %p174 = por %p172, %p173
    %s176 = sadd.s32 %s175, 1
    %p179 = scmp.eq.s32.totalorder %s15, 1
    %p180 = scmp.ne.s32.totalorder %s175, %s177
    %p181 = scmp.eq.s32.totalorder %s15, 0
    %p182 = por %p180, %p181
    %p183 = scmp.ne.s32.totalorder %s175, %s177
    %p184 = scmp.eq.s32.totalorder %s20, 1
    %p185 = por %p183, %p184
    %p186 = scmp.ne.s32.totalorder %s177, %s178
    %p187 = scmp.eq.s32.totalorder %s20, 0
    %p188 = por %p186, %p187
    %p189 = scmp.ne.s32.totalorder %s177, %s178
    %p190 = scmp.eq.s32.totalorder %s21, 1
    %p191 = por %p189, %p190
    %p193 = scmp.ne.s32.totalorder %s178, %s192
    %p194 = scmp.eq.s32.totalorder %s21, 0
    %p195 = por %p193, %p194
    %s197 = sadd.s32 %s196, 1
    %p200 = scmp.eq.s32.totalorder %s15, 1
    %p201 = scmp.ne.s32.totalorder %s196, %s198
    %p202 = scmp.eq.s32.totalorder %s15, 0
    %p203 = por %p201, %p202
    %p204 = scmp.ne.s32.totalorder %s196, %s198
    %p205 = scmp.eq.s32.totalorder %s20, 1
    %p206 = por %p204, %p205
    %p207 = scmp.ne.s32.totalorder %s198, %s199
    %p208 = scmp.eq.s32.totalorder %s20, 0
    %p209 = por %p207, %p208
    %p210 = scmp.ne.s32.totalorder %s198, %s199
    %p211 = scmp.eq.s32.totalorder %s21, 1
    %p212 = por %p210, %p211
    %p214 = scmp.ne.s32.totalorder %s199, %s213
    %p215 = scmp.eq.s32.totalorder %s21, 0
    %p216 = por %p214, %p215
    %s217 = ssub.s32 %s15, %s22
    %p218 = scmp.eq.s32.totalorder %s217, 0
    %s220 = sadd.s32 %s219, 1
    %s221 = scalar_select %p218, %s219, %s220
    %p224 = pneg %p218
    %p225 = scmp.eq.s32.totalorder %s15, 1
    %p226 = por %p224, %p225
    %p227 = scmp.ne.s32.totalorder %s219, %s222
    %p228 = scmp.eq.s32.totalorder %s15, 0
    %p229 = por %p227, %p228
    %p230 = scmp.ne.s32.totalorder %s219, %s222
    %p231 = scmp.eq.s32.totalorder %s20, 1
    %p232 = por %p230, %p231
    %p233 = scmp.ne.s32.totalorder %s222, %s223
    %p234 = scmp.eq.s32.totalorder %s20, 0
    %p235 = por %p233, %p234
    %p236 = scmp.ne.s32.totalorder %s222, %s223
    %p237 = scmp.eq.s32.totalorder %s21, 1
    %p238 = por %p236, %p237
    %p240 = scmp.ne.s32.totalorder %s223, %s239
    %p241 = scmp.eq.s32.totalorder %s21, 0
    %p242 = por %p240, %p241
    %p243 = scmp.le.s32.totalorder 1, %s15
    %p244 = scmp.lt.s32.totalorder %s15, 3
    %p245 = pnand %p243, %p244
    %p246 = pneg %p245
    // Predicated region
    $region9: #{autoencoder_forward.1} parent=5 // pred_check
      _
    $region10: #{autoencoder_forward.1} parent=5 // pred_check_branch
      %248 = sbr.rel (%p245) target = $region12
    $region11: #{autoencoder_forward.1} parent=5 // pred_region
      %s249 = ssub.s32 %s15, 1
      // Predicated region
      $region13: #{autoencoder_forward.1} parent=11 // pred_check
        %p250 = pneg %p62
      $region14: #{autoencoder_forward.1} parent=11 // pred_check_branch
        %252 = sbr.rel (%p250) target = $region16
      $region15: #{autoencoder_forward.1} parent=11 // pred_region
        _
      $region16: #{autoencoder_forward.1} parent=11 // pred_fallthru
        _
      // Predicated region
      $region17: #{autoencoder_forward.1} parent=11 // pred_check
        %p253 = pneg %p83
      $region18: #{autoencoder_forward.1} parent=11 // pred_check_branch
        %255 = sbr.rel (%p253) target = $region20
      $region19: #{autoencoder_forward.1} parent=11 // pred_region
        _
      $region20: #{autoencoder_forward.1} parent=11 // pred_fallthru
        _
      // Predicated region
      $region21: #{autoencoder_forward.1} parent=11 // pred_check
        %p256 = pneg %p104
      $region22: #{autoencoder_forward.1} parent=11 // pred_check_branch
        %258 = sbr.rel (%p256) target = $region24
      $region23: #{autoencoder_forward.1} parent=11 // pred_region
        _
      $region24: #{autoencoder_forward.1} parent=11 // pred_fallthru
        _
      // Predicated region
      $region25: #{autoencoder_forward.1} parent=11 // pred_check
        %p259 = pneg %p125
      $region26: #{autoencoder_forward.1} parent=11 // pred_check_branch
        %261 = sbr.rel (%p259) target = $region28
      $region27: #{autoencoder_forward.1} parent=11 // pred_region
        _
      $region28: #{autoencoder_forward.1} parent=11 // pred_fallthru
        _
      // Predicated region
      $region29: #{autoencoder_forward.1} parent=11 // pred_check
        %p262 = pneg %p146
      $region30: #{autoencoder_forward.1} parent=11 // pred_check_branch
        %264 = sbr.rel (%p262) target = $region32
      $region31: #{autoencoder_forward.1} parent=11 // pred_region
        _
      $region32: #{autoencoder_forward.1} parent=11 // pred_fallthru
        _
      // Predicated region
      $region33: #{autoencoder_forward.1} parent=11 // pred_check
        %p265 = pneg %p167
      $region34: #{autoencoder_forward.1} parent=11 // pred_check_branch
        %267 = sbr.rel (%p265) target = $region36
      $region35: #{autoencoder_forward.1} parent=11 // pred_region
        _
      $region36: #{autoencoder_forward.1} parent=11 // pred_fallthru
        _
      // Predicated region
      $region37: #{autoencoder_forward.1} parent=11 // pred_check
        %p268 = pneg %p188
      $region38: #{autoencoder_forward.1} parent=11 // pred_check_branch
        %270 = sbr.rel (%p268) target = $region40
      $region39: #{autoencoder_forward.1} parent=11 // pred_region
        _
      $region40: #{autoencoder_forward.1} parent=11 // pred_fallthru
        _
      // Predicated region
      $region41: #{autoencoder_forward.1} parent=11 // pred_check
        %p271 = pneg %p209
      $region42: #{autoencoder_forward.1} parent=11 // pred_check_branch
        %273 = sbr.rel (%p271) target = $region44
      $region43: #{autoencoder_forward.1} parent=11 // pred_region
        _
      $region44: #{autoencoder_forward.1} parent=11 // pred_fallthru
        _
    $region12: #{autoencoder_forward.1} parent=5 // pred_fallthru
      _
    %p274 = scmp.lt.s32.totalorder %s15, 2
    // Predicated region
    $region45: #{autoencoder_forward.1} parent=5 // pred_check
      %p275 = pneg %p274
    $region46: #{autoencoder_forward.1} parent=5 // pred_check_branch
      %277 = sbr.rel (%p275) target = $region48
    $region47: #{autoencoder_forward.1} parent=5 // pred_region
      // Predicated region
      $region49: #{autoencoder_forward.1} parent=47 // pred_check
        %p278 = pneg %p35
      $region50: #{autoencoder_forward.1} parent=47 // pred_check_branch
        %280 = sbr.rel (%p278) target = $region52
      $region51: #{autoencoder_forward.1} parent=47 // pred_region
        %s281 = smul.u32 32, %s15
        %p282 = scmp.lt.s32.totalorder %s281, 63
        %s283 = scalar_select %p282, %s281, 63
        %s284 = smul.addr %s283, 7
        %s285 = smul.addr %s284, 8
        %s286 = scalar_lea.vmem %s0, %s285
        %s287 = smul.u32 32, %s15
      $region52: #{autoencoder_forward.1} parent=47 // pred_fallthru
        _
    $region48: #{autoencoder_forward.1} parent=5 // pred_fallthru
      _
    %p288 = scmp.le.s32.totalorder 1, %s15
    %p289 = scmp.lt.s32.totalorder %s15, 3
    %p290 = pnand %p288, %p289
    %p291 = pneg %p290
    // Predicated region
    $region53: #{autoencoder_forward.1} parent=5 // pred_check
      _
    $region54: #{autoencoder_forward.1} parent=5 // pred_check_branch
      %293 = sbr.rel (%p290) target = $region56
    $region55: #{autoencoder_forward.1} parent=5 // pred_region
      %s294 = ssub.s32 %s15, 1
      %s295 = smul.u32 32, %s20
      %p296 = scmp.lt.s32.totalorder %s295, 63
      %s297 = scalar_select %p296, %s295, 63
      %s298 = smul.addr %s297, 7
      %s299 = smul.addr %s298, 8
      %s300 = scalar_lea.vmem %s0, %s299
      %p301 = pneg %p41
      %p302 = pneg %p38
      %p303 = pneg %p62
      %p304 = pneg %p59
      %p305 = pneg %p83
      %p306 = pneg %p80
      %p307 = pneg %p104
      %p308 = pneg %p101
      %p309 = pneg %p125
      %p310 = pneg %p122
      %p311 = pneg %p146
      %p312 = pneg %p143
      %p313 = pneg %p167
      %p314 = pneg %p164
      %p315 = pneg %p188
      %p316 = pneg %p185
      %p317 = pneg %p209
      %p318 = pneg %p206
      %p319 = pneg %p235
      %p320 = pneg %p232
      %s321 = smul.u32 32, %s20
      %p322 = scmp.lt.s32.totalorder %s321, 63
      %s323 = scalar_select %p322, %s321, 63
      %s324 = smul.addr %s323, 8
      %s325 = scalar_lea.vmem %s9, %s324
      %s326 = smul.u32 32, %s20
      %p327 = scmp.lt.s32.totalorder %s326, 63
      %s328 = scalar_select %p327, %s326, 63
      %s329 = smul.addr %s328, 7
      %s330 = smul.addr %s329, 8
      %s331 = scalar_lea.vmem %s0, %s330
      %s332 = smul.u32 32, %s20
      %s333 = smul.u32 32, %s20
      %p334 = scmp.lt.s32.totalorder %s333, 63
      %s335 = scalar_select %p334, %s333, 63
      %s336 = smul.addr %s335, 8
      %s337 = scalar_lea.vmem %s9, %s336
      %s338 = smul.u32 32, %s20
      %v340 = vld [vmem:[%s331] sm:$0xff]
      %v341 = vld [vmem:[%s331 + $0x8] sm:$0xff]
      %v342 = vld [vmem:[%s331 + $0x10] sm:$0xff]
      %v343 = vld [vmem:[%s331 + $0x18] sm:$0xff]
      %v344 = vld [vmem:[%s331 + $0x20] sm:$0xff]
      %v345 = vld [vmem:[%s331 + $0x28] sm:$0xff]
      %v346 = vld [vmem:[%s331 + $0x30] sm:$0xff]
      %v347 = vld [vmem:[%s331 + $0x38] sm:$0xff]
      %v348 = vld [vmem:[%s331 + $0x40] sm:$0xff]
      %v349 = vld [vmem:[%s331 + $0x48] sm:$0xff]
      %v350 = vld [vmem:[%s331 + $0x50] sm:$0xff]
      %v351 = vld [vmem:[%s331 + $0x58] sm:$0xff]
      %v352 = vld [vmem:[%s331 + $0x60] sm:$0xff]
      %v353 = vld [vmem:[%s331 + $0x68] sm:$0xff]
      %v354 = vld [vmem:[%s331 + $0x70] sm:$0xff]
      %v355 = vld [vmem:[%s331 + $0x78] sm:$0xff]
      %v356 = vld [vmem:[%s331 + $0x80] sm:$0xff]
      %v357 = vld [vmem:[%s331 + $0x88] sm:$0xff]
      %v358 = vld [vmem:[%s331 + $0x90] sm:$0xff]
      %v359 = vld [vmem:[%s331 + $0x98] sm:$0xff]
      %v360 = vld [vmem:[%s331 + $0xa0] sm:$0xff]
      %v361 = vld [vmem:[%s331 + $0xa8] sm:$0xff]
      %v362 = vld [vmem:[%s331 + $0xb0] sm:$0xff]
      %v363 = vld [vmem:[%s331 + $0xb8] sm:$0xff]
      %v364 = vld [vmem:[%s331 + $0xc0] sm:$0xff]
      %v365 = vld [vmem:[%s331 + $0xc8] sm:$0xff]
      %v366 = vld [vmem:[%s331 + $0xd0] sm:$0xff]
      %v367 = vld [vmem:[%s331 + $0xd8] sm:$0xff]
      %v368 = vld [vmem:[%s331 + $0xe0] sm:$0xff]
      %v369 = vld [vmem:[%s331 + $0xe8] sm:$0xff]
      %v370 = vld [vmem:[%s331 + $0xf0] sm:$0xff]
      %v371 = vld [vmem:[%s331 + $0xf8] sm:$0xff]
      %v372 = vld [vmem:[%s331 + $0x100] sm:$0xff]
      %v373 = vld [vmem:[%s331 + $0x108] sm:$0xff]
      %v374 = vld [vmem:[%s331 + $0x110] sm:$0xff]
      %v375 = vld [vmem:[%s331 + $0x118] sm:$0xff]
      %v376 = vld [vmem:[%s331 + $0x120] sm:$0xff]
      %v377 = vld [vmem:[%s331 + $0x128] sm:$0xff]
      %v378 = vld [vmem:[%s331 + $0x130] sm:$0xff]
      %v379 = vld [vmem:[%s331 + $0x138] sm:$0xff]
      %v380 = vld [vmem:[%s331 + $0x140] sm:$0xff]
      %v381 = vld [vmem:[%s331 + $0x148] sm:$0xff]
      %v382 = vld [vmem:[%s331 + $0x150] sm:$0xff]
      %v383 = vld [vmem:[%s331 + $0x158] sm:$0xff]
      %v384 = vld [vmem:[%s331 + $0x160] sm:$0xff]
      %v385 = vld [vmem:[%s331 + $0x168] sm:$0xff]
      %v386 = vld [vmem:[%s331 + $0x170] sm:$0xff]
      %v387 = vld [vmem:[%s331 + $0x178] sm:$0xff]
      %v388 = vld [vmem:[%s331 + $0x180] sm:$0xff]
      %v389 = vld [vmem:[%s331 + $0x188] sm:$0xff]
      %v390 = vld [vmem:[%s331 + $0x190] sm:$0xff]
      %v391 = vld [vmem:[%s331 + $0x198] sm:$0xff]
      %v392 = vld [vmem:[%s331 + $0x1a0] sm:$0xff]
      %v393 = vld [vmem:[%s331 + $0x1a8] sm:$0xff]
      %v394 = vld [vmem:[%s331 + $0x1b0] sm:$0xff]
      %v395 = vld [vmem:[%s331 + $0x1b8] sm:$0xff]
      %v396 = vld [vmem:[%s331 + $0x1c0] sm:$0xff]
      %v397 = vld [vmem:[%s331 + $0x1c8] sm:$0xff]
      %v398 = vld [vmem:[%s331 + $0x1d0] sm:$0xff]
      %v399 = vld [vmem:[%s331 + $0x1d8] sm:$0xff]
      %v400 = vld [vmem:[%s331 + $0x1e0] sm:$0xff]
      %v401 = vld [vmem:[%s331 + $0x1e8] sm:$0xff]
      %v402 = vld [vmem:[%s331 + $0x1f0] sm:$0xff]
      %v403 = vld [vmem:[%s331 + $0x1f8] sm:$0xff]
      %v404 = vld [vmem:[%s331 + $0x200] sm:$0xff]
      %v405 = vld [vmem:[%s331 + $0x208] sm:$0xff]
      %v406 = vld [vmem:[%s331 + $0x210] sm:$0xff]
      %v407 = vld [vmem:[%s331 + $0x218] sm:$0xff]
      %v408 = vld [vmem:[%s331 + $0x220] sm:$0xff]
      %v409 = vld [vmem:[%s331 + $0x228] sm:$0xff]
      %v410 = vld [vmem:[%s331 + $0x230] sm:$0xff]
      %v411 = vld [vmem:[%s331 + $0x238] sm:$0xff]
      %v412 = vld [vmem:[%s331 + $0x240] sm:$0xff]
      %v413 = vld [vmem:[%s331 + $0x248] sm:$0xff]
      %v414 = vld [vmem:[%s331 + $0x250] sm:$0xff]
      %v415 = vld [vmem:[%s331 + $0x258] sm:$0xff]
      %v416 = vld [vmem:[%s331 + $0x260] sm:$0xff]
      %v417 = vld [vmem:[%s331 + $0x268] sm:$0xff]
      %v418 = vld [vmem:[%s331 + $0x270] sm:$0xff]
      %v419 = vld [vmem:[%s331 + $0x278] sm:$0xff]
      %v420 = vld [vmem:[%s331 + $0x280] sm:$0xff]
      %v421 = vld [vmem:[%s331 + $0x288] sm:$0xff]
      %v422 = vld [vmem:[%s331 + $0x290] sm:$0xff]
      %v423 = vld [vmem:[%s331 + $0x298] sm:$0xff]
      %v424 = vld [vmem:[%s331 + $0x2a0] sm:$0xff]
      %v425 = vld [vmem:[%s331 + $0x2a8] sm:$0xff]
      %v426 = vld [vmem:[%s331 + $0x2b0] sm:$0xff]
      %v427 = vld [vmem:[%s331 + $0x2b8] sm:$0xff]
      %v428 = vld [vmem:[%s331 + $0x2c0] sm:$0xff]
      %v429 = vld [vmem:[%s331 + $0x2c8] sm:$0xff]
      %v430 = vld [vmem:[%s331 + $0x2d0] sm:$0xff]
      %v431 = vld [vmem:[%s331 + $0x2d8] sm:$0xff]
      %v432 = vld [vmem:[%s331 + $0x2e0] sm:$0xff]
      %v433 = vld [vmem:[%s331 + $0x2e8] sm:$0xff]
      %v434 = vld [vmem:[%s331 + $0x2f0] sm:$0xff]
      %v435 = vld [vmem:[%s331 + $0x2f8] sm:$0xff]
      %v436 = vld [vmem:[%s331 + $0x300] sm:$0xff]
      %v437 = vld [vmem:[%s331 + $0x308] sm:$0xff]
      %v438 = vld [vmem:[%s331 + $0x310] sm:$0xff]
      %v439 = vld [vmem:[%s331 + $0x318] sm:$0xff]
      %v440 = vld [vmem:[%s331 + $0x320] sm:$0xff]
      %v441 = vld [vmem:[%s331 + $0x328] sm:$0xff]
      %v442 = vld [vmem:[%s331 + $0x330] sm:$0xff]
      %v443 = vld [vmem:[%s331 + $0x338] sm:$0xff]
      %v444 = vld [vmem:[%s331 + $0x340] sm:$0xff]
      %v445 = vld [vmem:[%s331 + $0x348] sm:$0xff]
      %v446 = vld [vmem:[%s331 + $0x350] sm:$0xff]
      %v447 = vld [vmem:[%s331 + $0x358] sm:$0xff]
      %v448 = vld [vmem:[%s331 + $0x360] sm:$0xff]
      %v449 = vld [vmem:[%s331 + $0x368] sm:$0xff]
      %v450 = vld [vmem:[%s331 + $0x370] sm:$0xff]
      %v451 = vld [vmem:[%s331 + $0x378] sm:$0xff]
      %v452 = vld [vmem:[%s331 + $0x380] sm:$0xff]
      %v453 = vld [vmem:[%s331 + $0x388] sm:$0xff]
      %v454 = vld [vmem:[%s331 + $0x390] sm:$0xff]
      %v455 = vld [vmem:[%s331 + $0x398] sm:$0xff]
      %v456 = vld [vmem:[%s331 + $0x3a0] sm:$0xff]
      %v457 = vld [vmem:[%s331 + $0x3a8] sm:$0xff]
      %v458 = vld [vmem:[%s331 + $0x3b0] sm:$0xff]
      %v459 = vld [vmem:[%s331 + $0x3b8] sm:$0xff]
      %v460 = vld [vmem:[%s331 + $0x3c0] sm:$0xff]
      %v461 = vld [vmem:[%s331 + $0x3c8] sm:$0xff]
      %v462 = vld [vmem:[%s331 + $0x3d0] sm:$0xff]
      %v463 = vld [vmem:[%s331 + $0x3d8] sm:$0xff]
      %v464 = vld [vmem:[%s331 + $0x3e0] sm:$0xff]
      %v465 = vld [vmem:[%s331 + $0x3e8] sm:$0xff]
      %v466 = vld [vmem:[%s331 + $0x3f0] sm:$0xff]
      %v467 = vld [vmem:[%s331 + $0x3f8] sm:$0xff]
      %v468 = vld [vmem:[%s331 + $0x400] sm:$0xff]
      %v469 = vld [vmem:[%s331 + $0x408] sm:$0xff]
      %v470 = vld [vmem:[%s331 + $0x410] sm:$0xff]
      %v471 = vld [vmem:[%s331 + $0x418] sm:$0xff]
      %v472 = vld [vmem:[%s331 + $0x420] sm:$0xff]
      %v473 = vld [vmem:[%s331 + $0x428] sm:$0xff]
      %v474 = vld [vmem:[%s331 + $0x430] sm:$0xff]
      %v475 = vld [vmem:[%s331 + $0x438] sm:$0xff]
      %v476 = vld [vmem:[%s331 + $0x440] sm:$0xff]
      %v477 = vld [vmem:[%s331 + $0x448] sm:$0xff]
      %v478 = vld [vmem:[%s331 + $0x450] sm:$0xff]
      %v479 = vld [vmem:[%s331 + $0x458] sm:$0xff]
      %v480 = vld [vmem:[%s331 + $0x460] sm:$0xff]
      %v481 = vld [vmem:[%s331 + $0x468] sm:$0xff]
      %v482 = vld [vmem:[%s331 + $0x470] sm:$0xff]
      %v483 = vld [vmem:[%s331 + $0x478] sm:$0xff]
      %v484 = vld [vmem:[%s331 + $0x480] sm:$0xff]
      %v485 = vld [vmem:[%s331 + $0x488] sm:$0xff]
      %v486 = vld [vmem:[%s331 + $0x490] sm:$0xff]
      %v487 = vld [vmem:[%s331 + $0x498] sm:$0xff]
      %v488 = vld [vmem:[%s331 + $0x4a0] sm:$0xff]
      %v489 = vld [vmem:[%s331 + $0x4a8] sm:$0xff]
      %v490 = vld [vmem:[%s331 + $0x4b0] sm:$0xff]
      %v491 = vld [vmem:[%s331 + $0x4b8] sm:$0xff]
      %v492 = vld [vmem:[%s331 + $0x4c0] sm:$0xff]
      %v493 = vld [vmem:[%s331 + $0x4c8] sm:$0xff]
      %v494 = vld [vmem:[%s331 + $0x4d0] sm:$0xff]
      %v495 = vld [vmem:[%s331 + $0x4d8] sm:$0xff]
      %v496 = vld [vmem:[%s331 + $0x4e0] sm:$0xff]
      %v497 = vld [vmem:[%s331 + $0x4e8] sm:$0xff]
      %v498 = vld [vmem:[%s331 + $0x4f0] sm:$0xff]
      %v499 = vld [vmem:[%s331 + $0x4f8] sm:$0xff]
      %v500 = vld [vmem:[%s331 + $0x500] sm:$0xff]
      %v501 = vld [vmem:[%s331 + $0x508] sm:$0xff]
      %v502 = vld [vmem:[%s331 + $0x510] sm:$0xff]
      %v503 = vld [vmem:[%s331 + $0x518] sm:$0xff]
      %v504 = vld [vmem:[%s331 + $0x520] sm:$0xff]
      %v505 = vld [vmem:[%s331 + $0x528] sm:$0xff]
      %v506 = vld [vmem:[%s331 + $0x530] sm:$0xff]
      %v507 = vld [vmem:[%s331 + $0x538] sm:$0xff]
      %v508 = vld [vmem:[%s331 + $0x540] sm:$0xff]
      %v509 = vld [vmem:[%s331 + $0x548] sm:$0xff]
      %v510 = vld [vmem:[%s331 + $0x550] sm:$0xff]
      %v511 = vld [vmem:[%s331 + $0x558] sm:$0xff]
      %v512 = vld [vmem:[%s331 + $0x560] sm:$0xff]
      %v513 = vld [vmem:[%s331 + $0x568] sm:$0xff]
      %v514 = vld [vmem:[%s331 + $0x570] sm:$0xff]
      %v515 = vld [vmem:[%s331 + $0x578] sm:$0xff]
      %v516 = vld [vmem:[%s331 + $0x580] sm:$0xff]
      %v517 = vld [vmem:[%s331 + $0x588] sm:$0xff]
      %v518 = vld [vmem:[%s331 + $0x590] sm:$0xff]
      %v519 = vld [vmem:[%s331 + $0x598] sm:$0xff]
      %v520 = vld [vmem:[%s331 + $0x5a0] sm:$0xff]
      %v521 = vld [vmem:[%s331 + $0x5a8] sm:$0xff]
      %v522 = vld [vmem:[%s331 + $0x5b0] sm:$0xff]
      %v523 = vld [vmem:[%s331 + $0x5b8] sm:$0xff]
      %v524 = vld [vmem:[%s331 + $0x5c0] sm:$0xff]
      %v525 = vld [vmem:[%s331 + $0x5c8] sm:$0xff]
      %v526 = vld [vmem:[%s331 + $0x5d0] sm:$0xff]
      %v527 = vld [vmem:[%s331 + $0x5d8] sm:$0xff]
      %v528 = vld [vmem:[%s331 + $0x5e0] sm:$0xff]
      %v529 = vld [vmem:[%s331 + $0x5e8] sm:$0xff]
      %v530 = vld [vmem:[%s331 + $0x5f0] sm:$0xff]
      %v531 = vld [vmem:[%s331 + $0x5f8] sm:$0xff]
      %v532 = vld [vmem:[%s331 + $0x600] sm:$0xff]
      %v533 = vld [vmem:[%s331 + $0x608] sm:$0xff]
      %v534 = vld [vmem:[%s331 + $0x610] sm:$0xff]
      %v535 = vld [vmem:[%s331 + $0x618] sm:$0xff]
      %v536 = vld [vmem:[%s331 + $0x620] sm:$0xff]
      %v537 = vld [vmem:[%s331 + $0x628] sm:$0xff]
      %v538 = vld [vmem:[%s331 + $0x630] sm:$0xff]
      %v539 = vld [vmem:[%s331 + $0x638] sm:$0xff]
      %v540 = vld [vmem:[%s331 + $0x640] sm:$0xff]
      %v541 = vld [vmem:[%s331 + $0x648] sm:$0xff]
      %v542 = vld [vmem:[%s331 + $0x650] sm:$0xff]
      %v543 = vld [vmem:[%s331 + $0x658] sm:$0xff]
      %v544 = vld [vmem:[%s331 + $0x660] sm:$0xff]
      %v545 = vld [vmem:[%s331 + $0x668] sm:$0xff]
      %v546 = vld [vmem:[%s331 + $0x670] sm:$0xff]
      %v547 = vld [vmem:[%s331 + $0x678] sm:$0xff]
      %v548 = vld [vmem:[%s331 + $0x680] sm:$0xff]
      %v549 = vld [vmem:[%s331 + $0x688] sm:$0xff]
      %v550 = vld [vmem:[%s331 + $0x690] sm:$0xff]
      %v551 = vld [vmem:[%s331 + $0x698] sm:$0xff]
      %v552 = vld [vmem:[%s331 + $0x6a0] sm:$0xff]
      %v553 = vld [vmem:[%s331 + $0x6a8] sm:$0xff]
      %v554 = vld [vmem:[%s331 + $0x6b0] sm:$0xff]
      %v555 = vld [vmem:[%s331 + $0x6b8] sm:$0xff]
      %v556 = vld [vmem:[%s331 + $0x6c0] sm:$0xff]
      %v557 = vld [vmem:[%s331 + $0x6c8] sm:$0xff]
      %v558 = vld [vmem:[%s331 + $0x6d0] sm:$0xff]
      %v559 = vld [vmem:[%s331 + $0x6d8] sm:$0xff]
      %v560 = vld [vmem:[%s331 + $0x6e0] sm:$0xff]
      %v561 = vld [vmem:[%s331 + $0x6e8] sm:$0xff]
      %v562 = vld [vmem:[%s331 + $0x6f0] sm:$0xff]
      %v563 = vld [vmem:[%s331 + $0x6f8] sm:$0xff]
      %v564 = vpack.c.bf16 %v347, %v340
      %v565 = vpack.c.bf16 %v348, %v341
      %v566 = vpack.c.bf16 %v349, %v342
      %v567 = vpack.c.bf16 %v350, %v343
      %v568 = vpack.c.bf16 %v351, %v344
      %v569 = vpack.c.bf16 %v352, %v345
      %v570 = vpack.c.bf16 %v353, %v346
      %v571 = vpack.c.bf16 %v361, %v354
      %v572 = vpack.c.bf16 %v362, %v355
      %v573 = vpack.c.bf16 %v363, %v356
      %v574 = vpack.c.bf16 %v364, %v357
      %v575 = vpack.c.bf16 %v365, %v358
      %v576 = vpack.c.bf16 %v366, %v359
      %v577 = vpack.c.bf16 %v367, %v360
      %v578 = vpack.c.bf16 %v375, %v368
      %v579 = vpack.c.bf16 %v376, %v369
      %v580 = vpack.c.bf16 %v377, %v370
      %v581 = vpack.c.bf16 %v378, %v371
      %v582 = vpack.c.bf16 %v379, %v372
      %v583 = vpack.c.bf16 %v380, %v373
      %v584 = vpack.c.bf16 %v381, %v374
      %v585 = vpack.c.bf16 %v389, %v382
      %v586 = vpack.c.bf16 %v390, %v383
      %v587 = vpack.c.bf16 %v391, %v384
      %v588 = vpack.c.bf16 %v392, %v385
      %v589 = vpack.c.bf16 %v393, %v386
      %v590 = vpack.c.bf16 %v394, %v387
      %v591 = vpack.c.bf16 %v395, %v388
      %v592 = vpack.c.bf16 %v403, %v396
      %v593 = vpack.c.bf16 %v404, %v397
      %v594 = vpack.c.bf16 %v405, %v398
      %v595 = vpack.c.bf16 %v406, %v399
      %v596 = vpack.c.bf16 %v407, %v400
      %v597 = vpack.c.bf16 %v408, %v401
      %v598 = vpack.c.bf16 %v409, %v402
      %v599 = vpack.c.bf16 %v417, %v410
      %v600 = vpack.c.bf16 %v418, %v411
      %v601 = vpack.c.bf16 %v419, %v412
      %v602 = vpack.c.bf16 %v420, %v413
      %v603 = vpack.c.bf16 %v421, %v414
      %v604 = vpack.c.bf16 %v422, %v415
      %v605 = vpack.c.bf16 %v423, %v416
      %v606 = vpack.c.bf16 %v431, %v424
      %v607 = vpack.c.bf16 %v432, %v425
      %v608 = vpack.c.bf16 %v433, %v426
      %v609 = vpack.c.bf16 %v434, %v427
      %v610 = vpack.c.bf16 %v435, %v428
      %v611 = vpack.c.bf16 %v436, %v429
      %v612 = vpack.c.bf16 %v437, %v430
      %v613 = vpack.c.bf16 %v445, %v438
      %v614 = vpack.c.bf16 %v446, %v439
      %v615 = vpack.c.bf16 %v447, %v440
      %v616 = vpack.c.bf16 %v448, %v441
      %v617 = vpack.c.bf16 %v449, %v442
      %v618 = vpack.c.bf16 %v450, %v443
      %v619 = vpack.c.bf16 %v451, %v444
      %v620 = vpack.c.bf16 %v459, %v452
      %v621 = vpack.c.bf16 %v460, %v453
      %v622 = vpack.c.bf16 %v461, %v454
      %v623 = vpack.c.bf16 %v462, %v455
      %v624 = vpack.c.bf16 %v463, %v456
      %v625 = vpack.c.bf16 %v464, %v457
      %v626 = vpack.c.bf16 %v465, %v458
      %v627 = vpack.c.bf16 %v473, %v466
      %v628 = vpack.c.bf16 %v474, %v467
      %v629 = vpack.c.bf16 %v475, %v468
      %v630 = vpack.c.bf16 %v476, %v469
      %v631 = vpack.c.bf16 %v477, %v470
      %v632 = vpack.c.bf16 %v478, %v471
      %v633 = vpack.c.bf16 %v479, %v472
      %v634 = vpack.c.bf16 %v487, %v480
      %v635 = vpack.c.bf16 %v488, %v481
      %v636 = vpack.c.bf16 %v489, %v482
      %v637 = vpack.c.bf16 %v490, %v483
      %v638 = vpack.c.bf16 %v491, %v484
      %v639 = vpack.c.bf16 %v492, %v485
      %v640 = vpack.c.bf16 %v493, %v486
      %v641 = vpack.c.bf16 %v501, %v494
      %v642 = vpack.c.bf16 %v502, %v495
      %v643 = vpack.c.bf16 %v503, %v496
      %v644 = vpack.c.bf16 %v504, %v497
      %v645 = vpack.c.bf16 %v505, %v498
      %v646 = vpack.c.bf16 %v506, %v499
      %v647 = vpack.c.bf16 %v507, %v500
      %v648 = vpack.c.bf16 %v515, %v508
      %v649 = vpack.c.bf16 %v516, %v509
      %v650 = vpack.c.bf16 %v517, %v510
      %v651 = vpack.c.bf16 %v518, %v511
      %v652 = vpack.c.bf16 %v519, %v512
      %v653 = vpack.c.bf16 %v520, %v513
      %v654 = vpack.c.bf16 %v521, %v514
      %v655 = vpack.c.bf16 %v529, %v522
      %v656 = vpack.c.bf16 %v530, %v523
      %v657 = vpack.c.bf16 %v531, %v524
      %v658 = vpack.c.bf16 %v532, %v525
      %v659 = vpack.c.bf16 %v533, %v526
      %v660 = vpack.c.bf16 %v534, %v527
      %v661 = vpack.c.bf16 %v535, %v528
      %v662 = vpack.c.bf16 %v543, %v536
      %v663 = vpack.c.bf16 %v544, %v537
      %v664 = vpack.c.bf16 %v545, %v538
      %v665 = vpack.c.bf16 %v546, %v539
      %v666 = vpack.c.bf16 %v547, %v540
      %v667 = vpack.c.bf16 %v548, %v541
      %v668 = vpack.c.bf16 %v549, %v542
      %v669 = vpack.c.bf16 %v557, %v550
      %v670 = vpack.c.bf16 %v558, %v551
      %v671 = vpack.c.bf16 %v559, %v552
      %v672 = vpack.c.bf16 %v560, %v553
      %v673 = vpack.c.bf16 %v561, %v554
      %v674 = vpack.c.bf16 %v562, %v555
      %v675 = vpack.c.bf16 %v563, %v556
      %v676 = vld [vmem:[%s1] sm:$0xff]
      %v677 = vld [vmem:[%s1 + $0x8] sm:$0xff]
      %v678 = vld [vmem:[%s1 + $0x10] sm:$0xff]
      %v679 = vld [vmem:[%s1 + $0x18] sm:$0xff]
      %v680 = vld [vmem:[%s1 + $0x20] sm:$0xff]
      %v681 = vld [vmem:[%s1 + $0x28] sm:$0xff]
      %v682 = vld [vmem:[%s1 + $0x30] sm:$0xff]
      %v683 = vld [vmem:[%s1 + $0x38] sm:$0xff]
      %v684 = vld [vmem:[%s1 + $0x40] sm:$0xff]
      %v685 = vld [vmem:[%s1 + $0x48] sm:$0xff]
      %v686 = vld [vmem:[%s1 + $0x50] sm:$0xff]
      %v687 = vld [vmem:[%s1 + $0x58] sm:$0xff]
      %v688 = vld [vmem:[%s1 + $0x60] sm:$0xff]
      %v689 = vld [vmem:[%s1 + $0x68] sm:$0xff]
      %v690 = vld [vmem:[%s1 + $0x70] sm:$0xff]
      %v691 = vld [vmem:[%s1 + $0x78] sm:$0xff]
      %v692 = vld [vmem:[%s1 + $0x80] sm:$0xff]
      %v693 = vld [vmem:[%s1 + $0x88] sm:$0xff]
      %v694 = vld [vmem:[%s1 + $0x90] sm:$0xff]
      %v695 = vld [vmem:[%s1 + $0x98] sm:$0xff]
      %v696 = vld [vmem:[%s1 + $0xa0] sm:$0xff]
      %v697 = vld [vmem:[%s1 + $0xa8] sm:$0xff]
      %v698 = vld [vmem:[%s1 + $0xb0] sm:$0xff]
      %v699 = vld [vmem:[%s1 + $0xb8] sm:$0xff]
      %v700 = vld [vmem:[%s1 + $0xc0] sm:$0xff]
      %v701 = vld [vmem:[%s1 + $0xc8] sm:$0xff]
      %v702 = vld [vmem:[%s1 + $0xd0] sm:$0xff]
      %v703 = vld [vmem:[%s1 + $0xd8] sm:$0xff]
      %v704 = vld [vmem:[%s1 + $0xe0] sm:$0xff]
      %v705 = vld [vmem:[%s1 + $0xe8] sm:$0xff]
      %v706 = vld [vmem:[%s1 + $0xf0] sm:$0xff]
      %v707 = vld [vmem:[%s1 + $0xf8] sm:$0xff]
      %v708 = vld [vmem:[%s1 + $0x100] sm:$0xff]
      %v709 = vld [vmem:[%s1 + $0x108] sm:$0xff]
      %v710 = vld [vmem:[%s1 + $0x110] sm:$0xff]
      %v711 = vld [vmem:[%s1 + $0x118] sm:$0xff]
      %v712 = vld [vmem:[%s1 + $0x120] sm:$0xff]
      %v713 = vld [vmem:[%s1 + $0x128] sm:$0xff]
      %v714 = vld [vmem:[%s1 + $0x130] sm:$0xff]
      %v715 = vld [vmem:[%s1 + $0x138] sm:$0xff]
      %v716 = vld [vmem:[%s1 + $0x140] sm:$0xff]
      %v717 = vld [vmem:[%s1 + $0x148] sm:$0xff]
      %v718 = vld [vmem:[%s1 + $0x150] sm:$0xff]
      %v719 = vld [vmem:[%s1 + $0x158] sm:$0xff]
      %v720 = vld [vmem:[%s1 + $0x160] sm:$0xff]
      %v721 = vld [vmem:[%s1 + $0x168] sm:$0xff]
      %v722 = vld [vmem:[%s1 + $0x170] sm:$0xff]
      %v723 = vld [vmem:[%s1 + $0x178] sm:$0xff]
      %v724 = vld [vmem:[%s1 + $0x180] sm:$0xff]
      %v725 = vld [vmem:[%s1 + $0x188] sm:$0xff]
      %v726 = vld [vmem:[%s1 + $0x190] sm:$0xff]
      %v727 = vld [vmem:[%s1 + $0x198] sm:$0xff]
      %v728 = vld [vmem:[%s1 + $0x1a0] sm:$0xff]
      %v729 = vld [vmem:[%s1 + $0x1a8] sm:$0xff]
      %v730 = vld [vmem:[%s1 + $0x1b0] sm:$0xff]
      %v731 = vld [vmem:[%s1 + $0x1b8] sm:$0xff]
      %v732 = vld [vmem:[%s1 + $0x1c0] sm:$0xff]
      %v733 = vld [vmem:[%s1 + $0x1c8] sm:$0xff]
      %v734 = vld [vmem:[%s1 + $0x1d0] sm:$0xff]
      %v735 = vld [vmem:[%s1 + $0x1d8] sm:$0xff]
      %v736 = vld [vmem:[%s1 + $0x1e0] sm:$0xff]
      %v737 = vld [vmem:[%s1 + $0x1e8] sm:$0xff]
      %v738 = vld [vmem:[%s1 + $0x1f0] sm:$0xff]
      %v739 = vld [vmem:[%s1 + $0x1f8] sm:$0xff]
      %v740 = vld [vmem:[%s1 + $0x200] sm:$0xff]
      %v741 = vld [vmem:[%s1 + $0x208] sm:$0xff]
      %v742 = vld [vmem:[%s1 + $0x210] sm:$0xff]
      %v743 = vld [vmem:[%s1 + $0x218] sm:$0xff]
      %v744 = vld [vmem:[%s1 + $0x220] sm:$0xff]
      %v745 = vld [vmem:[%s1 + $0x228] sm:$0xff]
      %v746 = vld [vmem:[%s1 + $0x230] sm:$0xff]
      %v747 = vld [vmem:[%s1 + $0x238] sm:$0xff]
      %v748 = vld [vmem:[%s1 + $0x240] sm:$0xff]
      %v749 = vld [vmem:[%s1 + $0x248] sm:$0xff]
      %v750 = vld [vmem:[%s1 + $0x250] sm:$0xff]
      %v751 = vld [vmem:[%s1 + $0x258] sm:$0xff]
      %v752 = vld [vmem:[%s1 + $0x260] sm:$0xff]
      %v753 = vld [vmem:[%s1 + $0x268] sm:$0xff]
      %v754 = vld [vmem:[%s1 + $0x270] sm:$0xff]
      %v755 = vld [vmem:[%s1 + $0x278] sm:$0xff]
      %v756 = vld [vmem:[%s1 + $0x280] sm:$0xff]
      %v757 = vld [vmem:[%s1 + $0x288] sm:$0xff]
      %v758 = vld [vmem:[%s1 + $0x290] sm:$0xff]
      %v759 = vld [vmem:[%s1 + $0x298] sm:$0xff]
      %v760 = vld [vmem:[%s1 + $0x2a0] sm:$0xff]
      %v761 = vld [vmem:[%s1 + $0x2a8] sm:$0xff]
      %v762 = vld [vmem:[%s1 + $0x2b0] sm:$0xff]
      %v763 = vld [vmem:[%s1 + $0x2b8] sm:$0xff]
      %v764 = vld [vmem:[%s1 + $0x2c0] sm:$0xff]
      %v765 = vld [vmem:[%s1 + $0x2c8] sm:$0xff]
      %v766 = vld [vmem:[%s1 + $0x2d0] sm:$0xff]
      %v767 = vld [vmem:[%s1 + $0x2d8] sm:$0xff]
      %v768 = vld [vmem:[%s1 + $0x2e0] sm:$0xff]
      %v769 = vld [vmem:[%s1 + $0x2e8] sm:$0xff]
      %v770 = vld [vmem:[%s1 + $0x2f0] sm:$0xff]
      %v771 = vld [vmem:[%s1 + $0x2f8] sm:$0xff]
      %v772 = vld [vmem:[%s1 + $0x300] sm:$0xff]
      %v773 = vld [vmem:[%s1 + $0x308] sm:$0xff]
      %v774 = vld [vmem:[%s1 + $0x310] sm:$0xff]
      %v775 = vld [vmem:[%s1 + $0x318] sm:$0xff]
      %v776 = vld [vmem:[%s1 + $0x320] sm:$0xff]
      %v777 = vld [vmem:[%s1 + $0x328] sm:$0xff]
      %v778 = vld [vmem:[%s1 + $0x330] sm:$0xff]
      %v779 = vld [vmem:[%s1 + $0x338] sm:$0xff]
      %v780 = vld [vmem:[%s1 + $0x340] sm:$0xff]
      %v781 = vld [vmem:[%s1 + $0x348] sm:$0xff]
      %v782 = vld [vmem:[%s1 + $0x350] sm:$0xff]
      %v783 = vld [vmem:[%s1 + $0x358] sm:$0xff]
      %v784 = vld [vmem:[%s1 + $0x360] sm:$0xff]
      %v785 = vld [vmem:[%s1 + $0x368] sm:$0xff]
      %v786 = vld [vmem:[%s1 + $0x370] sm:$0xff]
      %v787 = vld [vmem:[%s1 + $0x378] sm:$0xff]
      %v788 = vld [vmem:[%s1 + $0x380] sm:$0xff]
      %v789 = vld [vmem:[%s1 + $0x388] sm:$0xff]
      %v790 = vld [vmem:[%s1 + $0x390] sm:$0xff]
      %v791 = vld [vmem:[%s1 + $0x398] sm:$0xff]
      %v792 = vld [vmem:[%s1 + $0x3a0] sm:$0xff]
      %v793 = vld [vmem:[%s1 + $0x3a8] sm:$0xff]
      %v794 = vld [vmem:[%s1 + $0x3b0] sm:$0xff]
      %v795 = vld [vmem:[%s1 + $0x3b8] sm:$0xff]
      %v796 = vld [vmem:[%s1 + $0x3c0] sm:$0xff]
      %v797 = vld [vmem:[%s1 + $0x3c8] sm:$0xff]
      %v798 = vld [vmem:[%s1 + $0x3d0] sm:$0xff]
      %v799 = vld [vmem:[%s1 + $0x3d8] sm:$0xff]
      %v800 = vld [vmem:[%s1 + $0x3e0] sm:$0xff]
      %v801 = vld [vmem:[%s1 + $0x3e8] sm:$0xff]
      %v802 = vld [vmem:[%s1 + $0x3f0] sm:$0xff]
      %v803 = vld [vmem:[%s1 + $0x3f8] sm:$0xff]
      %v804 = vld [vmem:[%s1 + $0x400] sm:$0xff]
      %v805 = vld [vmem:[%s1 + $0x408] sm:$0xff]
      %v806 = vld [vmem:[%s1 + $0x410] sm:$0xff]
      %v807 = vld [vmem:[%s1 + $0x418] sm:$0xff]
      %v808 = vld [vmem:[%s1 + $0x420] sm:$0xff]
      %v809 = vld [vmem:[%s1 + $0x428] sm:$0xff]
      %v810 = vld [vmem:[%s1 + $0x430] sm:$0xff]
      %v811 = vld [vmem:[%s1 + $0x438] sm:$0xff]
      %v812 = vld [vmem:[%s1 + $0x440] sm:$0xff]
      %v813 = vld [vmem:[%s1 + $0x448] sm:$0xff]
      %v814 = vld [vmem:[%s1 + $0x450] sm:$0xff]
      %v815 = vld [vmem:[%s1 + $0x458] sm:$0xff]
      %v816 = vld [vmem:[%s1 + $0x460] sm:$0xff]
      %v817 = vld [vmem:[%s1 + $0x468] sm:$0xff]
      %v818 = vld [vmem:[%s1 + $0x470] sm:$0xff]
      %v819 = vld [vmem:[%s1 + $0x478] sm:$0xff]
      %v820 = vld [vmem:[%s1 + $0x480] sm:$0xff]
      %v821 = vld [vmem:[%s1 + $0x488] sm:$0xff]
      %v822 = vld [vmem:[%s1 + $0x490] sm:$0xff]
      %v823 = vld [vmem:[%s1 + $0x498] sm:$0xff]
      %v824 = vld [vmem:[%s1 + $0x4a0] sm:$0xff]
      %v825 = vld [vmem:[%s1 + $0x4a8] sm:$0xff]
      %v826 = vld [vmem:[%s1 + $0x4b0] sm:$0xff]
      %v827 = vld [vmem:[%s1 + $0x4b8] sm:$0xff]
      %v828 = vld [vmem:[%s1 + $0x4c0] sm:$0xff]
      %v829 = vld [vmem:[%s1 + $0x4c8] sm:$0xff]
      %v830 = vld [vmem:[%s1 + $0x4d0] sm:$0xff]
      %v831 = vld [vmem:[%s1 + $0x4d8] sm:$0xff]
      %v832 = vld [vmem:[%s1 + $0x4e0] sm:$0xff]
      %v833 = vld [vmem:[%s1 + $0x4e8] sm:$0xff]
      %v834 = vld [vmem:[%s1 + $0x4f0] sm:$0xff]
      %v835 = vld [vmem:[%s1 + $0x4f8] sm:$0xff]
      %v836 = vld [vmem:[%s1 + $0x500] sm:$0xff]
      %v837 = vld [vmem:[%s1 + $0x508] sm:$0xff]
      %v838 = vld [vmem:[%s1 + $0x510] sm:$0xff]
      %v839 = vld [vmem:[%s1 + $0x518] sm:$0xff]
      %v840 = vld [vmem:[%s1 + $0x520] sm:$0xff]
      %v841 = vld [vmem:[%s1 + $0x528] sm:$0xff]
      %v842 = vld [vmem:[%s1 + $0x530] sm:$0xff]
      %v843 = vld [vmem:[%s1 + $0x538] sm:$0xff]
      %v844 = vld [vmem:[%s1 + $0x540] sm:$0xff]
      %v845 = vld [vmem:[%s1 + $0x548] sm:$0xff]
      %v846 = vld [vmem:[%s1 + $0x550] sm:$0xff]
      %v847 = vld [vmem:[%s1 + $0x558] sm:$0xff]
      %v848 = vld [vmem:[%s1 + $0x560] sm:$0xff]
      %v849 = vld [vmem:[%s1 + $0x568] sm:$0xff]
      %v850 = vld [vmem:[%s1 + $0x570] sm:$0xff]
      %v851 = vld [vmem:[%s1 + $0x578] sm:$0xff]
      %v852 = vld [vmem:[%s1 + $0x580] sm:$0xff]
      %v853 = vld [vmem:[%s1 + $0x588] sm:$0xff]
      %v854 = vld [vmem:[%s1 + $0x590] sm:$0xff]
      %v855 = vld [vmem:[%s1 + $0x598] sm:$0xff]
      %v856 = vld [vmem:[%s1 + $0x5a0] sm:$0xff]
      %v857 = vld [vmem:[%s1 + $0x5a8] sm:$0xff]
      %v858 = vld [vmem:[%s1 + $0x5b0] sm:$0xff]
      %v859 = vld [vmem:[%s1 + $0x5b8] sm:$0xff]
      %v860 = vld [vmem:[%s1 + $0x5c0] sm:$0xff]
      %v861 = vld [vmem:[%s1 + $0x5c8] sm:$0xff]
      %v862 = vld [vmem:[%s1 + $0x5d0] sm:$0xff]
      %v863 = vld [vmem:[%s1 + $0x5d8] sm:$0xff]
      %v864 = vld [vmem:[%s1 + $0x5e0] sm:$0xff]
      %v865 = vld [vmem:[%s1 + $0x5e8] sm:$0xff]
      %v866 = vld [vmem:[%s1 + $0x5f0] sm:$0xff]
      %v867 = vld [vmem:[%s1 + $0x5f8] sm:$0xff]
      %v868 = vld [vmem:[%s1 + $0x600] sm:$0xff]
      %v869 = vld [vmem:[%s1 + $0x608] sm:$0xff]
      %v870 = vld [vmem:[%s1 + $0x610] sm:$0xff]
      %v871 = vld [vmem:[%s1 + $0x618] sm:$0xff]
      %v872 = vld [vmem:[%s2] sm:$0xf]
      %v874 = vlaneseq
      %v875 = vshrl.u32 %v874, 7
      %v876 = vsub.s32 0, %v875
      %v877 = vrot.slane %v872, %v876
      %v878 = vlaneseq
      %v879 = vshrl.u32 %v878, 7
      %v880 = vsub.s32 1, %v879
      %v881 = vrot.slane %v872, %v880
      %v882 = vlaneseq
      %v883 = vshrl.u32 %v882, 7
      %v884 = vsub.s32 2, %v883
      %v885 = vrot.slane %v872, %v884
      %v886 = vlaneseq
      %v887 = vshrl.u32 %v886, 7
      %v888 = vsub.s32 3, %v887
      %v889 = vrot.slane %v872, %v888
      %v1090 = vunpack.c.l.b16 %v676
      %v1091 = vunpack.c.h.b16 %v676
      %v1092 = vunpack.c.l.b16 %v677
      %v1093 = vunpack.c.h.b16 %v677
      %v1094 = vunpack.c.l.b16 %v678
      %v1095 = vunpack.c.h.b16 %v678
      %v1096 = vunpack.c.l.b16 %v679
      %v1097 = vunpack.c.h.b16 %v679
      %v1098 = vunpack.c.l.b16 %v680
      %v1099 = vunpack.c.h.b16 %v680
      %v1100 = vunpack.c.l.b16 %v681
      %v1101 = vunpack.c.h.b16 %v681
      %v1102 = vunpack.c.l.b16 %v682
      %v1103 = vunpack.c.h.b16 %v682
      %v1104 = vunpack.c.l.b16 %v683
      %v1105 = vunpack.c.h.b16 %v683
      %v1106 = vunpack.c.l.b16 %v684
      %v1107 = vunpack.c.h.b16 %v684
      %v1108 = vunpack.c.l.b16 %v685
      %v1109 = vunpack.c.h.b16 %v685
      %v1110 = vunpack.c.l.b16 %v686
      %v1111 = vunpack.c.h.b16 %v686
      %v1112 = vunpack.c.l.b16 %v687
      %v1113 = vunpack.c.h.b16 %v687
      %v1114 = vunpack.c.l.b16 %v688
      %v1115 = vunpack.c.h.b16 %v688
      %v1116 = vunpack.c.l.b16 %v689
      %v1117 = vunpack.c.h.b16 %v689
      %v1118 = vunpack.c.l.b16 %v690
      %v1119 = vunpack.c.h.b16 %v690
      %v1120 = vunpack.c.l.b16 %v691
      %v1121 = vunpack.c.h.b16 %v691
      %v1122 = vunpack.c.l.b16 %v692
      %v1123 = vunpack.c.h.b16 %v692
      %v1124 = vunpack.c.l.b16 %v693
      %v1125 = vunpack.c.h.b16 %v693
      %v1126 = vunpack.c.l.b16 %v694
      %v1127 = vunpack.c.h.b16 %v694
      %v1128 = vunpack.c.l.b16 %v695
      %v1129 = vunpack.c.h.b16 %v695
      %v1130 = vunpack.c.l.b16 %v696
      %v1131 = vunpack.c.h.b16 %v696
      %v1132 = vunpack.c.l.b16 %v697
      %v1133 = vunpack.c.h.b16 %v697
      %v1134 = vunpack.c.l.b16 %v698
      %v1135 = vunpack.c.h.b16 %v698
      %v1136 = vunpack.c.l.b16 %v699
      %v1137 = vunpack.c.h.b16 %v699
      %v1138 = vunpack.c.l.b16 %v700
      %v1139 = vunpack.c.h.b16 %v700
      %v1140 = vunpack.c.l.b16 %v701
      %v1141 = vunpack.c.h.b16 %v701
      %v1142 = vunpack.c.l.b16 %v702
      %v1143 = vunpack.c.h.b16 %v702
      %v1144 = vunpack.c.l.b16 %v703
      %v1145 = vunpack.c.h.b16 %v703
      %v1146 = vunpack.c.l.b16 %v704
      %v1147 = vunpack.c.h.b16 %v704
      %v1148 = vunpack.c.l.b16 %v705
      %v1149 = vunpack.c.h.b16 %v705
      %v1150 = vunpack.c.l.b16 %v706
      %v1151 = vunpack.c.h.b16 %v706
      %v1152 = vunpack.c.l.b16 %v707
      %v1153 = vunpack.c.h.b16 %v707
      %v1154 = vunpack.c.l.b16 %v708
      %v1155 = vunpack.c.h.b16 %v708
      %v1156 = vunpack.c.l.b16 %v709
      %v1157 = vunpack.c.h.b16 %v709
      %v1158 = vunpack.c.l.b16 %v710
      %v1159 = vunpack.c.h.b16 %v710
      %v1160 = vunpack.c.l.b16 %v711
      %v1161 = vunpack.c.h.b16 %v711
      %v1162 = vunpack.c.l.b16 %v712
      %v1163 = vunpack.c.h.b16 %v712
      %v1164 = vunpack.c.l.b16 %v713
      %v1165 = vunpack.c.h.b16 %v713
      %v1166 = vunpack.c.l.b16 %v714
      %v1167 = vunpack.c.h.b16 %v714
      %v1168 = vunpack.c.l.b16 %v715
      %v1169 = vunpack.c.h.b16 %v715
      %v1170 = vunpack.c.l.b16 %v716
      %v1171 = vunpack.c.h.b16 %v716
      %v1172 = vunpack.c.l.b16 %v717
      %v1173 = vunpack.c.h.b16 %v717
      %v1174 = vunpack.c.l.b16 %v718
      %v1175 = vunpack.c.h.b16 %v718
      %v1176 = vunpack.c.l.b16 %v719
      %v1177 = vunpack.c.h.b16 %v719
      %v1178 = vunpack.c.l.b16 %v720
      %v1179 = vunpack.c.h.b16 %v720
      %v1180 = vunpack.c.l.b16 %v721
      %v1181 = vunpack.c.h.b16 %v721
      %v1182 = vunpack.c.l.b16 %v722
      %v1183 = vunpack.c.h.b16 %v722
      %v1184 = vunpack.c.l.b16 %v723
      %v1185 = vunpack.c.h.b16 %v723
      %v1186 = vunpack.c.l.b16 %v724
      %v1187 = vunpack.c.h.b16 %v724
      %v1188 = vunpack.c.l.b16 %v725
      %v1189 = vunpack.c.h.b16 %v725
      %v1190 = vunpack.c.l.b16 %v726
      %v1191 = vunpack.c.h.b16 %v726
      %v1192 = vunpack.c.l.b16 %v727
      %v1193 = vunpack.c.h.b16 %v727
      %v1194 = vunpack.c.l.b16 %v728
      %v1195 = vunpack.c.h.b16 %v728
      %v1196 = vunpack.c.l.b16 %v729
      %v1197 = vunpack.c.h.b16 %v729
      %v1198 = vunpack.c.l.b16 %v730
      %v1199 = vunpack.c.h.b16 %v730
      %v1200 = vunpack.c.l.b16 %v731
      %v1201 = vunpack.c.h.b16 %v731
      %v1202 = vunpack.c.l.b16 %v732
      %v1203 = vunpack.c.h.b16 %v732
      %v1204 = vunpack.c.l.b16 %v733
      %v1205 = vunpack.c.h.b16 %v733
      %v1206 = vunpack.c.l.b16 %v734
      %v1207 = vunpack.c.h.b16 %v734
      %v1208 = vunpack.c.l.b16 %v735
      %v1209 = vunpack.c.h.b16 %v735
      %v1210 = vunpack.c.l.b16 %v736
      %v1211 = vunpack.c.h.b16 %v736
      %v1212 = vunpack.c.l.b16 %v737
      %v1213 = vunpack.c.h.b16 %v737
      %v1214 = vunpack.c.l.b16 %v738
      %v1215 = vunpack.c.h.b16 %v738
      %v1216 = vunpack.c.l.b16 %v739
      %v1217 = vunpack.c.h.b16 %v739
      %v1218 = vunpack.c.l.b16 %v740
      %v1219 = vunpack.c.h.b16 %v740
      %v1220 = vunpack.c.l.b16 %v741
      %v1221 = vunpack.c.h.b16 %v741
      %v1222 = vunpack.c.l.b16 %v742
      %v1223 = vunpack.c.h.b16 %v742
      %v1224 = vunpack.c.l.b16 %v743
      %v1225 = vunpack.c.h.b16 %v743
      %v1226 = vunpack.c.l.b16 %v744
      %v1227 = vunpack.c.h.b16 %v744
      %v1228 = vunpack.c.l.b16 %v745
      %v1229 = vunpack.c.h.b16 %v745
      %v1230 = vunpack.c.l.b16 %v746
      %v1231 = vunpack.c.h.b16 %v746
      %v1232 = vunpack.c.l.b16 %v747
      %v1233 = vunpack.c.h.b16 %v747
      %v1234 = vunpack.c.l.b16 %v748
      %v1235 = vunpack.c.h.b16 %v748
      %v1236 = vunpack.c.l.b16 %v749
      %v1237 = vunpack.c.h.b16 %v749
      %v1238 = vunpack.c.l.b16 %v750
      %v1239 = vunpack.c.h.b16 %v750
      %v1240 = vunpack.c.l.b16 %v751
      %v1241 = vunpack.c.h.b16 %v751
      %v1242 = vunpack.c.l.b16 %v752
      %v1243 = vunpack.c.h.b16 %v752
      %v1244 = vunpack.c.l.b16 %v753
      %v1245 = vunpack.c.h.b16 %v753
      %v1246 = vunpack.c.l.b16 %v754
      %v1247 = vunpack.c.h.b16 %v754
      %v1248 = vunpack.c.l.b16 %v755
      %v1249 = vunpack.c.h.b16 %v755
      %v1250 = vunpack.c.l.b16 %v756
      %v1251 = vunpack.c.h.b16 %v756
      %v1252 = vunpack.c.l.b16 %v757
      %v1253 = vunpack.c.h.b16 %v757
      %v1254 = vunpack.c.l.b16 %v758
      %v1255 = vunpack.c.h.b16 %v758
      %v1256 = vunpack.c.l.b16 %v759
      %v1257 = vunpack.c.h.b16 %v759
      %v1258 = vunpack.c.l.b16 %v760
      %v1259 = vunpack.c.h.b16 %v760
      %v1260 = vunpack.c.l.b16 %v761
      %v1261 = vunpack.c.h.b16 %v761
      %v1262 = vunpack.c.l.b16 %v762
      %v1263 = vunpack.c.h.b16 %v762
      %v1264 = vunpack.c.l.b16 %v763
      %v1265 = vunpack.c.h.b16 %v763
      %v1266 = vunpack.c.l.b16 %v764
      %v1267 = vunpack.c.h.b16 %v764
      %v1268 = vunpack.c.l.b16 %v765
      %v1269 = vunpack.c.h.b16 %v765
      %v1270 = vunpack.c.l.b16 %v766
      %v1271 = vunpack.c.h.b16 %v766
      %v1272 = vunpack.c.l.b16 %v767
      %v1273 = vunpack.c.h.b16 %v767
      %v1274 = vunpack.c.l.b16 %v768
      %v1275 = vunpack.c.h.b16 %v768
      %v1276 = vunpack.c.l.b16 %v769
      %v1277 = vunpack.c.h.b16 %v769
      %v1278 = vunpack.c.l.b16 %v770
      %v1279 = vunpack.c.h.b16 %v770
      %v1280 = vunpack.c.l.b16 %v771
      %v1281 = vunpack.c.h.b16 %v771
      %v1282 = vunpack.c.l.b16 %v772
      %v1283 = vunpack.c.h.b16 %v772
      %v1284 = vunpack.c.l.b16 %v773
      %v1285 = vunpack.c.h.b16 %v773
      %v1286 = vunpack.c.l.b16 %v774
      %v1287 = vunpack.c.h.b16 %v774
      %v1288 = vunpack.c.l.b16 %v775
      %v1289 = vunpack.c.h.b16 %v775
      %v1290 = vunpack.c.l.b16 %v776
      %v1291 = vunpack.c.h.b16 %v776
      %v1292 = vunpack.c.l.b16 %v777
      %v1293 = vunpack.c.h.b16 %v777
      %v1294 = vunpack.c.l.b16 %v778
      %v1295 = vunpack.c.h.b16 %v778
      %v1296 = vunpack.c.l.b16 %v779
      %v1297 = vunpack.c.h.b16 %v779
      %v1298 = vunpack.c.l.b16 %v780
      %v1299 = vunpack.c.h.b16 %v780
      %v1300 = vunpack.c.l.b16 %v781
      %v1301 = vunpack.c.h.b16 %v781
      %v1302 = vunpack.c.l.b16 %v782
      %v1303 = vunpack.c.h.b16 %v782
      %v1304 = vunpack.c.l.b16 %v783
      %v1305 = vunpack.c.h.b16 %v783
      %v1306 = vunpack.c.l.b16 %v784
      %v1307 = vunpack.c.h.b16 %v784
      %v1308 = vunpack.c.l.b16 %v785
      %v1309 = vunpack.c.h.b16 %v785
      %v1310 = vunpack.c.l.b16 %v786
      %v1311 = vunpack.c.h.b16 %v786
      %v1312 = vunpack.c.l.b16 %v787
      %v1313 = vunpack.c.h.b16 %v787
      %v1314 = vunpack.c.l.b16 %v788
      %v1315 = vunpack.c.h.b16 %v788
      %v1316 = vunpack.c.l.b16 %v789
      %v1317 = vunpack.c.h.b16 %v789
      %v1318 = vunpack.c.l.b16 %v790
      %v1319 = vunpack.c.h.b16 %v790
      %v1320 = vunpack.c.l.b16 %v791
      %v1321 = vunpack.c.h.b16 %v791
      %v1322 = vunpack.c.l.b16 %v792
      %v1323 = vunpack.c.h.b16 %v792
      %v1324 = vunpack.c.l.b16 %v793
      %v1325 = vunpack.c.h.b16 %v793
      %v1326 = vunpack.c.l.b16 %v794
      %v1327 = vunpack.c.h.b16 %v794
      %v1328 = vunpack.c.l.b16 %v795
      %v1329 = vunpack.c.h.b16 %v795
      %v1330 = vunpack.c.l.b16 %v796
      %v1331 = vunpack.c.h.b16 %v796
      %v1332 = vunpack.c.l.b16 %v797
      %v1333 = vunpack.c.h.b16 %v797
      %v1334 = vunpack.c.l.b16 %v798
      %v1335 = vunpack.c.h.b16 %v798
      %v1336 = vunpack.c.l.b16 %v799
      %v1337 = vunpack.c.h.b16 %v799
      %v1338 = vunpack.c.l.b16 %v800
      %v1339 = vunpack.c.h.b16 %v800
      %v1340 = vunpack.c.l.b16 %v801
      %v1341 = vunpack.c.h.b16 %v801
      %v1342 = vunpack.c.l.b16 %v802
      %v1343 = vunpack.c.h.b16 %v802
      %v1344 = vunpack.c.l.b16 %v803
      %v1345 = vunpack.c.h.b16 %v803
      %v1346 = vunpack.c.l.b16 %v804
      %v1347 = vunpack.c.h.b16 %v804
      %v1348 = vunpack.c.l.b16 %v805
      %v1349 = vunpack.c.h.b16 %v805
      %v1350 = vunpack.c.l.b16 %v806
      %v1351 = vunpack.c.h.b16 %v806
      %v1352 = vunpack.c.l.b16 %v807
      %v1353 = vunpack.c.h.b16 %v807
      %v1354 = vunpack.c.l.b16 %v808
      %v1355 = vunpack.c.h.b16 %v808
      %v1356 = vunpack.c.l.b16 %v809
      %v1357 = vunpack.c.h.b16 %v809
      %v1358 = vunpack.c.l.b16 %v810
      %v1359 = vunpack.c.h.b16 %v810
      %v1360 = vunpack.c.l.b16 %v811
      %v1361 = vunpack.c.h.b16 %v811
      %v1362 = vunpack.c.l.b16 %v812
      %v1363 = vunpack.c.h.b16 %v812
      %v1364 = vunpack.c.l.b16 %v813
      %v1365 = vunpack.c.h.b16 %v813
      %v1366 = vunpack.c.l.b16 %v814
      %v1367 = vunpack.c.h.b16 %v814
      %v1368 = vunpack.c.l.b16 %v815
      %v1369 = vunpack.c.h.b16 %v815
      %v1370 = vunpack.c.l.b16 %v816
      %v1371 = vunpack.c.h.b16 %v816
      %v1372 = vunpack.c.l.b16 %v817
      %v1373 = vunpack.c.h.b16 %v817
      %v1374 = vunpack.c.l.b16 %v818
      %v1375 = vunpack.c.h.b16 %v818
      %v1376 = vunpack.c.l.b16 %v819
      %v1377 = vunpack.c.h.b16 %v819
      %v1378 = vunpack.c.l.b16 %v820
      %v1379 = vunpack.c.h.b16 %v820
      %v1380 = vunpack.c.l.b16 %v821
      %v1381 = vunpack.c.h.b16 %v821
      %v1382 = vunpack.c.l.b16 %v822
      %v1383 = vunpack.c.h.b16 %v822
      %v1384 = vunpack.c.l.b16 %v823
      %v1385 = vunpack.c.h.b16 %v823
      %v1386 = vunpack.c.l.b16 %v824
      %v1387 = vunpack.c.h.b16 %v824
      %v1388 = vunpack.c.l.b16 %v825
      %v1389 = vunpack.c.h.b16 %v825
      %v1390 = vunpack.c.l.b16 %v826
      %v1391 = vunpack.c.h.b16 %v826
      %v1392 = vunpack.c.l.b16 %v827
      %v1393 = vunpack.c.h.b16 %v827
      %v1394 = vunpack.c.l.b16 %v828
      %v1395 = vunpack.c.h.b16 %v828
      %v1396 = vunpack.c.l.b16 %v829
      %v1397 = vunpack.c.h.b16 %v829
      %v1398 = vunpack.c.l.b16 %v830
      %v1399 = vunpack.c.h.b16 %v830
      %v1400 = vunpack.c.l.b16 %v831
      %v1401 = vunpack.c.h.b16 %v831
      %v1402 = vunpack.c.l.b16 %v832
      %v1403 = vunpack.c.h.b16 %v832
      %v1404 = vunpack.c.l.b16 %v833
      %v1405 = vunpack.c.h.b16 %v833
      %v1406 = vunpack.c.l.b16 %v834
      %v1407 = vunpack.c.h.b16 %v834
      %v1408 = vunpack.c.l.b16 %v835
      %v1409 = vunpack.c.h.b16 %v835
      %v1410 = vunpack.c.l.b16 %v836
      %v1411 = vunpack.c.h.b16 %v836
      %v1412 = vunpack.c.l.b16 %v837
      %v1413 = vunpack.c.h.b16 %v837
      %v1414 = vunpack.c.l.b16 %v838
      %v1415 = vunpack.c.h.b16 %v838
      %v1416 = vunpack.c.l.b16 %v839
      %v1417 = vunpack.c.h.b16 %v839
      %v1418 = vunpack.c.l.b16 %v840
      %v1419 = vunpack.c.h.b16 %v840
      %v1420 = vunpack.c.l.b16 %v841
      %v1421 = vunpack.c.h.b16 %v841
      %v1422 = vunpack.c.l.b16 %v842
      %v1423 = vunpack.c.h.b16 %v842
      %v1424 = vunpack.c.l.b16 %v843
      %v1425 = vunpack.c.h.b16 %v843
      %v1426 = vunpack.c.l.b16 %v844
      %v1427 = vunpack.c.h.b16 %v844
      %v1428 = vunpack.c.l.b16 %v845
      %v1429 = vunpack.c.h.b16 %v845
      %v1430 = vunpack.c.l.b16 %v846
      %v1431 = vunpack.c.h.b16 %v846
      %v1432 = vunpack.c.l.b16 %v847
      %v1433 = vunpack.c.h.b16 %v847
      %v1434 = vunpack.c.l.b16 %v848
      %v1435 = vunpack.c.h.b16 %v848
      %v1436 = vunpack.c.l.b16 %v849
      %v1437 = vunpack.c.h.b16 %v849
      %v1438 = vunpack.c.l.b16 %v850
      %v1439 = vunpack.c.h.b16 %v850
      %v1440 = vunpack.c.l.b16 %v851
      %v1441 = vunpack.c.h.b16 %v851
      %v1442 = vunpack.c.l.b16 %v852
      %v1443 = vunpack.c.h.b16 %v852
      %v1444 = vunpack.c.l.b16 %v853
      %v1445 = vunpack.c.h.b16 %v853
      %v1446 = vunpack.c.l.b16 %v854
      %v1447 = vunpack.c.h.b16 %v854
      %v1448 = vunpack.c.l.b16 %v855
      %v1449 = vunpack.c.h.b16 %v855
      %v1450 = vunpack.c.l.b16 %v856
      %v1451 = vunpack.c.h.b16 %v856
      %v1452 = vunpack.c.l.b16 %v857
      %v1453 = vunpack.c.h.b16 %v857
      %v1454 = vunpack.c.l.b16 %v858
      %v1455 = vunpack.c.h.b16 %v858
      %v1456 = vunpack.c.l.b16 %v859
      %v1457 = vunpack.c.h.b16 %v859
      %v1458 = vunpack.c.l.b16 %v860
      %v1459 = vunpack.c.h.b16 %v860
      %v1460 = vunpack.c.l.b16 %v861
      %v1461 = vunpack.c.h.b16 %v861
      %v1462 = vunpack.c.l.b16 %v862
      %v1463 = vunpack.c.h.b16 %v862
      %v1464 = vunpack.c.l.b16 %v863
      %v1465 = vunpack.c.h.b16 %v863
      %v1466 = vunpack.c.l.b16 %v864
      %v1467 = vunpack.c.h.b16 %v864
      %v1468 = vunpack.c.l.b16 %v865
      %v1469 = vunpack.c.h.b16 %v865
      %v1470 = vunpack.c.l.b16 %v866
      %v1471 = vunpack.c.h.b16 %v866
      %v1472 = vunpack.c.l.b16 %v867
      %v1473 = vunpack.c.h.b16 %v867
      %v1474 = vunpack.c.l.b16 %v868
      %v1475 = vunpack.c.h.b16 %v868
      %v1476 = vunpack.c.l.b16 %v869
      %v1477 = vunpack.c.h.b16 %v869
      %v1478 = vunpack.c.l.b16 %v870
      %v1479 = vunpack.c.h.b16 %v870
      %v1480 = vunpack.c.l.b16 %v871
      %v1481 = vunpack.c.h.b16 %v871
      %v1482 = vpack.c.b16 %v1094, %v1090
      %v1483 = vpack.c.b16 %v1095, %v1091
      %v1484 = vpack.c.b16 %v1096, %v1092
      %v1485 = vpack.c.b16 %v1097, %v1093
      %v1486 = vpack.c.b16 %v1102, %v1098
      %v1487 = vpack.c.b16 %v1103, %v1099
      %v1488 = vpack.c.b16 %v1104, %v1100
      %v1489 = vpack.c.b16 %v1105, %v1101
      %v1490 = vpack.c.b16 %v1110, %v1106
      %v1491 = vpack.c.b16 %v1111, %v1107
      %v1492 = vpack.c.b16 %v1112, %v1108
      %v1493 = vpack.c.b16 %v1113, %v1109
      %v1494 = vpack.c.b16 %v1118, %v1114
      %v1495 = vpack.c.b16 %v1119, %v1115
      %v1496 = vpack.c.b16 %v1120, %v1116
      %v1497 = vpack.c.b16 %v1121, %v1117
      %v1498 = vpack.c.b16 %v1126, %v1122
      %v1499 = vpack.c.b16 %v1127, %v1123
      %v1500 = vpack.c.b16 %v1128, %v1124
      %v1501 = vpack.c.b16 %v1129, %v1125
      %v1502 = vpack.c.b16 %v1134, %v1130
      %v1503 = vpack.c.b16 %v1135, %v1131
      %v1504 = vpack.c.b16 %v1136, %v1132
      %v1505 = vpack.c.b16 %v1137, %v1133
      %v1506 = vpack.c.b16 %v1142, %v1138
      %v1507 = vpack.c.b16 %v1143, %v1139
      %v1508 = vpack.c.b16 %v1144, %v1140
      %v1509 = vpack.c.b16 %v1145, %v1141
      %v1510 = vpack.c.b16 %v1150, %v1146
      %v1511 = vpack.c.b16 %v1151, %v1147
      %v1512 = vpack.c.b16 %v1152, %v1148
      %v1513 = vpack.c.b16 %v1153, %v1149
      %v1514 = vpack.c.b16 %v1158, %v1154
      %v1515 = vpack.c.b16 %v1159, %v1155
      %v1516 = vpack.c.b16 %v1160, %v1156
      %v1517 = vpack.c.b16 %v1161, %v1157
      %v1518 = vpack.c.b16 %v1166, %v1162
      %v1519 = vpack.c.b16 %v1167, %v1163
      %v1520 = vpack.c.b16 %v1168, %v1164
      %v1521 = vpack.c.b16 %v1169, %v1165
      %v1522 = vpack.c.b16 %v1174, %v1170
      %v1523 = vpack.c.b16 %v1175, %v1171
      %v1524 = vpack.c.b16 %v1176, %v1172
      %v1525 = vpack.c.b16 %v1177, %v1173
      %v1526 = vpack.c.b16 %v1182, %v1178
      %v1527 = vpack.c.b16 %v1183, %v1179
      %v1528 = vpack.c.b16 %v1184, %v1180
      %v1529 = vpack.c.b16 %v1185, %v1181
      %v1530 = vpack.c.b16 %v1190, %v1186
      %v1531 = vpack.c.b16 %v1191, %v1187
      %v1532 = vpack.c.b16 %v1192, %v1188
      %v1533 = vpack.c.b16 %v1193, %v1189
      %v1534 = vpack.c.b16 %v1198, %v1194
      %v1535 = vpack.c.b16 %v1199, %v1195
      %v1536 = vpack.c.b16 %v1200, %v1196
      %v1537 = vpack.c.b16 %v1201, %v1197
      %v1538 = vpack.c.b16 %v1206, %v1202
      %v1539 = vpack.c.b16 %v1207, %v1203
      %v1540 = vpack.c.b16 %v1208, %v1204
      %v1541 = vpack.c.b16 %v1209, %v1205
      %v1542 = vpack.c.b16 %v1214, %v1210
      %v1543 = vpack.c.b16 %v1215, %v1211
      %v1544 = vpack.c.b16 %v1216, %v1212
      %v1545 = vpack.c.b16 %v1217, %v1213
      %v1546 = vpack.c.b16 %v1222, %v1218
      %v1547 = vpack.c.b16 %v1223, %v1219
      %v1548 = vpack.c.b16 %v1224, %v1220
      %v1549 = vpack.c.b16 %v1225, %v1221
      %v1550 = vpack.c.b16 %v1230, %v1226
      %v1551 = vpack.c.b16 %v1231, %v1227
      %v1552 = vpack.c.b16 %v1232, %v1228
      %v1553 = vpack.c.b16 %v1233, %v1229
      %v1554 = vpack.c.b16 %v1238, %v1234
      %v1555 = vpack.c.b16 %v1239, %v1235
      %v1556 = vpack.c.b16 %v1240, %v1236
      %v1557 = vpack.c.b16 %v1241, %v1237
      %v1558 = vpack.c.b16 %v1246, %v1242
      %v1559 = vpack.c.b16 %v1247, %v1243
      %v1560 = vpack.c.b16 %v1248, %v1244
      %v1561 = vpack.c.b16 %v1249, %v1245
      %v1562 = vpack.c.b16 %v1254, %v1250
      %v1563 = vpack.c.b16 %v1255, %v1251
      %v1564 = vpack.c.b16 %v1256, %v1252
      %v1565 = vpack.c.b16 %v1257, %v1253
      %v1566 = vpack.c.b16 %v1262, %v1258
      %v1567 = vpack.c.b16 %v1263, %v1259
      %v1568 = vpack.c.b16 %v1264, %v1260
      %v1569 = vpack.c.b16 %v1265, %v1261
      %v1570 = vpack.c.b16 %v1270, %v1266
      %v1571 = vpack.c.b16 %v1271, %v1267
      %v1572 = vpack.c.b16 %v1272, %v1268
      %v1573 = vpack.c.b16 %v1273, %v1269
      %v1574 = vpack.c.b16 %v1278, %v1274
      %v1575 = vpack.c.b16 %v1279, %v1275
      %v1576 = vpack.c.b16 %v1280, %v1276
      %v1577 = vpack.c.b16 %v1281, %v1277
      %v1578 = vpack.c.b16 %v1286, %v1282
      %v1579 = vpack.c.b16 %v1287, %v1283
      %v1580 = vpack.c.b16 %v1288, %v1284
      %v1581 = vpack.c.b16 %v1289, %v1285
      %v1582 = vpack.c.b16 %v1294, %v1290
      %v1583 = vpack.c.b16 %v1295, %v1291
      %v1584 = vpack.c.b16 %v1296, %v1292
      %v1585 = vpack.c.b16 %v1297, %v1293
      %v1586 = vpack.c.b16 %v1302, %v1298
      %v1587 = vpack.c.b16 %v1303, %v1299
      %v1588 = vpack.c.b16 %v1304, %v1300
      %v1589 = vpack.c.b16 %v1305, %v1301
      %v1590 = vpack.c.b16 %v1310, %v1306
      %v1591 = vpack.c.b16 %v1311, %v1307
      %v1592 = vpack.c.b16 %v1312, %v1308
      %v1593 = vpack.c.b16 %v1313, %v1309
      %v1594 = vpack.c.b16 %v1318, %v1314
      %v1595 = vpack.c.b16 %v1319, %v1315
      %v1596 = vpack.c.b16 %v1320, %v1316
      %v1597 = vpack.c.b16 %v1321, %v1317
      %v1598 = vpack.c.b16 %v1326, %v1322
      %v1599 = vpack.c.b16 %v1327, %v1323
      %v1600 = vpack.c.b16 %v1328, %v1324
      %v1601 = vpack.c.b16 %v1329, %v1325
      %v1602 = vpack.c.b16 %v1334, %v1330
      %v1603 = vpack.c.b16 %v1335, %v1331
      %v1604 = vpack.c.b16 %v1336, %v1332
      %v1605 = vpack.c.b16 %v1337, %v1333
      %v1606 = vpack.c.b16 %v1342, %v1338
      %v1607 = vpack.c.b16 %v1343, %v1339
      %v1608 = vpack.c.b16 %v1344, %v1340
      %v1609 = vpack.c.b16 %v1345, %v1341
      %v1610 = vpack.c.b16 %v1350, %v1346
      %v1611 = vpack.c.b16 %v1351, %v1347
      %v1612 = vpack.c.b16 %v1352, %v1348
      %v1613 = vpack.c.b16 %v1353, %v1349
      %v1614 = vpack.c.b16 %v1358, %v1354
      %v1615 = vpack.c.b16 %v1359, %v1355
      %v1616 = vpack.c.b16 %v1360, %v1356
      %v1617 = vpack.c.b16 %v1361, %v1357
      %v1618 = vpack.c.b16 %v1366, %v1362
      %v1619 = vpack.c.b16 %v1367, %v1363
      %v1620 = vpack.c.b16 %v1368, %v1364
      %v1621 = vpack.c.b16 %v1369, %v1365
      %v1622 = vpack.c.b16 %v1374, %v1370
      %v1623 = vpack.c.b16 %v1375, %v1371
      %v1624 = vpack.c.b16 %v1376, %v1372
      %v1625 = vpack.c.b16 %v1377, %v1373
      %v1626 = vpack.c.b16 %v1382, %v1378
      %v1627 = vpack.c.b16 %v1383, %v1379
      %v1628 = vpack.c.b16 %v1384, %v1380
      %v1629 = vpack.c.b16 %v1385, %v1381
      %v1630 = vpack.c.b16 %v1390, %v1386
      %v1631 = vpack.c.b16 %v1391, %v1387
      %v1632 = vpack.c.b16 %v1392, %v1388
      %v1633 = vpack.c.b16 %v1393, %v1389
      %v1634 = vpack.c.b16 %v1398, %v1394
      %v1635 = vpack.c.b16 %v1399, %v1395
      %v1636 = vpack.c.b16 %v1400, %v1396
      %v1637 = vpack.c.b16 %v1401, %v1397
      %v1638 = vpack.c.b16 %v1406, %v1402
      %v1639 = vpack.c.b16 %v1407, %v1403
      %v1640 = vpack.c.b16 %v1408, %v1404
      %v1641 = vpack.c.b16 %v1409, %v1405
      %v1642 = vpack.c.b16 %v1414, %v1410
      %v1643 = vpack.c.b16 %v1415, %v1411
      %v1644 = vpack.c.b16 %v1416, %v1412
      %v1645 = vpack.c.b16 %v1417, %v1413
      %v1646 = vpack.c.b16 %v1422, %v1418
      %v1647 = vpack.c.b16 %v1423, %v1419
      %v1648 = vpack.c.b16 %v1424, %v1420
      %v1649 = vpack.c.b16 %v1425, %v1421
      %v1650 = vpack.c.b16 %v1430, %v1426
      %v1651 = vpack.c.b16 %v1431, %v1427
      %v1652 = vpack.c.b16 %v1432, %v1428
      %v1653 = vpack.c.b16 %v1433, %v1429
      %v1654 = vpack.c.b16 %v1438, %v1434
      %v1655 = vpack.c.b16 %v1439, %v1435
      %v1656 = vpack.c.b16 %v1440, %v1436
      %v1657 = vpack.c.b16 %v1441, %v1437
      %v1658 = vpack.c.b16 %v1446, %v1442
      %v1659 = vpack.c.b16 %v1447, %v1443
      %v1660 = vpack.c.b16 %v1448, %v1444
      %v1661 = vpack.c.b16 %v1449, %v1445
      %v1662 = vpack.c.b16 %v1454, %v1450
      %v1663 = vpack.c.b16 %v1455, %v1451
      %v1664 = vpack.c.b16 %v1456, %v1452
      %v1665 = vpack.c.b16 %v1457, %v1453
      %v1666 = vpack.c.b16 %v1462, %v1458
      %v1667 = vpack.c.b16 %v1463, %v1459
      %v1668 = vpack.c.b16 %v1464, %v1460
      %v1669 = vpack.c.b16 %v1465, %v1461
      %v1670 = vpack.c.b16 %v1470, %v1466
      %v1671 = vpack.c.b16 %v1471, %v1467
      %v1672 = vpack.c.b16 %v1472, %v1468
      %v1673 = vpack.c.b16 %v1473, %v1469
      %v1674 = vpack.c.b16 %v1478, %v1474
      %v1675 = vpack.c.b16 %v1479, %v1475
      %v1676 = vpack.c.b16 %v1480, %v1476
      %v1677 = vpack.c.b16 %v1481, %v1477
      %vm1874 = vcmask 130048
      %v1876 = vsel %vm1874, %v570, 0
      %v1879 = vsel %vm1874, %v577, 0
      %v1882 = vsel %vm1874, %v584, 0
      %v1885 = vsel %vm1874, %v591, 0
      %v1888 = vsel %vm1874, %v598, 0
      %v1891 = vsel %vm1874, %v605, 0
      %v1894 = vsel %vm1874, %v612, 0
      %v1897 = vsel %vm1874, %v619, 0
      %v1900 = vsel %vm1874, %v626, 0
      %v1903 = vsel %vm1874, %v633, 0
      %v1906 = vsel %vm1874, %v640, 0
      %v1909 = vsel %vm1874, %v647, 0
      %v1912 = vsel %vm1874, %v654, 0
      %v1915 = vsel %vm1874, %v661, 0
      %v1918 = vsel %vm1874, %v668, 0
      %v1921 = vsel %vm1874, %v675, 0
      %1923 = vmatprep.subr.bf16.mxu0 %v1483
      %1924 = vmatpush1.bf16.msra.mxu0 %v1482
      %1925 = vmatprep.subr.bf16.mxu0 %v1487
      %1926 = vmatpush1.bf16.msra.mxu0 %v1486
      %1927 = vmatprep.subr.bf16.mxu0 %v1491
      %1928 = vmatpush1.bf16.msra.mxu0 %v1490
      %1929 = vmatprep.subr.bf16.mxu0 %v1495
      %1930 = vmatpush1.bf16.msra.mxu0 %v1494
      %1931 = vmatprep.subr.bf16.mxu0 %v1499
      %1932 = vmatpush1.bf16.msra.mxu0 %v1498
      %1933 = vmatprep.subr.bf16.mxu0 %v1503
      %1934 = vmatpush1.bf16.msra.mxu0 %v1502
      %1935 = vmatprep.subr.bf16.mxu0 %v1507
      %1936 = vmatpush1.bf16.msra.mxu0 %v1506
      %1937 = vmatprep.subr.bf16.mxu0 %v1511
      %1938 = vmatpush1.bf16.msra.mxu0 %v1510
      %1939 = vmatprep.subr.bf16.mxu0 %v1515
      %1940 = vmatpush1.bf16.msra.mxu0 %v1514
      %1941 = vmatprep.subr.bf16.mxu0 %v1519
      %1942 = vmatpush1.bf16.msra.mxu0 %v1518
      %1943 = vmatprep.subr.bf16.mxu0 %v1523
      %1944 = vmatpush1.bf16.msra.mxu0 %v1522
      %1945 = vmatprep.subr.bf16.mxu0 %v1527
      %1946 = vmatpush1.bf16.msra.mxu0 %v1526
      %1947 = vmatprep.subr.bf16.mxu0 %v1531
      %1948 = vmatpush1.bf16.msra.mxu0 %v1530
      %1949 = vmatprep.subr.bf16.mxu0 %v1535
      %1950 = vmatpush1.bf16.msra.mxu0 %v1534
      %1951 = vmatprep.subr.bf16.mxu0 %v1539
      %1952 = vmatpush1.bf16.msra.mxu0 %v1538
      %1953 = vmatprep.subr.bf16.mxu0 %v1543
      %1954 = vmatpush1.bf16.msra.mxu0 %v1542
      %1955 = vmatprep.mubr.bf16.mxu0 %v565
      %1956 = vmatmul.mubr.bf16.gmra.mrb[0].mxu0 %v564
      %v1957 = vpop.f32.mrb[0].mxu0
      %v1958 = vadd.f32 %v877, %v1957
      %v1959 = vpop.f32.mrb[0].mxu0
      %v1960 = vadd.f32 %v881, %v1959
      %v1961 = vpop.f32.mrb[0].mxu0
      %v1962 = vadd.f32 %v877, %v1961
      %v1963 = vpop.f32.mrb[0].mxu0
      %v1964 = vadd.f32 %v881, %v1963
      %1965 = vmatprep.mubr.bf16.mxu0 %v572
      %1966 = vmatmul.mubr.bf16.gmra.mrb[0].mxu0 %v571
      %v1967 = vpop.f32.mrb[0].mxu0
      %v1968 = vadd.f32 %v877, %v1967
      %v1969 = vpop.f32.mrb[0].mxu0
      %v1970 = vadd.f32 %v881, %v1969
      %v1971 = vpop.f32.mrb[0].mxu0
      %v1972 = vadd.f32 %v877, %v1971
      %v1973 = vpop.f32.mrb[0].mxu0
      %v1974 = vadd.f32 %v881, %v1973
      %1975 = vmatprep.mubr.bf16.mxu0 %v579
      %1976 = vmatmul.mubr.bf16.gmra.mrb[0].mxu0 %v578
      %v1977 = vpop.f32.mrb[0].mxu0
      %v1978 = vadd.f32 %v877, %v1977
      %v1979 = vpop.f32.mrb[0].mxu0
      %v1980 = vadd.f32 %v881, %v1979
      %v1981 = vpop.f32.mrb[0].mxu0
      %v1982 = vadd.f32 %v877, %v1981
      %v1983 = vpop.f32.mrb[0].mxu0
      %v1984 = vadd.f32 %v881, %v1983
      %1985 = vmatprep.mubr.bf16.mxu0 %v586
      %1986 = vmatmul.mubr.bf16.gmra.mrb[0].mxu0 %v585
      %v1987 = vpop.f32.mrb[0].mxu0
      %v1988 = vadd.f32 %v877, %v1987
      %v1989 = vpop.f32.mrb[0].mxu0
      %v1990 = vadd.f32 %v881, %v1989
      %v1991 = vpop.f32.mrb[0].mxu0
      %v1992 = vadd.f32 %v877, %v1991
      %v1993 = vpop.f32.mrb[0].mxu0
      %v1994 = vadd.f32 %v881, %v1993
      %1995 = vmatprep.mubr.bf16.mxu0 %v593
      %1996 = vmatmul.mubr.bf16.gmra.mrb[0].mxu0 %v592
      %v1997 = vpop.f32.mrb[0].mxu0
      %v1998 = vadd.f32 %v877, %v1997
      %v1999 = vpop.f32.mrb[0].mxu0
      %v2000 = vadd.f32 %v881, %v1999
      %v2001 = vpop.f32.mrb[0].mxu0
      %v2002 = vadd.f32 %v877, %v2001
      %v2003 = vpop.f32.mrb[0].mxu0
      %v2004 = vadd.f32 %v881, %v2003
      %2005 = vmatprep.mubr.bf16.mxu0 %v600
      %2006 = vmatmul.mubr.bf16.gmra.mrb[0].mxu0 %v599
      %v2007 = vpop.f32.mrb[0].mxu0
      %v2008 = vadd.f32 %v877, %v2007
      %v2009 = vpop.f32.mrb[0].mxu0
      %v2010 = vadd.f32 %v881, %v2009
      %v2011 = vpop.f32.mrb[0].mxu0
      %v2012 = vadd.f32 %v877, %v2011
      %v2013 = vpop.f32.mrb[0].mxu0
      %v2014 = vadd.f32 %v881, %v2013
      %2015 = vmatprep.mubr.bf16.mxu0 %v607
      %2016 = vmatmul.mubr.bf16.gmra.mrb[0].mxu0 %v606
      %v2017 = vpop.f32.mrb[0].mxu0
      %v2018 = vadd.f32 %v877, %v2017
      %v2019 = vpop.f32.mrb[0].mxu0
      %v2020 = vadd.f32 %v881, %v2019
      %v2021 = vpop.f32.mrb[0].mxu0
      %v2022 = vadd.f32 %v877, %v2021
      %v2023 = vpop.f32.mrb[0].mxu0
      %v2024 = vadd.f32 %v881, %v2023
      %2025 = vmatprep.mubr.bf16.mxu0 %v614
      %2026 = vmatmul.mubr.bf16.gmra.mrb[0].mxu0 %v613
      %v2027 = vpop.f32.mrb[0].mxu0
      %v2028 = vadd.f32 %v877, %v2027
      %v2029 = vpop.f32.mrb[0].mxu0
      %v2030 = vadd.f32 %v881, %v2029
      %v2031 = vpop.f32.mrb[0].mxu0
      %v2032 = vadd.f32 %v877, %v2031
      %v2033 = vpop.f32.mrb[0].mxu0
      %v2034 = vadd.f32 %v881, %v2033
      %2035 = vmatprep.mubr.bf16.mxu0 %v621
      %2036 = vmatmul.mubr.bf16.gmra.mrb[0].mxu0 %v620
      %v2037 = vpop.f32.mrb[0].mxu0
      %v2038 = vadd.f32 %v877, %v2037
      %v2039 = vpop.f32.mrb[0].mxu0
      %v2040 = vadd.f32 %v881, %v2039
      %v2041 = vpop.f32.mrb[0].mxu0
      %v2042 = vadd.f32 %v877, %v2041
      %v2043 = vpop.f32.mrb[0].mxu0
      %v2044 = vadd.f32 %v881, %v2043
      %2045 = vmatprep.mubr.bf16.mxu0 %v628
      %2046 = vmatmul.mubr.bf16.gmra.mrb[0].mxu0 %v627
      %v2047 = vpop.f32.mrb[0].mxu0
      %v2048 = vadd.f32 %v877, %v2047
      %v2049 = vpop.f32.mrb[0].mxu0
      %v2050 = vadd.f32 %v881, %v2049
      %v2051 = vpop.f32.mrb[0].mxu0
      %v2052 = vadd.f32 %v877, %v2051
      %v2053 = vpop.f32.mrb[0].mxu0
      %v2054 = vadd.f32 %v881, %v2053
      %2055 = vmatprep.mubr.bf16.mxu0 %v635
      %2056 = vmatmul.mubr.bf16.gmra.mrb[0].mxu0 %v634
      %v2057 = vpop.f32.mrb[0].mxu0
      %v2058 = vadd.f32 %v877, %v2057
      %v2059 = vpop.f32.mrb[0].mxu0
      %v2060 = vadd.f32 %v881, %v2059
      %v2061 = vpop.f32.mrb[0].mxu0
      %v2062 = vadd.f32 %v877, %v2061
      %v2063 = vpop.f32.mrb[0].mxu0
      %v2064 = vadd.f32 %v881, %v2063
      %2065 = vmatprep.mubr.bf16.mxu0 %v642
      %2066 = vmatmul.mubr.bf16.gmra.mrb[0].mxu0 %v641
      %v2067 = vpop.f32.mrb[0].mxu0
      %v2068 = vadd.f32 %v877, %v2067
      %v2069 = vpop.f32.mrb[0].mxu0
      %v2070 = vadd.f32 %v881, %v2069
      %v2071 = vpop.f32.mrb[0].mxu0
      %v2072 = vadd.f32 %v877, %v2071
      %v2073 = vpop.f32.mrb[0].mxu0
      %v2074 = vadd.f32 %v881, %v2073
      %2075 = vmatprep.mubr.bf16.mxu0 %v649
      %2076 = vmatmul.mubr.bf16.gmra.mrb[0].mxu0 %v648
      %v2077 = vpop.f32.mrb[0].mxu0
      %v2078 = vadd.f32 %v877, %v2077
      %v2079 = vpop.f32.mrb[0].mxu0
      %v2080 = vadd.f32 %v881, %v2079
      %v2081 = vpop.f32.mrb[0].mxu0
      %v2082 = vadd.f32 %v877, %v2081
      %v2083 = vpop.f32.mrb[0].mxu0
      %v2084 = vadd.f32 %v881, %v2083
      %2085 = vmatprep.mubr.bf16.mxu0 %v656
      %2086 = vmatmul.mubr.bf16.gmra.mrb[0].mxu0 %v655
      %v2087 = vpop.f32.mrb[0].mxu0
      %v2088 = vadd.f32 %v877, %v2087
      %v2089 = vpop.f32.mrb[0].mxu0
      %v2090 = vadd.f32 %v881, %v2089
      %v2091 = vpop.f32.mrb[0].mxu0
      %v2092 = vadd.f32 %v877, %v2091
      %v2093 = vpop.f32.mrb[0].mxu0
      %v2094 = vadd.f32 %v881, %v2093
      %2095 = vmatprep.mubr.bf16.mxu0 %v663
      %2096 = vmatmul.mubr.bf16.gmra.mrb[0].mxu0 %v662
      %v2097 = vpop.f32.mrb[0].mxu0
      %v2098 = vadd.f32 %v877, %v2097
      %v2099 = vpop.f32.mrb[0].mxu0
      %v2100 = vadd.f32 %v881, %v2099
      %v2101 = vpop.f32.mrb[0].mxu0
      %v2102 = vadd.f32 %v877, %v2101
      %v2103 = vpop.f32.mrb[0].mxu0
      %v2104 = vadd.f32 %v881, %v2103
      %2105 = vmatprep.mubr.bf16.mxu0 %v670
      %2106 = vmatmul.mubr.bf16.gmra.mrb[0].mxu0 %v669
      %v2107 = vpop.f32.mrb[0].mxu0
      %v2108 = vadd.f32 %v877, %v2107
      %v2109 = vpop.f32.mrb[0].mxu0
      %v2110 = vadd.f32 %v881, %v2109
      %v2111 = vpop.f32.mrb[0].mxu0
      %v2112 = vadd.f32 %v877, %v2111
      %v2113 = vpop.f32.mrb[0].mxu0
      %v2114 = vadd.f32 %v881, %v2113
      %2115 = vdwg.mxu0
      %2116 = vmatprep.subr.bf16.mxu0 %v1547
      %2117 = vmatpush1.bf16.msra.mxu0 %v1546
      %2118 = vmatprep.subr.bf16.mxu0 %v1551
      %2119 = vmatpush1.bf16.msra.mxu0 %v1550
      %2120 = vmatprep.subr.bf16.mxu0 %v1555
      %2121 = vmatpush1.bf16.msra.mxu0 %v1554
      %2122 = vmatprep.subr.bf16.mxu0 %v1559
      %2123 = vmatpush1.bf16.msra.mxu0 %v1558
      %2124 = vmatprep.subr.bf16.mxu0 %v1563
      %2125 = vmatpush1.bf16.msra.mxu0 %v1562
      %2126 = vmatprep.subr.bf16.mxu0 %v1567
      %2127 = vmatpush1.bf16.msra.mxu0 %v1566
      %2128 = vmatprep.subr.bf16.mxu0 %v1571
      %2129 = vmatpush1.bf16.msra.mxu0 %v1570
      %2130 = vmatprep.subr.bf16.mxu0 %v1575
      %2131 = vmatpush1.bf16.msra.mxu0 %v1574
      %2132 = vmatprep.subr.bf16.mxu0 %v1579
      %2133 = vmatpush1.bf16.msra.mxu0 %v1578
      %2134 = vmatprep.subr.bf16.mxu0 %v1583
      %2135 = vmatpush1.bf16.msra.mxu0 %v1582
      %2136 = vmatprep.subr.bf16.mxu0 %v1587
      %2137 = vmatpush1.bf16.msra.mxu0 %v1586
      %2138 = vmatprep.subr.bf16.mxu0 %v1591
      %2139 = vmatpush1.bf16.msra.mxu0 %v1590
      %2140 = vmatprep.subr.bf16.mxu0 %v1595
      %2141 = vmatpush1.bf16.msra.mxu0 %v1594
      %2142 = vmatprep.subr.bf16.mxu0 %v1599
      %2143 = vmatpush1.bf16.msra.mxu0 %v1598
      %2144 = vmatprep.subr.bf16.mxu0 %v1603
      %2145 = vmatpush1.bf16.msra.mxu0 %v1602
      %2146 = vmatprep.subr.bf16.mxu0 %v1607
      %2147 = vmatpush1.bf16.msra.mxu0 %v1606
      %2148 = vmatprep.mubr.bf16.mxu0 %v567
      %2149 = vmatmul.mubr.bf16.gmra.mrb[0].mxu0 %v566
      %v2150 = vpop.f32.mrb[0].mxu0
      %v2151 = vadd.f32 %v1958, %v2150
      %v2152 = vpop.f32.mrb[0].mxu0
      %v2153 = vadd.f32 %v1960, %v2152
      %v2154 = vpop.f32.mrb[0].mxu0
      %v2155 = vadd.f32 %v1962, %v2154
      %v2156 = vpop.f32.mrb[0].mxu0
      %v2157 = vadd.f32 %v1964, %v2156
      %2158 = vmatprep.mubr.bf16.mxu0 %v574
      %2159 = vmatmul.mubr.bf16.gmra.mrb[0].mxu0 %v573
      %v2160 = vpop.f32.mrb[0].mxu0
      %v2161 = vadd.f32 %v1968, %v2160
      %v2162 = vpop.f32.mrb[0].mxu0
      %v2163 = vadd.f32 %v1970, %v2162
      %v2164 = vpop.f32.mrb[0].mxu0
      %v2165 = vadd.f32 %v1972, %v2164
      %v2166 = vpop.f32.mrb[0].mxu0
      %v2167 = vadd.f32 %v1974, %v2166
      %2168 = vmatprep.mubr.bf16.mxu0 %v581
      %2169 = vmatmul.mubr.bf16.gmra.mrb[0].mxu0 %v580
      %v2170 = vpop.f32.mrb[0].mxu0
      %v2171 = vadd.f32 %v1978, %v2170
      %v2172 = vpop.f32.mrb[0].mxu0
      %v2173 = vadd.f32 %v1980, %v2172
      %v2174 = vpop.f32.mrb[0].mxu0
      %v2175 = vadd.f32 %v1982, %v2174
      %v2176 = vpop.f32.mrb[0].mxu0
      %v2177 = vadd.f32 %v1984, %v2176
      %2178 = vmatprep.mubr.bf16.mxu0 %v588
      %2179 = vmatmul.mubr.bf16.gmra.mrb[0].mxu0 %v587
      %v2180 = vpop.f32.mrb[0].mxu0
      %v2181 = vadd.f32 %v1988, %v2180
      %v2182 = vpop.f32.mrb[0].mxu0
      %v2183 = vadd.f32 %v1990, %v2182
      %v2184 = vpop.f32.mrb[0].mxu0
      %v2185 = vadd.f32 %v1992, %v2184
      %v2186 = vpop.f32.mrb[0].mxu0
      %v2187 = vadd.f32 %v1994, %v2186
      %2188 = vmatprep.mubr.bf16.mxu0 %v595
      %2189 = vmatmul.mubr.bf16.gmra.mrb[0].mxu0 %v594
      %v2190 = vpop.f32.mrb[0].mxu0
      %v2191 = vadd.f32 %v1998, %v2190
      %v2192 = vpop.f32.mrb[0].mxu0
      %v2193 = vadd.f32 %v2000, %v2192
      %v2194 = vpop.f32.mrb[0].mxu0
      %v2195 = vadd.f32 %v2002, %v2194
      %v2196 = vpop.f32.mrb[0].mxu0
      %v2197 = vadd.f32 %v2004, %v2196
      %2198 = vmatprep.mubr.bf16.mxu0 %v602
      %2199 = vmatmul.mubr.bf16.gmra.mrb[0].mxu0 %v601
      %v2200 = vpop.f32.mrb[0].mxu0
      %v2201 = vadd.f32 %v2008, %v2200
      %v2202 = vpop.f32.mrb[0].mxu0
      %v2203 = vadd.f32 %v2010, %v2202
      %v2204 = vpop.f32.mrb[0].mxu0
      %v2205 = vadd.f32 %v2012, %v2204
      %v2206 = vpop.f32.mrb[0].mxu0
      %v2207 = vadd.f32 %v2014, %v2206
      %2208 = vmatprep.mubr.bf16.mxu0 %v609
      %2209 = vmatmul.mubr.bf16.gmra.mrb[0].mxu0 %v608
      %v2210 = vpop.f32.mrb[0].mxu0
      %v2211 = vadd.f32 %v2018, %v2210
      %v2212 = vpop.f32.mrb[0].mxu0
      %v2213 = vadd.f32 %v2020, %v2212
      %v2214 = vpop.f32.mrb[0].mxu0
      %v2215 = vadd.f32 %v2022, %v2214
      %v2216 = vpop.f32.mrb[0].mxu0
      %v2217 = vadd.f32 %v2024, %v2216
      %2218 = vmatprep.mubr.bf16.mxu0 %v616
      %2219 = vmatmul.mubr.bf16.gmra.mrb[0].mxu0 %v615
      %v2220 = vpop.f32.mrb[0].mxu0
      %v2221 = vadd.f32 %v2028, %v2220
      %v2222 = vpop.f32.mrb[0].mxu0
      %v2223 = vadd.f32 %v2030, %v2222
      %v2224 = vpop.f32.mrb[0].mxu0
      %v2225 = vadd.f32 %v2032, %v2224
      %v2226 = vpop.f32.mrb[0].mxu0
      %v2227 = vadd.f32 %v2034, %v2226
      %2228 = vmatprep.mubr.bf16.mxu0 %v623
      %2229 = vmatmul.mubr.bf16.gmra.mrb[0].mxu0 %v622
      %v2230 = vpop.f32.mrb[0].mxu0
      %v2231 = vadd.f32 %v2038, %v2230
      %v2232 = vpop.f32.mrb[0].mxu0
      %v2233 = vadd.f32 %v2040, %v2232
      %v2234 = vpop.f32.mrb[0].mxu0
      %v2235 = vadd.f32 %v2042, %v2234
      %v2236 = vpop.f32.mrb[0].mxu0
      %v2237 = vadd.f32 %v2044, %v2236
      %2238 = vmatprep.mubr.bf16.mxu0 %v630
      %2239 = vmatmul.mubr.bf16.gmra.mrb[0].mxu0 %v629
      %v2240 = vpop.f32.mrb[0].mxu0
      %v2241 = vadd.f32 %v2048, %v2240
      %v2242 = vpop.f32.mrb[0].mxu0
      %v2243 = vadd.f32 %v2050, %v2242
      %v2244 = vpop.f32.mrb[0].mxu0
      %v2245 = vadd.f32 %v2052, %v2244
      %v2246 = vpop.f32.mrb[0].mxu0
      %v2247 = vadd.f32 %v2054, %v2246
      %2248 = vmatprep.mubr.bf16.mxu0 %v637
      %2249 = vmatmul.mubr.bf16.gmra.mrb[0].mxu0 %v636
      %v2250 = vpop.f32.mrb[0].mxu0
      %v2251 = vadd.f32 %v2058, %v2250
      %v2252 = vpop.f32.mrb[0].mxu0
      %v2253 = vadd.f32 %v2060, %v2252
      %v2254 = vpop.f32.mrb[0].mxu0
      %v2255 = vadd.f32 %v2062, %v2254
      %v2256 = vpop.f32.mrb[0].mxu0
      %v2257 = vadd.f32 %v2064, %v2256
      %2258 = vmatprep.mubr.bf16.mxu0 %v644
      %2259 = vmatmul.mubr.bf16.gmra.mrb[0].mxu0 %v643
      %v2260 = vpop.f32.mrb[0].mxu0
      %v2261 = vadd.f32 %v2068, %v2260
      %v2262 = vpop.f32.mrb[0].mxu0
      %v2263 = vadd.f32 %v2070, %v2262
      %v2264 = vpop.f32.mrb[0].mxu0
      %v2265 = vadd.f32 %v2072, %v2264
      %v2266 = vpop.f32.mrb[0].mxu0
      %v2267 = vadd.f32 %v2074, %v2266
      %2268 = vmatprep.mubr.bf16.mxu0 %v651
      %2269 = vmatmul.mubr.bf16.gmra.mrb[0].mxu0 %v650
      %v2270 = vpop.f32.mrb[0].mxu0
      %v2271 = vadd.f32 %v2078, %v2270
      %v2272 = vpop.f32.mrb[0].mxu0
      %v2273 = vadd.f32 %v2080, %v2272
      %v2274 = vpop.f32.mrb[0].mxu0
      %v2275 = vadd.f32 %v2082, %v2274
      %v2276 = vpop.f32.mrb[0].mxu0
      %v2277 = vadd.f32 %v2084, %v2276
      %2278 = vmatprep.mubr.bf16.mxu0 %v658
      %2279 = vmatmul.mubr.bf16.gmra.mrb[0].mxu0 %v657
      %v2280 = vpop.f32.mrb[0].mxu0
      %v2281 = vadd.f32 %v2088, %v2280
      %v2282 = vpop.f32.mrb[0].mxu0
      %v2283 = vadd.f32 %v2090, %v2282
      %v2284 = vpop.f32.mrb[0].mxu0
      %v2285 = vadd.f32 %v2092, %v2284
      %v2286 = vpop.f32.mrb[0].mxu0
      %v2287 = vadd.f32 %v2094, %v2286
      %2288 = vmatprep.mubr.bf16.mxu0 %v665
      %2289 = vmatmul.mubr.bf16.gmra.mrb[0].mxu0 %v664
      %v2290 = vpop.f32.mrb[0].mxu0
      %v2291 = vadd.f32 %v2098, %v2290
      %v2292 = vpop.f32.mrb[0].mxu0
      %v2293 = vadd.f32 %v2100, %v2292
      %v2294 = vpop.f32.mrb[0].mxu0
      %v2295 = vadd.f32 %v2102, %v2294
      %v2296 = vpop.f32.mrb[0].mxu0
      %v2297 = vadd.f32 %v2104, %v2296
      %2298 = vmatprep.mubr.bf16.mxu0 %v672
      %2299 = vmatmul.mubr.bf16.gmra.mrb[0].mxu0 %v671
      %v2300 = vpop.f32.mrb[0].mxu0
      %v2301 = vadd.f32 %v2108, %v2300
      %v2302 = vpop.f32.mrb[0].mxu0
      %v2303 = vadd.f32 %v2110, %v2302
      %v2304 = vpop.f32.mrb[0].mxu0
      %v2305 = vadd.f32 %v2112, %v2304
      %v2306 = vpop.f32.mrb[0].mxu0
      %v2307 = vadd.f32 %v2114, %v2306
      %2308 = vdwg.mxu0
      %2309 = vmatprep.subr.bf16.mxu0 %v1611
      %2310 = vmatpush1.bf16.msra.mxu0 %v1610
      %2311 = vmatprep.subr.bf16.mxu0 %v1615
      %2312 = vmatpush1.bf16.msra.mxu0 %v1614
      %2313 = vmatprep.subr.bf16.mxu0 %v1619
      %2314 = vmatpush1.bf16.msra.mxu0 %v1618
      %2315 = vmatprep.subr.bf16.mxu0 %v1623
      %2316 = vmatpush1.bf16.msra.mxu0 %v1622
      %2317 = vmatprep.subr.bf16.mxu0 %v1627
      %2318 = vmatpush1.bf16.msra.mxu0 %v1626
      %2319 = vmatprep.subr.bf16.mxu0 %v1631
      %2320 = vmatpush1.bf16.msra.mxu0 %v1630
      %2321 = vmatprep.subr.bf16.mxu0 %v1635
      %2322 = vmatpush1.bf16.msra.mxu0 %v1634
      %2323 = vmatprep.subr.bf16.mxu0 %v1639
      %2324 = vmatpush1.bf16.msra.mxu0 %v1638
      %2325 = vmatprep.subr.bf16.mxu0 %v1643
      %2326 = vmatpush1.bf16.msra.mxu0 %v1642
      %2327 = vmatprep.subr.bf16.mxu0 %v1647
      %2328 = vmatpush1.bf16.msra.mxu0 %v1646
      %2329 = vmatprep.subr.bf16.mxu0 %v1651
      %2330 = vmatpush1.bf16.msra.mxu0 %v1650
      %2331 = vmatprep.subr.bf16.mxu0 %v1655
      %2332 = vmatpush1.bf16.msra.mxu0 %v1654
      %2333 = vmatprep.subr.bf16.mxu0 %v1659
      %2334 = vmatpush1.bf16.msra.mxu0 %v1658
      %2335 = vmatprep.subr.bf16.mxu0 %v1663
      %2336 = vmatpush1.bf16.msra.mxu0 %v1662
      %2337 = vmatprep.subr.bf16.mxu0 %v1667
      %2338 = vmatpush1.bf16.msra.mxu0 %v1666
      %2339 = vmatprep.subr.bf16.mxu0 %v1671
      %2340 = vmatpush1.bf16.msra.mxu0 %v1670
      %2341 = vmatprep.mubr.bf16.mxu0 %v569
      %2342 = vmatmul.mubr.bf16.gmra.mrb[0].mxu0 %v568
      %v2343 = vpop.f32.mrb[0].mxu0
      %v2344 = vadd.f32 %v2151, %v2343
      %v2345 = vpop.f32.mrb[0].mxu0
      %v2346 = vadd.f32 %v2153, %v2345
      %v2347 = vpop.f32.mrb[0].mxu0
      %v2348 = vadd.f32 %v2155, %v2347
      %v2349 = vpop.f32.mrb[0].mxu0
      %v2350 = vadd.f32 %v2157, %v2349
      %2351 = vmatprep.mubr.bf16.mxu0 %v576
      %2352 = vmatmul.mubr.bf16.gmra.mrb[0].mxu0 %v575
      %v2353 = vpop.f32.mrb[0].mxu0
      %v2354 = vadd.f32 %v2161, %v2353
      %v2355 = vpop.f32.mrb[0].mxu0
      %v2356 = vadd.f32 %v2163, %v2355
      %v2357 = vpop.f32.mrb[0].mxu0
      %v2358 = vadd.f32 %v2165, %v2357
      %v2359 = vpop.f32.mrb[0].mxu0
      %v2360 = vadd.f32 %v2167, %v2359
      %2361 = vmatprep.mubr.bf16.mxu0 %v583
      %2362 = vmatmul.mubr.bf16.gmra.mrb[0].mxu0 %v582
      %v2363 = vpop.f32.mrb[0].mxu0
      %v2364 = vadd.f32 %v2171, %v2363
      %v2365 = vpop.f32.mrb[0].mxu0
      %v2366 = vadd.f32 %v2173, %v2365
      %v2367 = vpop.f32.mrb[0].mxu0
      %v2368 = vadd.f32 %v2175, %v2367
      %v2369 = vpop.f32.mrb[0].mxu0
      %v2370 = vadd.f32 %v2177, %v2369
      %2371 = vmatprep.mubr.bf16.mxu0 %v590
      %2372 = vmatmul.mubr.bf16.gmra.mrb[0].mxu0 %v589
      %v2373 = vpop.f32.mrb[0].mxu0
      %v2374 = vadd.f32 %v2181, %v2373
      %v2375 = vpop.f32.mrb[0].mxu0
      %v2376 = vadd.f32 %v2183, %v2375
      %v2377 = vpop.f32.mrb[0].mxu0
      %v2378 = vadd.f32 %v2185, %v2377
      %v2379 = vpop.f32.mrb[0].mxu0
      %v2380 = vadd.f32 %v2187, %v2379
      %2381 = vmatprep.mubr.bf16.mxu0 %v597
      %2382 = vmatmul.mubr.bf16.gmra.mrb[0].mxu0 %v596
      %v2383 = vpop.f32.mrb[0].mxu0
      %v2384 = vadd.f32 %v2191, %v2383
      %v2385 = vpop.f32.mrb[0].mxu0
      %v2386 = vadd.f32 %v2193, %v2385
      %v2387 = vpop.f32.mrb[0].mxu0
      %v2388 = vadd.f32 %v2195, %v2387
      %v2389 = vpop.f32.mrb[0].mxu0
      %v2390 = vadd.f32 %v2197, %v2389
      %2391 = vmatprep.mubr.bf16.mxu0 %v604
      %2392 = vmatmul.mubr.bf16.gmra.mrb[0].mxu0 %v603
      %v2393 = vpop.f32.mrb[0].mxu0
      %v2394 = vadd.f32 %v2201, %v2393
      %v2395 = vpop.f32.mrb[0].mxu0
      %v2396 = vadd.f32 %v2203, %v2395
      %v2397 = vpop.f32.mrb[0].mxu0
      %v2398 = vadd.f32 %v2205, %v2397
      %v2399 = vpop.f32.mrb[0].mxu0
      %v2400 = vadd.f32 %v2207, %v2399
      %2401 = vmatprep.mubr.bf16.mxu0 %v611
      %2402 = vmatmul.mubr.bf16.gmra.mrb[0].mxu0 %v610
      %v2403 = vpop.f32.mrb[0].mxu0
      %v2404 = vadd.f32 %v2211, %v2403
      %v2405 = vpop.f32.mrb[0].mxu0
      %v2406 = vadd.f32 %v2213, %v2405
      %v2407 = vpop.f32.mrb[0].mxu0
      %v2408 = vadd.f32 %v2215, %v2407
      %v2409 = vpop.f32.mrb[0].mxu0
      %v2410 = vadd.f32 %v2217, %v2409
      %2411 = vmatprep.mubr.bf16.mxu0 %v618
      %2412 = vmatmul.mubr.bf16.gmra.mrb[0].mxu0 %v617
      %v2413 = vpop.f32.mrb[0].mxu0
      %v2414 = vadd.f32 %v2221, %v2413
      %v2415 = vpop.f32.mrb[0].mxu0
      %v2416 = vadd.f32 %v2223, %v2415
      %v2417 = vpop.f32.mrb[0].mxu0
      %v2418 = vadd.f32 %v2225, %v2417
      %v2419 = vpop.f32.mrb[0].mxu0
      %v2420 = vadd.f32 %v2227, %v2419
      %2421 = vmatprep.mubr.bf16.mxu0 %v625
      %2422 = vmatmul.mubr.bf16.gmra.mrb[0].mxu0 %v624
      %v2423 = vpop.f32.mrb[0].mxu0
      %v2424 = vadd.f32 %v2231, %v2423
      %v2425 = vpop.f32.mrb[0].mxu0
      %v2426 = vadd.f32 %v2233, %v2425
      %v2427 = vpop.f32.mrb[0].mxu0
      %v2428 = vadd.f32 %v2235, %v2427
      %v2429 = vpop.f32.mrb[0].mxu0
      %v2430 = vadd.f32 %v2237, %v2429
      %2431 = vmatprep.mubr.bf16.mxu0 %v632
      %2432 = vmatmul.mubr.bf16.gmra.mrb[0].mxu0 %v631
      %v2433 = vpop.f32.mrb[0].mxu0
      %v2434 = vadd.f32 %v2241, %v2433
      %v2435 = vpop.f32.mrb[0].mxu0
      %v2436 = vadd.f32 %v2243, %v2435
      %v2437 = vpop.f32.mrb[0].mxu0
      %v2438 = vadd.f32 %v2245, %v2437
      %v2439 = vpop.f32.mrb[0].mxu0
      %v2440 = vadd.f32 %v2247, %v2439
      %2441 = vmatprep.mubr.bf16.mxu0 %v639
      %2442 = vmatmul.mubr.bf16.gmra.mrb[0].mxu0 %v638
      %v2443 = vpop.f32.mrb[0].mxu0
      %v2444 = vadd.f32 %v2251, %v2443
      %v2445 = vpop.f32.mrb[0].mxu0
      %v2446 = vadd.f32 %v2253, %v2445
      %v2447 = vpop.f32.mrb[0].mxu0
      %v2448 = vadd.f32 %v2255, %v2447
      %v2449 = vpop.f32.mrb[0].mxu0
      %v2450 = vadd.f32 %v2257, %v2449
      %2451 = vmatprep.mubr.bf16.mxu0 %v646
      %2452 = vmatmul.mubr.bf16.gmra.mrb[0].mxu0 %v645
      %v2453 = vpop.f32.mrb[0].mxu0
      %v2454 = vadd.f32 %v2261, %v2453
      %v2455 = vpop.f32.mrb[0].mxu0
      %v2456 = vadd.f32 %v2263, %v2455
      %v2457 = vpop.f32.mrb[0].mxu0
      %v2458 = vadd.f32 %v2265, %v2457
      %v2459 = vpop.f32.mrb[0].mxu0
      %v2460 = vadd.f32 %v2267, %v2459
      %2461 = vmatprep.mubr.bf16.mxu0 %v653
      %2462 = vmatmul.mubr.bf16.gmra.mrb[0].mxu0 %v652
      %v2463 = vpop.f32.mrb[0].mxu0
      %v2464 = vadd.f32 %v2271, %v2463
      %v2465 = vpop.f32.mrb[0].mxu0
      %v2466 = vadd.f32 %v2273, %v2465
      %v2467 = vpop.f32.mrb[0].mxu0
      %v2468 = vadd.f32 %v2275, %v2467
      %v2469 = vpop.f32.mrb[0].mxu0
      %v2470 = vadd.f32 %v2277, %v2469
      %2471 = vmatprep.mubr.bf16.mxu0 %v660
      %2472 = vmatmul.mubr.bf16.gmra.mrb[0].mxu0 %v659
      %v2473 = vpop.f32.mrb[0].mxu0
      %v2474 = vadd.f32 %v2281, %v2473
      %v2475 = vpop.f32.mrb[0].mxu0
      %v2476 = vadd.f32 %v2283, %v2475
      %v2477 = vpop.f32.mrb[0].mxu0
      %v2478 = vadd.f32 %v2285, %v2477
      %v2479 = vpop.f32.mrb[0].mxu0
      %v2480 = vadd.f32 %v2287, %v2479
      %2481 = vmatprep.mubr.bf16.mxu0 %v667
      %2482 = vmatmul.mubr.bf16.gmra.mrb[0].mxu0 %v666
      %v2483 = vpop.f32.mrb[0].mxu0
      %v2484 = vadd.f32 %v2291, %v2483
      %v2485 = vpop.f32.mrb[0].mxu0
      %v2486 = vadd.f32 %v2293, %v2485
      %v2487 = vpop.f32.mrb[0].mxu0
      %v2488 = vadd.f32 %v2295, %v2487
      %v2489 = vpop.f32.mrb[0].mxu0
      %v2490 = vadd.f32 %v2297, %v2489
      %2491 = vmatprep.mubr.bf16.mxu0 %v674
      %2492 = vmatmul.mubr.bf16.gmra.mrb[0].mxu0 %v673
      %v2493 = vpop.f32.mrb[0].mxu0
      %v2494 = vadd.f32 %v2301, %v2493
      %v2495 = vpop.f32.mrb[0].mxu0
      %v2496 = vadd.f32 %v2303, %v2495
      %v2497 = vpop.f32.mrb[0].mxu0
      %v2498 = vadd.f32 %v2305, %v2497
      %v2499 = vpop.f32.mrb[0].mxu0
      %v2500 = vadd.f32 %v2307, %v2499
      %2501 = vdwg.mxu0
      %2502 = vmatprep.subr.bf16.mxu0 %v1675
      %2503 = vmatpush1.bf16.msra.mxu0 %v1674
      %2504 = vmatprep.subr.bf16.mxu0 0
      %2505 = vmatpush1.bf16.msra.mxu0 0
      %2506 = vmatprep.subr.bf16.mxu0 0
      %2507 = vmatpush1.bf16.msra.mxu0 0
      %2508 = vmatprep.subr.bf16.mxu0 0
      %2509 = vmatpush1.bf16.msra.mxu0 0
      %2510 = vmatprep.subr.bf16.mxu0 0
      %2511 = vmatpush1.bf16.msra.mxu0 0
      %2512 = vmatprep.subr.bf16.mxu0 0
      %2513 = vmatpush1.bf16.msra.mxu0 0
      %2514 = vmatprep.subr.bf16.mxu0 0
      %2515 = vmatpush1.bf16.msra.mxu0 0
      %2516 = vmatprep.subr.bf16.mxu0 0
      %2517 = vmatpush1.bf16.msra.mxu0 0
      %2518 = vmatprep.subr.bf16.mxu0 0
      %2519 = vmatpush1.bf16.msra.mxu0 0
      %2520 = vmatprep.subr.bf16.mxu0 0
      %2521 = vmatpush1.bf16.msra.mxu0 0
      %2522 = vmatprep.subr.bf16.mxu0 0
      %2523 = vmatpush1.bf16.msra.mxu0 0
      %2524 = vmatprep.subr.bf16.mxu0 0
      %2525 = vmatpush1.bf16.msra.mxu0 0
      %2526 = vmatprep.subr.bf16.mxu0 0
      %2527 = vmatpush1.bf16.msra.mxu0 0
      %2528 = vmatprep.subr.bf16.mxu0 0
      %2529 = vmatpush1.bf16.msra.mxu0 0
      %2530 = vmatprep.subr.bf16.mxu0 0
      %2531 = vmatpush1.bf16.msra.mxu0 0
      %2532 = vmatprep.subr.bf16.mxu0 0
      %2533 = vmatpush1.bf16.msra.mxu0 0
      %2534 = vmatprep.mubr.bf16.mxu0 0
      %2535 = vmatmul.mubr.bf16.gmra.mrb[0].mxu0 %v1876
      %v2536 = vpop.f32.mrb[0].mxu0
      %v2537 = vadd.f32 %v2344, %v2536
      %v2538 = vpop.f32.mrb[0].mxu0
      %v2539 = vadd.f32 %v2346, %v2538
      %v2540 = vpop.f32.mrb[0].mxu0
      %v2541 = vadd.f32 %v2348, %v2540
      %v2542 = vpop.f32.mrb[0].mxu0
      %v2543 = vadd.f32 %v2350, %v2542
      %2544 = vmatprep.mubr.bf16.mxu0 0
      %2545 = vmatmul.mubr.bf16.gmra.mrb[0].mxu0 %v1879
      %v2546 = vpop.f32.mrb[0].mxu0
      %v2547 = vadd.f32 %v2354, %v2546
      %v2548 = vpop.f32.mrb[0].mxu0
      %v2549 = vadd.f32 %v2356, %v2548
      %v2550 = vpop.f32.mrb[0].mxu0
      %v2551 = vadd.f32 %v2358, %v2550
      %v2552 = vpop.f32.mrb[0].mxu0
      %v2553 = vadd.f32 %v2360, %v2552
      %2554 = vmatprep.mubr.bf16.mxu0 0
      %2555 = vmatmul.mubr.bf16.gmra.mrb[0].mxu0 %v1882
      %v2556 = vpop.f32.mrb[0].mxu0
      %v2557 = vadd.f32 %v2364, %v2556
      %v2558 = vpop.f32.mrb[0].mxu0
      %v2559 = vadd.f32 %v2366, %v2558
      %v2560 = vpop.f32.mrb[0].mxu0
      %v2561 = vadd.f32 %v2368, %v2560
      %v2562 = vpop.f32.mrb[0].mxu0
      %v2563 = vadd.f32 %v2370, %v2562
      %2564 = vmatprep.mubr.bf16.mxu0 0
      %2565 = vmatmul.mubr.bf16.gmra.mrb[0].mxu0 %v1885
      %v2566 = vpop.f32.mrb[0].mxu0
      %v2567 = vadd.f32 %v2374, %v2566
      %v2568 = vpop.f32.mrb[0].mxu0
      %v2569 = vadd.f32 %v2376, %v2568
      %v2570 = vpop.f32.mrb[0].mxu0
      %v2571 = vadd.f32 %v2378, %v2570
      %v2572 = vpop.f32.mrb[0].mxu0
      %v2573 = vadd.f32 %v2380, %v2572
      %2574 = vmatprep.mubr.bf16.mxu0 0
      %2575 = vmatmul.mubr.bf16.gmra.mrb[0].mxu0 %v1888
      %v2576 = vpop.f32.mrb[0].mxu0
      %v2577 = vadd.f32 %v2384, %v2576
      %v2578 = vpop.f32.mrb[0].mxu0
      %v2579 = vadd.f32 %v2386, %v2578
      %v2580 = vpop.f32.mrb[0].mxu0
      %v2581 = vadd.f32 %v2388, %v2580
      %v2582 = vpop.f32.mrb[0].mxu0
      %v2583 = vadd.f32 %v2390, %v2582
      %2584 = vmatprep.mubr.bf16.mxu0 0
      %2585 = vmatmul.mubr.bf16.gmra.mrb[0].mxu0 %v1891
      %v2586 = vpop.f32.mrb[0].mxu0
      %v2587 = vadd.f32 %v2394, %v2586
      %v2588 = vpop.f32.mrb[0].mxu0
      %v2589 = vadd.f32 %v2396, %v2588
      %v2590 = vpop.f32.mrb[0].mxu0
      %v2591 = vadd.f32 %v2398, %v2590
      %v2592 = vpop.f32.mrb[0].mxu0
      %v2593 = vadd.f32 %v2400, %v2592
      %2594 = vmatprep.mubr.bf16.mxu0 0
      %2595 = vmatmul.mubr.bf16.gmra.mrb[0].mxu0 %v1894
      %v2596 = vpop.f32.mrb[0].mxu0
      %v2597 = vadd.f32 %v2404, %v2596
      %v2598 = vpop.f32.mrb[0].mxu0
      %v2599 = vadd.f32 %v2406, %v2598
      %v2600 = vpop.f32.mrb[0].mxu0
      %v2601 = vadd.f32 %v2408, %v2600
      %v2602 = vpop.f32.mrb[0].mxu0
      %v2603 = vadd.f32 %v2410, %v2602
      %2604 = vmatprep.mubr.bf16.mxu0 0
      %2605 = vmatmul.mubr.bf16.gmra.mrb[0].mxu0 %v1897
      %v2606 = vpop.f32.mrb[0].mxu0
      %v2607 = vadd.f32 %v2414, %v2606
      %v2608 = vpop.f32.mrb[0].mxu0
      %v2609 = vadd.f32 %v2416, %v2608
      %v2610 = vpop.f32.mrb[0].mxu0
      %v2611 = vadd.f32 %v2418, %v2610
      %v2612 = vpop.f32.mrb[0].mxu0
      %v2613 = vadd.f32 %v2420, %v2612
      %2614 = vmatprep.mubr.bf16.mxu0 0
      %2615 = vmatmul.mubr.bf16.gmra.mrb[0].mxu0 %v1900
      %v2616 = vpop.f32.mrb[0].mxu0
      %v2617 = vadd.f32 %v2424, %v2616
      %v2618 = vpop.f32.mrb[0].mxu0
      %v2619 = vadd.f32 %v2426, %v2618
      %v2620 = vpop.f32.mrb[0].mxu0
      %v2621 = vadd.f32 %v2428, %v2620
      %v2622 = vpop.f32.mrb[0].mxu0
      %v2623 = vadd.f32 %v2430, %v2622
      %2624 = vmatprep.mubr.bf16.mxu0 0
      %2625 = vmatmul.mubr.bf16.gmra.mrb[0].mxu0 %v1903
      %v2626 = vpop.f32.mrb[0].mxu0
      %v2627 = vadd.f32 %v2434, %v2626
      %v2628 = vpop.f32.mrb[0].mxu0
      %v2629 = vadd.f32 %v2436, %v2628
      %v2630 = vpop.f32.mrb[0].mxu0
      %v2631 = vadd.f32 %v2438, %v2630
      %v2632 = vpop.f32.mrb[0].mxu0
      %v2633 = vadd.f32 %v2440, %v2632
      %2634 = vmatprep.mubr.bf16.mxu0 0
      %2635 = vmatmul.mubr.bf16.gmra.mrb[0].mxu0 %v1906
      %v2636 = vpop.f32.mrb[0].mxu0
      %v2637 = vadd.f32 %v2444, %v2636
      %v2638 = vpop.f32.mrb[0].mxu0
      %v2639 = vadd.f32 %v2446, %v2638
      %v2640 = vpop.f32.mrb[0].mxu0
      %v2641 = vadd.f32 %v2448, %v2640
      %v2642 = vpop.f32.mrb[0].mxu0
      %v2643 = vadd.f32 %v2450, %v2642
      %2644 = vmatprep.mubr.bf16.mxu0 0
      %2645 = vmatmul.mubr.bf16.gmra.mrb[0].mxu0 %v1909
      %v2646 = vpop.f32.mrb[0].mxu0
      %v2647 = vadd.f32 %v2454, %v2646
      %v2648 = vpop.f32.mrb[0].mxu0
      %v2649 = vadd.f32 %v2456, %v2648
      %v2650 = vpop.f32.mrb[0].mxu0
      %v2651 = vadd.f32 %v2458, %v2650
      %v2652 = vpop.f32.mrb[0].mxu0
      %v2653 = vadd.f32 %v2460, %v2652
      %2654 = vmatprep.mubr.bf16.mxu0 0
      %2655 = vmatmul.mubr.bf16.gmra.mrb[0].mxu0 %v1912
      %v2656 = vpop.f32.mrb[0].mxu0
      %v2657 = vadd.f32 %v2464, %v2656
      %v2658 = vpop.f32.mrb[0].mxu0
      %v2659 = vadd.f32 %v2466, %v2658
      %v2660 = vpop.f32.mrb[0].mxu0
      %v2661 = vadd.f32 %v2468, %v2660
      %v2662 = vpop.f32.mrb[0].mxu0
      %v2663 = vadd.f32 %v2470, %v2662
      %2664 = vmatprep.mubr.bf16.mxu0 0
      %2665 = vmatmul.mubr.bf16.gmra.mrb[0].mxu0 %v1915
      %v2666 = vpop.f32.mrb[0].mxu0
      %v2667 = vadd.f32 %v2474, %v2666
      %v2668 = vpop.f32.mrb[0].mxu0
      %v2669 = vadd.f32 %v2476, %v2668
      %v2670 = vpop.f32.mrb[0].mxu0
      %v2671 = vadd.f32 %v2478, %v2670
      %v2672 = vpop.f32.mrb[0].mxu0
      %v2673 = vadd.f32 %v2480, %v2672
      %2674 = vmatprep.mubr.bf16.mxu0 0
      %2675 = vmatmul.mubr.bf16.gmra.mrb[0].mxu0 %v1918
      %v2676 = vpop.f32.mrb[0].mxu0
      %v2677 = vadd.f32 %v2484, %v2676
      %v2678 = vpop.f32.mrb[0].mxu0
      %v2679 = vadd.f32 %v2486, %v2678
      %v2680 = vpop.f32.mrb[0].mxu0
      %v2681 = vadd.f32 %v2488, %v2680
      %v2682 = vpop.f32.mrb[0].mxu0
      %v2683 = vadd.f32 %v2490, %v2682
      %2684 = vmatprep.mubr.bf16.mxu0 0
      %2685 = vmatmul.mubr.bf16.gmra.mrb[0].mxu0 %v1921
      %v2686 = vpop.f32.mrb[0].mxu0
      %v2687 = vadd.f32 %v2494, %v2686
      %v2688 = vpop.f32.mrb[0].mxu0
      %v2689 = vadd.f32 %v2496, %v2688
      %v2690 = vpop.f32.mrb[0].mxu0
      %v2691 = vadd.f32 %v2498, %v2690
      %v2692 = vpop.f32.mrb[0].mxu0
      %v2693 = vadd.f32 %v2500, %v2692
      %2694 = vdwg.mxu0
      %2695 = vmatprep.subr.bf16.mxu0 %v1485
      %2696 = vmatpush1.bf16.msra.mxu0 %v1484
      %2697 = vmatprep.subr.bf16.mxu0 %v1489
      %2698 = vmatpush1.bf16.msra.mxu0 %v1488
      %2699 = vmatprep.subr.bf16.mxu0 %v1493
      %2700 = vmatpush1.bf16.msra.mxu0 %v1492
      %2701 = vmatprep.subr.bf16.mxu0 %v1497
      %2702 = vmatpush1.bf16.msra.mxu0 %v1496
      %2703 = vmatprep.subr.bf16.mxu0 %v1501
      %2704 = vmatpush1.bf16.msra.mxu0 %v1500
      %2705 = vmatprep.subr.bf16.mxu0 %v1505
      %2706 = vmatpush1.bf16.msra.mxu0 %v1504
      %2707 = vmatprep.subr.bf16.mxu0 %v1509
      %2708 = vmatpush1.bf16.msra.mxu0 %v1508
      %2709 = vmatprep.subr.bf16.mxu0 %v1513
      %2710 = vmatpush1.bf16.msra.mxu0 %v1512
      %2711 = vmatprep.subr.bf16.mxu0 %v1517
      %2712 = vmatpush1.bf16.msra.mxu0 %v1516
      %2713 = vmatprep.subr.bf16.mxu0 %v1521
      %2714 = vmatpush1.bf16.msra.mxu0 %v1520
      %2715 = vmatprep.subr.bf16.mxu0 %v1525
      %2716 = vmatpush1.bf16.msra.mxu0 %v1524
      %2717 = vmatprep.subr.bf16.mxu0 %v1529
      %2718 = vmatpush1.bf16.msra.mxu0 %v1528
      %2719 = vmatprep.subr.bf16.mxu0 %v1533
      %2720 = vmatpush1.bf16.msra.mxu0 %v1532
      %2721 = vmatprep.subr.bf16.mxu0 %v1537
      %2722 = vmatpush1.bf16.msra.mxu0 %v1536
      %2723 = vmatprep.subr.bf16.mxu0 %v1541
      %2724 = vmatpush1.bf16.msra.mxu0 %v1540
      %2725 = vmatprep.subr.bf16.mxu0 %v1545
      %2726 = vmatpush1.bf16.msra.mxu0 %v1544
      %2727 = vmatprep.mubr.bf16.mxu0 %v565
      %2728 = vmatmul.mubr.bf16.gmra.mrb[0].mxu0 %v564
      %v2729 = vpop.f32.mrb[0].mxu0
      %v2730 = vadd.f32 %v885, %v2729
      %v2731 = vpop.f32.mrb[0].mxu0
      %v2732 = vadd.f32 %v889, %v2731
      %v2733 = vpop.f32.mrb[0].mxu0
      %v2734 = vadd.f32 %v885, %v2733
      %v2735 = vpop.f32.mrb[0].mxu0
      %v2736 = vadd.f32 %v889, %v2735
      %2737 = vmatprep.mubr.bf16.mxu0 %v572
      %2738 = vmatmul.mubr.bf16.gmra.mrb[0].mxu0 %v571
      %v2739 = vpop.f32.mrb[0].mxu0
      %v2740 = vadd.f32 %v885, %v2739
      %v2741 = vpop.f32.mrb[0].mxu0
      %v2742 = vadd.f32 %v889, %v2741
      %v2743 = vpop.f32.mrb[0].mxu0
      %v2744 = vadd.f32 %v885, %v2743
      %v2745 = vpop.f32.mrb[0].mxu0
      %v2746 = vadd.f32 %v889, %v2745
      %2747 = vmatprep.mubr.bf16.mxu0 %v579
      %2748 = vmatmul.mubr.bf16.gmra.mrb[0].mxu0 %v578
      %v2749 = vpop.f32.mrb[0].mxu0
      %v2750 = vadd.f32 %v885, %v2749
      %v2751 = vpop.f32.mrb[0].mxu0
      %v2752 = vadd.f32 %v889, %v2751
      %v2753 = vpop.f32.mrb[0].mxu0
      %v2754 = vadd.f32 %v885, %v2753
      %v2755 = vpop.f32.mrb[0].mxu0
      %v2756 = vadd.f32 %v889, %v2755
      %2757 = vmatprep.mubr.bf16.mxu0 %v586
      %2758 = vmatmul.mubr.bf16.gmra.mrb[0].mxu0 %v585
      %v2759 = vpop.f32.mrb[0].mxu0
      %v2760 = vadd.f32 %v885, %v2759
      %v2761 = vpop.f32.mrb[0].mxu0
      %v2762 = vadd.f32 %v889, %v2761
      %v2763 = vpop.f32.mrb[0].mxu0
      %v2764 = vadd.f32 %v885, %v2763
      %v2765 = vpop.f32.mrb[0].mxu0
      %v2766 = vadd.f32 %v889, %v2765
      %2767 = vmatprep.mubr.bf16.mxu0 %v593
      %2768 = vmatmul.mubr.bf16.gmra.mrb[0].mxu0 %v592
      %v2769 = vpop.f32.mrb[0].mxu0
      %v2770 = vadd.f32 %v885, %v2769
      %v2771 = vpop.f32.mrb[0].mxu0
      %v2772 = vadd.f32 %v889, %v2771
      %v2773 = vpop.f32.mrb[0].mxu0
      %v2774 = vadd.f32 %v885, %v2773
      %v2775 = vpop.f32.mrb[0].mxu0
      %v2776 = vadd.f32 %v889, %v2775
      %2777 = vmatprep.mubr.bf16.mxu0 %v600
      %2778 = vmatmul.mubr.bf16.gmra.mrb[0].mxu0 %v599
      %v2779 = vpop.f32.mrb[0].mxu0
      %v2780 = vadd.f32 %v885, %v2779
      %v2781 = vpop.f32.mrb[0].mxu0
      %v2782 = vadd.f32 %v889, %v2781
      %v2783 = vpop.f32.mrb[0].mxu0
      %v2784 = vadd.f32 %v885, %v2783
      %v2785 = vpop.f32.mrb[0].mxu0
      %v2786 = vadd.f32 %v889, %v2785
      %2787 = vmatprep.mubr.bf16.mxu0 %v607
      %2788 = vmatmul.mubr.bf16.gmra.mrb[0].mxu0 %v606
      %v2789 = vpop.f32.mrb[0].mxu0
      %v2790 = vadd.f32 %v885, %v2789
      %v2791 = vpop.f32.mrb[0].mxu0
      %v2792 = vadd.f32 %v889, %v2791
      %v2793 = vpop.f32.mrb[0].mxu0
      %v2794 = vadd.f32 %v885, %v2793
      %v2795 = vpop.f32.mrb[0].mxu0
      %v2796 = vadd.f32 %v889, %v2795
      %2797 = vmatprep.mubr.bf16.mxu0 %v614
      %2798 = vmatmul.mubr.bf16.gmra.mrb[0].mxu0 %v613
      %v2799 = vpop.f32.mrb[0].mxu0
      %v2800 = vadd.f32 %v885, %v2799
      %v2801 = vpop.f32.mrb[0].mxu0
      %v2802 = vadd.f32 %v889, %v2801
      %v2803 = vpop.f32.mrb[0].mxu0
      %v2804 = vadd.f32 %v885, %v2803
      %v2805 = vpop.f32.mrb[0].mxu0
      %v2806 = vadd.f32 %v889, %v2805
      %2807 = vmatprep.mubr.bf16.mxu0 %v621
      %2808 = vmatmul.mubr.bf16.gmra.mrb[0].mxu0 %v620
      %v2809 = vpop.f32.mrb[0].mxu0
      %v2810 = vadd.f32 %v885, %v2809
      %v2811 = vpop.f32.mrb[0].mxu0
      %v2812 = vadd.f32 %v889, %v2811
      %v2813 = vpop.f32.mrb[0].mxu0
      %v2814 = vadd.f32 %v885, %v2813
      %v2815 = vpop.f32.mrb[0].mxu0
      %v2816 = vadd.f32 %v889, %v2815
      %2817 = vmatprep.mubr.bf16.mxu0 %v628
      %2818 = vmatmul.mubr.bf16.gmra.mrb[0].mxu0 %v627
      %v2819 = vpop.f32.mrb[0].mxu0
      %v2820 = vadd.f32 %v885, %v2819
      %v2821 = vpop.f32.mrb[0].mxu0
      %v2822 = vadd.f32 %v889, %v2821
      %v2823 = vpop.f32.mrb[0].mxu0
      %v2824 = vadd.f32 %v885, %v2823
      %v2825 = vpop.f32.mrb[0].mxu0
      %v2826 = vadd.f32 %v889, %v2825
      %2827 = vmatprep.mubr.bf16.mxu0 %v635
      %2828 = vmatmul.mubr.bf16.gmra.mrb[0].mxu0 %v634
      %v2829 = vpop.f32.mrb[0].mxu0
      %v2830 = vadd.f32 %v885, %v2829
      %v2831 = vpop.f32.mrb[0].mxu0
      %v2832 = vadd.f32 %v889, %v2831
      %v2833 = vpop.f32.mrb[0].mxu0
      %v2834 = vadd.f32 %v885, %v2833
      %v2835 = vpop.f32.mrb[0].mxu0
      %v2836 = vadd.f32 %v889, %v2835
      %2837 = vmatprep.mubr.bf16.mxu0 %v642
      %2838 = vmatmul.mubr.bf16.gmra.mrb[0].mxu0 %v641
      %v2839 = vpop.f32.mrb[0].mxu0
      %v2840 = vadd.f32 %v885, %v2839
      %v2841 = vpop.f32.mrb[0].mxu0
      %v2842 = vadd.f32 %v889, %v2841
      %v2843 = vpop.f32.mrb[0].mxu0
      %v2844 = vadd.f32 %v885, %v2843
      %v2845 = vpop.f32.mrb[0].mxu0
      %v2846 = vadd.f32 %v889, %v2845
      %2847 = vmatprep.mubr.bf16.mxu0 %v649
      %2848 = vmatmul.mubr.bf16.gmra.mrb[0].mxu0 %v648
      %v2849 = vpop.f32.mrb[0].mxu0
      %v2850 = vadd.f32 %v885, %v2849
      %v2851 = vpop.f32.mrb[0].mxu0
      %v2852 = vadd.f32 %v889, %v2851
      %v2853 = vpop.f32.mrb[0].mxu0
      %v2854 = vadd.f32 %v885, %v2853
      %v2855 = vpop.f32.mrb[0].mxu0
      %v2856 = vadd.f32 %v889, %v2855
      %2857 = vmatprep.mubr.bf16.mxu0 %v656
      %2858 = vmatmul.mubr.bf16.gmra.mrb[0].mxu0 %v655
      %v2859 = vpop.f32.mrb[0].mxu0
      %v2860 = vadd.f32 %v885, %v2859
      %v2861 = vpop.f32.mrb[0].mxu0
      %v2862 = vadd.f32 %v889, %v2861
      %v2863 = vpop.f32.mrb[0].mxu0
      %v2864 = vadd.f32 %v885, %v2863
      %v2865 = vpop.f32.mrb[0].mxu0
      %v2866 = vadd.f32 %v889, %v2865
      %2867 = vmatprep.mubr.bf16.mxu0 %v663
      %2868 = vmatmul.mubr.bf16.gmra.mrb[0].mxu0 %v662
      %v2869 = vpop.f32.mrb[0].mxu0
      %v2870 = vadd.f32 %v885, %v2869
      %v2871 = vpop.f32.mrb[0].mxu0
      %v2872 = vadd.f32 %v889, %v2871
      %v2873 = vpop.f32.mrb[0].mxu0
      %v2874 = vadd.f32 %v885, %v2873
      %v2875 = vpop.f32.mrb[0].mxu0
      %v2876 = vadd.f32 %v889, %v2875
      %2877 = vmatprep.mubr.bf16.mxu0 %v670
      %2878 = vmatmul.mubr.bf16.gmra.mrb[0].mxu0 %v669
      %v2879 = vpop.f32.mrb[0].mxu0
      %v2880 = vadd.f32 %v885, %v2879
      %v2881 = vpop.f32.mrb[0].mxu0
      %v2882 = vadd.f32 %v889, %v2881
      %v2883 = vpop.f32.mrb[0].mxu0
      %v2884 = vadd.f32 %v885, %v2883
      %v2885 = vpop.f32.mrb[0].mxu0
      %v2886 = vadd.f32 %v889, %v2885
      %2887 = vdwg.mxu0
      %2888 = vmatprep.subr.bf16.mxu0 %v1549
      %2889 = vmatpush1.bf16.msra.mxu0 %v1548
      %2890 = vmatprep.subr.bf16.mxu0 %v1553
      %2891 = vmatpush1.bf16.msra.mxu0 %v1552
      %2892 = vmatprep.subr.bf16.mxu0 %v1557
      %2893 = vmatpush1.bf16.msra.mxu0 %v1556
      %2894 = vmatprep.subr.bf16.mxu0 %v1561
      %2895 = vmatpush1.bf16.msra.mxu0 %v1560
      %2896 = vmatprep.subr.bf16.mxu0 %v1565
      %2897 = vmatpush1.bf16.msra.mxu0 %v1564
      %2898 = vmatprep.subr.bf16.mxu0 %v1569
      %2899 = vmatpush1.bf16.msra.mxu0 %v1568
      %2900 = vmatprep.subr.bf16.mxu0 %v1573
      %2901 = vmatpush1.bf16.msra.mxu0 %v1572
      %2902 = vmatprep.subr.bf16.mxu0 %v1577
      %2903 = vmatpush1.bf16.msra.mxu0 %v1576
      %2904 = vmatprep.subr.bf16.mxu0 %v1581
      %2905 = vmatpush1.bf16.msra.mxu0 %v1580
      %2906 = vmatprep.subr.bf16.mxu0 %v1585
      %2907 = vmatpush1.bf16.msra.mxu0 %v1584
      %2908 = vmatprep.subr.bf16.mxu0 %v1589
      %2909 = vmatpush1.bf16.msra.mxu0 %v1588
      %2910 = vmatprep.subr.bf16.mxu0 %v1593
      %2911 = vmatpush1.bf16.msra.mxu0 %v1592
      %2912 = vmatprep.subr.bf16.mxu0 %v1597
      %2913 = vmatpush1.bf16.msra.mxu0 %v1596
      %2914 = vmatprep.subr.bf16.mxu0 %v1601
      %2915 = vmatpush1.bf16.msra.mxu0 %v1600
      %2916 = vmatprep.subr.bf16.mxu0 %v1605
      %2917 = vmatpush1.bf16.msra.mxu0 %v1604
      %2918 = vmatprep.subr.bf16.mxu0 %v1609
      %2919 = vmatpush1.bf16.msra.mxu0 %v1608
      %2920 = vmatprep.mubr.bf16.mxu0 %v567
      %2921 = vmatmul.mubr.bf16.gmra.mrb[0].mxu0 %v566
      %v2922 = vpop.f32.mrb[0].mxu0
      %v2923 = vadd.f32 %v2730, %v2922
      %v2924 = vpop.f32.mrb[0].mxu0
      %v2925 = vadd.f32 %v2732, %v2924
      %v2926 = vpop.f32.mrb[0].mxu0
      %v2927 = vadd.f32 %v2734, %v2926
      %v2928 = vpop.f32.mrb[0].mxu0
      %v2929 = vadd.f32 %v2736, %v2928
      %2930 = vmatprep.mubr.bf16.mxu0 %v574
      %2931 = vmatmul.mubr.bf16.gmra.mrb[0].mxu0 %v573
      %v2932 = vpop.f32.mrb[0].mxu0
      %v2933 = vadd.f32 %v2740, %v2932
      %v2934 = vpop.f32.mrb[0].mxu0
      %v2935 = vadd.f32 %v2742, %v2934
      %v2936 = vpop.f32.mrb[0].mxu0
      %v2937 = vadd.f32 %v2744, %v2936
      %v2938 = vpop.f32.mrb[0].mxu0
      %v2939 = vadd.f32 %v2746, %v2938
      %2940 = vmatprep.mubr.bf16.mxu0 %v581
      %2941 = vmatmul.mubr.bf16.gmra.mrb[0].mxu0 %v580
      %v2942 = vpop.f32.mrb[0].mxu0
      %v2943 = vadd.f32 %v2750, %v2942
      %v2944 = vpop.f32.mrb[0].mxu0
      %v2945 = vadd.f32 %v2752, %v2944
      %v2946 = vpop.f32.mrb[0].mxu0
      %v2947 = vadd.f32 %v2754, %v2946
      %v2948 = vpop.f32.mrb[0].mxu0
      %v2949 = vadd.f32 %v2756, %v2948
      %2950 = vmatprep.mubr.bf16.mxu0 %v588
      %2951 = vmatmul.mubr.bf16.gmra.mrb[0].mxu0 %v587
      %v2952 = vpop.f32.mrb[0].mxu0
      %v2953 = vadd.f32 %v2760, %v2952
      %v2954 = vpop.f32.mrb[0].mxu0
      %v2955 = vadd.f32 %v2762, %v2954
      %v2956 = vpop.f32.mrb[0].mxu0
      %v2957 = vadd.f32 %v2764, %v2956
      %v2958 = vpop.f32.mrb[0].mxu0
      %v2959 = vadd.f32 %v2766, %v2958
      %2960 = vmatprep.mubr.bf16.mxu0 %v595
      %2961 = vmatmul.mubr.bf16.gmra.mrb[0].mxu0 %v594
      %v2962 = vpop.f32.mrb[0].mxu0
      %v2963 = vadd.f32 %v2770, %v2962
      %v2964 = vpop.f32.mrb[0].mxu0
      %v2965 = vadd.f32 %v2772, %v2964
      %v2966 = vpop.f32.mrb[0].mxu0
      %v2967 = vadd.f32 %v2774, %v2966
      %v2968 = vpop.f32.mrb[0].mxu0
      %v2969 = vadd.f32 %v2776, %v2968
      %2970 = vmatprep.mubr.bf16.mxu0 %v602
      %2971 = vmatmul.mubr.bf16.gmra.mrb[0].mxu0 %v601
      %v2972 = vpop.f32.mrb[0].mxu0
      %v2973 = vadd.f32 %v2780, %v2972
      %v2974 = vpop.f32.mrb[0].mxu0
      %v2975 = vadd.f32 %v2782, %v2974
      %v2976 = vpop.f32.mrb[0].mxu0
      %v2977 = vadd.f32 %v2784, %v2976
      %v2978 = vpop.f32.mrb[0].mxu0
      %v2979 = vadd.f32 %v2786, %v2978
      %2980 = vmatprep.mubr.bf16.mxu0 %v609
      %2981 = vmatmul.mubr.bf16.gmra.mrb[0].mxu0 %v608
      %v2982 = vpop.f32.mrb[0].mxu0
      %v2983 = vadd.f32 %v2790, %v2982
      %v2984 = vpop.f32.mrb[0].mxu0
      %v2985 = vadd.f32 %v2792, %v2984
      %v2986 = vpop.f32.mrb[0].mxu0
      %v2987 = vadd.f32 %v2794, %v2986
      %v2988 = vpop.f32.mrb[0].mxu0
      %v2989 = vadd.f32 %v2796, %v2988
      %2990 = vmatprep.mubr.bf16.mxu0 %v616
      %2991 = vmatmul.mubr.bf16.gmra.mrb[0].mxu0 %v615
      %v2992 = vpop.f32.mrb[0].mxu0
      %v2993 = vadd.f32 %v2800, %v2992
      %v2994 = vpop.f32.mrb[0].mxu0
      %v2995 = vadd.f32 %v2802, %v2994
      %v2996 = vpop.f32.mrb[0].mxu0
      %v2997 = vadd.f32 %v2804, %v2996
      %v2998 = vpop.f32.mrb[0].mxu0
      %v2999 = vadd.f32 %v2806, %v2998
      %3000 = vmatprep.mubr.bf16.mxu0 %v623
      %3001 = vmatmul.mubr.bf16.gmra.mrb[0].mxu0 %v622
      %v3002 = vpop.f32.mrb[0].mxu0
      %v3003 = vadd.f32 %v2810, %v3002
      %v3004 = vpop.f32.mrb[0].mxu0
      %v3005 = vadd.f32 %v2812, %v3004
      %v3006 = vpop.f32.mrb[0].mxu0
      %v3007 = vadd.f32 %v2814, %v3006
      %v3008 = vpop.f32.mrb[0].mxu0
      %v3009 = vadd.f32 %v2816, %v3008
      %3010 = vmatprep.mubr.bf16.mxu0 %v630
      %3011 = vmatmul.mubr.bf16.gmra.mrb[0].mxu0 %v629
      %v3012 = vpop.f32.mrb[0].mxu0
      %v3013 = vadd.f32 %v2820, %v3012
      %v3014 = vpop.f32.mrb[0].mxu0
      %v3015 = vadd.f32 %v2822, %v3014
      %v3016 = vpop.f32.mrb[0].mxu0
      %v3017 = vadd.f32 %v2824, %v3016
      %v3018 = vpop.f32.mrb[0].mxu0
      %v3019 = vadd.f32 %v2826, %v3018
      %3020 = vmatprep.mubr.bf16.mxu0 %v637
      %3021 = vmatmul.mubr.bf16.gmra.mrb[0].mxu0 %v636
      %v3022 = vpop.f32.mrb[0].mxu0
      %v3023 = vadd.f32 %v2830, %v3022
      %v3024 = vpop.f32.mrb[0].mxu0
      %v3025 = vadd.f32 %v2832, %v3024
      %v3026 = vpop.f32.mrb[0].mxu0
      %v3027 = vadd.f32 %v2834, %v3026
      %v3028 = vpop.f32.mrb[0].mxu0
      %v3029 = vadd.f32 %v2836, %v3028
      %3030 = vmatprep.mubr.bf16.mxu0 %v644
      %3031 = vmatmul.mubr.bf16.gmra.mrb[0].mxu0 %v643
      %v3032 = vpop.f32.mrb[0].mxu0
      %v3033 = vadd.f32 %v2840, %v3032
      %v3034 = vpop.f32.mrb[0].mxu0
      %v3035 = vadd.f32 %v2842, %v3034
      %v3036 = vpop.f32.mrb[0].mxu0
      %v3037 = vadd.f32 %v2844, %v3036
      %v3038 = vpop.f32.mrb[0].mxu0
      %v3039 = vadd.f32 %v2846, %v3038
      %3040 = vmatprep.mubr.bf16.mxu0 %v651
      %3041 = vmatmul.mubr.bf16.gmra.mrb[0].mxu0 %v650
      %v3042 = vpop.f32.mrb[0].mxu0
      %v3043 = vadd.f32 %v2850, %v3042
      %v3044 = vpop.f32.mrb[0].mxu0
      %v3045 = vadd.f32 %v2852, %v3044
      %v3046 = vpop.f32.mrb[0].mxu0
      %v3047 = vadd.f32 %v2854, %v3046
      %v3048 = vpop.f32.mrb[0].mxu0
      %v3049 = vadd.f32 %v2856, %v3048
      %3050 = vmatprep.mubr.bf16.mxu0 %v658
      %3051 = vmatmul.mubr.bf16.gmra.mrb[0].mxu0 %v657
      %v3052 = vpop.f32.mrb[0].mxu0
      %v3053 = vadd.f32 %v2860, %v3052
      %v3054 = vpop.f32.mrb[0].mxu0
      %v3055 = vadd.f32 %v2862, %v3054
      %v3056 = vpop.f32.mrb[0].mxu0
      %v3057 = vadd.f32 %v2864, %v3056
      %v3058 = vpop.f32.mrb[0].mxu0
      %v3059 = vadd.f32 %v2866, %v3058
      %3060 = vmatprep.mubr.bf16.mxu0 %v665
      %3061 = vmatmul.mubr.bf16.gmra.mrb[0].mxu0 %v664
      %v3062 = vpop.f32.mrb[0].mxu0
      %v3063 = vadd.f32 %v2870, %v3062
      %v3064 = vpop.f32.mrb[0].mxu0
      %v3065 = vadd.f32 %v2872, %v3064
      %v3066 = vpop.f32.mrb[0].mxu0
      %v3067 = vadd.f32 %v2874, %v3066
      %v3068 = vpop.f32.mrb[0].mxu0
      %v3069 = vadd.f32 %v2876, %v3068
      %3070 = vmatprep.mubr.bf16.mxu0 %v672
      %3071 = vmatmul.mubr.bf16.gmra.mrb[0].mxu0 %v671
      %v3072 = vpop.f32.mrb[0].mxu0
      %v3073 = vadd.f32 %v2880, %v3072
      %v3074 = vpop.f32.mrb[0].mxu0
      %v3075 = vadd.f32 %v2882, %v3074
      %v3076 = vpop.f32.mrb[0].mxu0
      %v3077 = vadd.f32 %v2884, %v3076
      %v3078 = vpop.f32.mrb[0].mxu0
      %v3079 = vadd.f32 %v2886, %v3078
      %3080 = vdwg.mxu0
      %3081 = vmatprep.subr.bf16.mxu0 %v1613
      %3082 = vmatpush1.bf16.msra.mxu0 %v1612
      %3083 = vmatprep.subr.bf16.mxu0 %v1617
      %3084 = vmatpush1.bf16.msra.mxu0 %v1616
      %3085 = vmatprep.subr.bf16.mxu0 %v1621
      %3086 = vmatpush1.bf16.msra.mxu0 %v1620
      %3087 = vmatprep.subr.bf16.mxu0 %v1625
      %3088 = vmatpush1.bf16.msra.mxu0 %v1624
      %3089 = vmatprep.subr.bf16.mxu0 %v1629
      %3090 = vmatpush1.bf16.msra.mxu0 %v1628
      %3091 = vmatprep.subr.bf16.mxu0 %v1633
      %3092 = vmatpush1.bf16.msra.mxu0 %v1632
      %3093 = vmatprep.subr.bf16.mxu0 %v1637
      %3094 = vmatpush1.bf16.msra.mxu0 %v1636
      %3095 = vmatprep.subr.bf16.mxu0 %v1641
      %3096 = vmatpush1.bf16.msra.mxu0 %v1640
      %3097 = vmatprep.subr.bf16.mxu0 %v1645
      %3098 = vmatpush1.bf16.msra.mxu0 %v1644
      %3099 = vmatprep.subr.bf16.mxu0 %v1649
      %3100 = vmatpush1.bf16.msra.mxu0 %v1648
      %3101 = vmatprep.subr.bf16.mxu0 %v1653
      %3102 = vmatpush1.bf16.msra.mxu0 %v1652
      %3103 = vmatprep.subr.bf16.mxu0 %v1657
      %3104 = vmatpush1.bf16.msra.mxu0 %v1656
      %3105 = vmatprep.subr.bf16.mxu0 %v1661
      %3106 = vmatpush1.bf16.msra.mxu0 %v1660
      %3107 = vmatprep.subr.bf16.mxu0 %v1665
      %3108 = vmatpush1.bf16.msra.mxu0 %v1664
      %3109 = vmatprep.subr.bf16.mxu0 %v1669
      %3110 = vmatpush1.bf16.msra.mxu0 %v1668
      %3111 = vmatprep.subr.bf16.mxu0 %v1673
      %3112 = vmatpush1.bf16.msra.mxu0 %v1672
      %3113 = vmatprep.mubr.bf16.mxu0 %v569
      %3114 = vmatmul.mubr.bf16.gmra.mrb[0].mxu0 %v568
      %v3115 = vpop.f32.mrb[0].mxu0
      %v3116 = vadd.f32 %v2923, %v3115
      %v3117 = vpop.f32.mrb[0].mxu0
      %v3118 = vadd.f32 %v2925, %v3117
      %v3119 = vpop.f32.mrb[0].mxu0
      %v3120 = vadd.f32 %v2927, %v3119
      %v3121 = vpop.f32.mrb[0].mxu0
      %v3122 = vadd.f32 %v2929, %v3121
      %3123 = vmatprep.mubr.bf16.mxu0 %v576
      %3124 = vmatmul.mubr.bf16.gmra.mrb[0].mxu0 %v575
      %v3125 = vpop.f32.mrb[0].mxu0
      %v3126 = vadd.f32 %v2933, %v3125
      %v3127 = vpop.f32.mrb[0].mxu0
      %v3128 = vadd.f32 %v2935, %v3127
      %v3129 = vpop.f32.mrb[0].mxu0
      %v3130 = vadd.f32 %v2937, %v3129
      %v3131 = vpop.f32.mrb[0].mxu0
      %v3132 = vadd.f32 %v2939, %v3131
      %3133 = vmatprep.mubr.bf16.mxu0 %v583
      %3134 = vmatmul.mubr.bf16.gmra.mrb[0].mxu0 %v582
      %v3135 = vpop.f32.mrb[0].mxu0
      %v3136 = vadd.f32 %v2943, %v3135
      %v3137 = vpop.f32.mrb[0].mxu0
      %v3138 = vadd.f32 %v2945, %v3137
      %v3139 = vpop.f32.mrb[0].mxu0
      %v3140 = vadd.f32 %v2947, %v3139
      %v3141 = vpop.f32.mrb[0].mxu0
      %v3142 = vadd.f32 %v2949, %v3141
      %3143 = vmatprep.mubr.bf16.mxu0 %v590
      %3144 = vmatmul.mubr.bf16.gmra.mrb[0].mxu0 %v589
      %v3145 = vpop.f32.mrb[0].mxu0
      %v3146 = vadd.f32 %v2953, %v3145
      %v3147 = vpop.f32.mrb[0].mxu0
      %v3148 = vadd.f32 %v2955, %v3147
      %v3149 = vpop.f32.mrb[0].mxu0
      %v3150 = vadd.f32 %v2957, %v3149
      %v3151 = vpop.f32.mrb[0].mxu0
      %v3152 = vadd.f32 %v2959, %v3151
      %3153 = vmatprep.mubr.bf16.mxu0 %v597
      %3154 = vmatmul.mubr.bf16.gmra.mrb[0].mxu0 %v596
      %v3155 = vpop.f32.mrb[0].mxu0
      %v3156 = vadd.f32 %v2963, %v3155
      %v3157 = vpop.f32.mrb[0].mxu0
      %v3158 = vadd.f32 %v2965, %v3157
      %v3159 = vpop.f32.mrb[0].mxu0
      %v3160 = vadd.f32 %v2967, %v3159
      %v3161 = vpop.f32.mrb[0].mxu0
      %v3162 = vadd.f32 %v2969, %v3161
      %3163 = vmatprep.mubr.bf16.mxu0 %v604
      %3164 = vmatmul.mubr.bf16.gmra.mrb[0].mxu0 %v603
      %v3165 = vpop.f32.mrb[0].mxu0
      %v3166 = vadd.f32 %v2973, %v3165
      %v3167 = vpop.f32.mrb[0].mxu0
      %v3168 = vadd.f32 %v2975, %v3167
      %v3169 = vpop.f32.mrb[0].mxu0
      %v3170 = vadd.f32 %v2977, %v3169
      %v3171 = vpop.f32.mrb[0].mxu0
      %v3172 = vadd.f32 %v2979, %v3171
      %3173 = vmatprep.mubr.bf16.mxu0 %v611
      %3174 = vmatmul.mubr.bf16.gmra.mrb[0].mxu0 %v610
      %v3175 = vpop.f32.mrb[0].mxu0
      %v3176 = vadd.f32 %v2983, %v3175
      %v3177 = vpop.f32.mrb[0].mxu0
      %v3178 = vadd.f32 %v2985, %v3177
      %v3179 = vpop.f32.mrb[0].mxu0
      %v3180 = vadd.f32 %v2987, %v3179
      %v3181 = vpop.f32.mrb[0].mxu0
      %v3182 = vadd.f32 %v2989, %v3181
      %3183 = vmatprep.mubr.bf16.mxu0 %v618
      %3184 = vmatmul.mubr.bf16.gmra.mrb[0].mxu0 %v617
      %v3185 = vpop.f32.mrb[0].mxu0
      %v3186 = vadd.f32 %v2993, %v3185
      %v3187 = vpop.f32.mrb[0].mxu0
      %v3188 = vadd.f32 %v2995, %v3187
      %v3189 = vpop.f32.mrb[0].mxu0
      %v3190 = vadd.f32 %v2997, %v3189
      %v3191 = vpop.f32.mrb[0].mxu0
      %v3192 = vadd.f32 %v2999, %v3191
      %3193 = vmatprep.mubr.bf16.mxu0 %v625
      %3194 = vmatmul.mubr.bf16.gmra.mrb[0].mxu0 %v624
      %v3195 = vpop.f32.mrb[0].mxu0
      %v3196 = vadd.f32 %v3003, %v3195
      %v3197 = vpop.f32.mrb[0].mxu0
      %v3198 = vadd.f32 %v3005, %v3197
      %v3199 = vpop.f32.mrb[0].mxu0
      %v3200 = vadd.f32 %v3007, %v3199
      %v3201 = vpop.f32.mrb[0].mxu0
      %v3202 = vadd.f32 %v3009, %v3201
      %3203 = vmatprep.mubr.bf16.mxu0 %v632
      %3204 = vmatmul.mubr.bf16.gmra.mrb[0].mxu0 %v631
      %v3205 = vpop.f32.mrb[0].mxu0
      %v3206 = vadd.f32 %v3013, %v3205
      %v3207 = vpop.f32.mrb[0].mxu0
      %v3208 = vadd.f32 %v3015, %v3207
      %v3209 = vpop.f32.mrb[0].mxu0
      %v3210 = vadd.f32 %v3017, %v3209
      %v3211 = vpop.f32.mrb[0].mxu0
      %v3212 = vadd.f32 %v3019, %v3211
      %3213 = vmatprep.mubr.bf16.mxu0 %v639
      %3214 = vmatmul.mubr.bf16.gmra.mrb[0].mxu0 %v638
      %v3215 = vpop.f32.mrb[0].mxu0
      %v3216 = vadd.f32 %v3023, %v3215
      %v3217 = vpop.f32.mrb[0].mxu0
      %v3218 = vadd.f32 %v3025, %v3217
      %v3219 = vpop.f32.mrb[0].mxu0
      %v3220 = vadd.f32 %v3027, %v3219
      %v3221 = vpop.f32.mrb[0].mxu0
      %v3222 = vadd.f32 %v3029, %v3221
      %3223 = vmatprep.mubr.bf16.mxu0 %v646
      %3224 = vmatmul.mubr.bf16.gmra.mrb[0].mxu0 %v645
      %v3225 = vpop.f32.mrb[0].mxu0
      %v3226 = vadd.f32 %v3033, %v3225
      %v3227 = vpop.f32.mrb[0].mxu0
      %v3228 = vadd.f32 %v3035, %v3227
      %v3229 = vpop.f32.mrb[0].mxu0
      %v3230 = vadd.f32 %v3037, %v3229
      %v3231 = vpop.f32.mrb[0].mxu0
      %v3232 = vadd.f32 %v3039, %v3231
      %3233 = vmatprep.mubr.bf16.mxu0 %v653
      %3234 = vmatmul.mubr.bf16.gmra.mrb[0].mxu0 %v652
      %v3235 = vpop.f32.mrb[0].mxu0
      %v3236 = vadd.f32 %v3043, %v3235
      %v3237 = vpop.f32.mrb[0].mxu0
      %v3238 = vadd.f32 %v3045, %v3237
      %v3239 = vpop.f32.mrb[0].mxu0
      %v3240 = vadd.f32 %v3047, %v3239
      %v3241 = vpop.f32.mrb[0].mxu0
      %v3242 = vadd.f32 %v3049, %v3241
      %3243 = vmatprep.mubr.bf16.mxu0 %v660
      %3244 = vmatmul.mubr.bf16.gmra.mrb[0].mxu0 %v659
      %v3245 = vpop.f32.mrb[0].mxu0
      %v3246 = vadd.f32 %v3053, %v3245
      %v3247 = vpop.f32.mrb[0].mxu0
      %v3248 = vadd.f32 %v3055, %v3247
      %v3249 = vpop.f32.mrb[0].mxu0
      %v3250 = vadd.f32 %v3057, %v3249
      %v3251 = vpop.f32.mrb[0].mxu0
      %v3252 = vadd.f32 %v3059, %v3251
      %3253 = vmatprep.mubr.bf16.mxu0 %v667
      %3254 = vmatmul.mubr.bf16.gmra.mrb[0].mxu0 %v666
      %v3255 = vpop.f32.mrb[0].mxu0
      %v3256 = vadd.f32 %v3063, %v3255
      %v3257 = vpop.f32.mrb[0].mxu0
      %v3258 = vadd.f32 %v3065, %v3257
      %v3259 = vpop.f32.mrb[0].mxu0
      %v3260 = vadd.f32 %v3067, %v3259
      %v3261 = vpop.f32.mrb[0].mxu0
      %v3262 = vadd.f32 %v3069, %v3261
      %3263 = vmatprep.mubr.bf16.mxu0 %v674
      %3264 = vmatmul.mubr.bf16.gmra.mrb[0].mxu0 %v673
      %v3265 = vpop.f32.mrb[0].mxu0
      %v3266 = vadd.f32 %v3073, %v3265
      %v3267 = vpop.f32.mrb[0].mxu0
      %v3268 = vadd.f32 %v3075, %v3267
      %v3269 = vpop.f32.mrb[0].mxu0
      %v3270 = vadd.f32 %v3077, %v3269
      %v3271 = vpop.f32.mrb[0].mxu0
      %v3272 = vadd.f32 %v3079, %v3271
      %3273 = vdwg.mxu0
      %3274 = vmatprep.subr.bf16.mxu0 %v1677
      %3275 = vmatpush1.bf16.msra.mxu0 %v1676
      %3276 = vmatprep.subr.bf16.mxu0 0
      %3277 = vmatpush1.bf16.msra.mxu0 0
      %3278 = vmatprep.subr.bf16.mxu0 0
      %3279 = vmatpush1.bf16.msra.mxu0 0
      %3280 = vmatprep.subr.bf16.mxu0 0
      %3281 = vmatpush1.bf16.msra.mxu0 0
      %3282 = vmatprep.subr.bf16.mxu0 0
      %3283 = vmatpush1.bf16.msra.mxu0 0
      %3284 = vmatprep.subr.bf16.mxu0 0
      %3285 = vmatpush1.bf16.msra.mxu0 0
      %3286 = vmatprep.subr.bf16.mxu0 0
      %3287 = vmatpush1.bf16.msra.mxu0 0
      %3288 = vmatprep.subr.bf16.mxu0 0
      %3289 = vmatpush1.bf16.msra.mxu0 0
      %3290 = vmatprep.subr.bf16.mxu0 0
      %3291 = vmatpush1.bf16.msra.mxu0 0
      %3292 = vmatprep.subr.bf16.mxu0 0
      %3293 = vmatpush1.bf16.msra.mxu0 0
      %3294 = vmatprep.subr.bf16.mxu0 0
      %3295 = vmatpush1.bf16.msra.mxu0 0
      %3296 = vmatprep.subr.bf16.mxu0 0
      %3297 = vmatpush1.bf16.msra.mxu0 0
      %3298 = vmatprep.subr.bf16.mxu0 0
      %3299 = vmatpush1.bf16.msra.mxu0 0
      %3300 = vmatprep.subr.bf16.mxu0 0
      %3301 = vmatpush1.bf16.msra.mxu0 0
      %3302 = vmatprep.subr.bf16.mxu0 0
      %3303 = vmatpush1.bf16.msra.mxu0 0
      %3304 = vmatprep.subr.bf16.mxu0 0
      %3305 = vmatpush1.bf16.msra.mxu0 0
      %3306 = vmatprep.mubr.bf16.mxu0 0
      %3307 = vmatmul.mubr.bf16.gmra.mrb[0].mxu0 %v1876
      %v3308 = vpop.f32.mrb[0].mxu0
      %v3309 = vadd.f32 %v3116, %v3308
      %v3310 = vpop.f32.mrb[0].mxu0
      %v3311 = vadd.f32 %v3118, %v3310
      %v3312 = vpop.f32.mrb[0].mxu0
      %v3313 = vadd.f32 %v3120, %v3312
      %v3314 = vpop.f32.mrb[0].mxu0
      %v3315 = vadd.f32 %v3122, %v3314
      %3316 = vmatprep.mubr.bf16.mxu0 0
      %3317 = vmatmul.mubr.bf16.gmra.mrb[0].mxu0 %v1879
      %v3318 = vpop.f32.mrb[0].mxu0
      %v3319 = vadd.f32 %v3126, %v3318
      %v3320 = vpop.f32.mrb[0].mxu0
      %v3321 = vadd.f32 %v3128, %v3320
      %v3322 = vpop.f32.mrb[0].mxu0
      %v3323 = vadd.f32 %v3130, %v3322
      %v3324 = vpop.f32.mrb[0].mxu0
      %v3325 = vadd.f32 %v3132, %v3324
      %3326 = vmatprep.mubr.bf16.mxu0 0
      %3327 = vmatmul.mubr.bf16.gmra.mrb[0].mxu0 %v1882
      %v3328 = vpop.f32.mrb[0].mxu0
      %v3329 = vadd.f32 %v3136, %v3328
      %v3330 = vpop.f32.mrb[0].mxu0
      %v3331 = vadd.f32 %v3138, %v3330
      %v3332 = vpop.f32.mrb[0].mxu0
      %v3333 = vadd.f32 %v3140, %v3332
      %v3334 = vpop.f32.mrb[0].mxu0
      %v3335 = vadd.f32 %v3142, %v3334
      %3336 = vmatprep.mubr.bf16.mxu0 0
      %3337 = vmatmul.mubr.bf16.gmra.mrb[0].mxu0 %v1885
      %v3338 = vpop.f32.mrb[0].mxu0
      %v3339 = vadd.f32 %v3146, %v3338
      %v3340 = vpop.f32.mrb[0].mxu0
      %v3341 = vadd.f32 %v3148, %v3340
      %v3342 = vpop.f32.mrb[0].mxu0
      %v3343 = vadd.f32 %v3150, %v3342
      %v3344 = vpop.f32.mrb[0].mxu0
      %v3345 = vadd.f32 %v3152, %v3344
      %3346 = vmatprep.mubr.bf16.mxu0 0
      %3347 = vmatmul.mubr.bf16.gmra.mrb[0].mxu0 %v1888
      %v3348 = vpop.f32.mrb[0].mxu0
      %v3349 = vadd.f32 %v3156, %v3348
      %v3350 = vpop.f32.mrb[0].mxu0
      %v3351 = vadd.f32 %v3158, %v3350
      %v3352 = vpop.f32.mrb[0].mxu0
      %v3353 = vadd.f32 %v3160, %v3352
      %v3354 = vpop.f32.mrb[0].mxu0
      %v3355 = vadd.f32 %v3162, %v3354
      %3356 = vmatprep.mubr.bf16.mxu0 0
      %3357 = vmatmul.mubr.bf16.gmra.mrb[0].mxu0 %v1891
      %v3358 = vpop.f32.mrb[0].mxu0
      %v3359 = vadd.f32 %v3166, %v3358
      %v3360 = vpop.f32.mrb[0].mxu0
      %v3361 = vadd.f32 %v3168, %v3360
      %v3362 = vpop.f32.mrb[0].mxu0
      %v3363 = vadd.f32 %v3170, %v3362
      %v3364 = vpop.f32.mrb[0].mxu0
      %v3365 = vadd.f32 %v3172, %v3364
      %3366 = vmatprep.mubr.bf16.mxu0 0
      %3367 = vmatmul.mubr.bf16.gmra.mrb[0].mxu0 %v1894
      %v3368 = vpop.f32.mrb[0].mxu0
      %v3369 = vadd.f32 %v3176, %v3368
      %v3370 = vpop.f32.mrb[0].mxu0
      %v3371 = vadd.f32 %v3178, %v3370
      %v3372 = vpop.f32.mrb[0].mxu0
      %v3373 = vadd.f32 %v3180, %v3372
      %v3374 = vpop.f32.mrb[0].mxu0
      %v3375 = vadd.f32 %v3182, %v3374
      %3376 = vmatprep.mubr.bf16.mxu0 0
      %3377 = vmatmul.mubr.bf16.gmra.mrb[0].mxu0 %v1897
      %v3378 = vpop.f32.mrb[0].mxu0
      %v3379 = vadd.f32 %v3186, %v3378
      %v3380 = vpop.f32.mrb[0].mxu0
      %v3381 = vadd.f32 %v3188, %v3380
      %v3382 = vpop.f32.mrb[0].mxu0
      %v3383 = vadd.f32 %v3190, %v3382
      %v3384 = vpop.f32.mrb[0].mxu0
      %v3385 = vadd.f32 %v3192, %v3384
      %3386 = vmatprep.mubr.bf16.mxu0 0
      %3387 = vmatmul.mubr.bf16.gmra.mrb[0].mxu0 %v1900
      %v3388 = vpop.f32.mrb[0].mxu0
      %v3389 = vadd.f32 %v3196, %v3388
      %v3390 = vpop.f32.mrb[0].mxu0
      %v3391 = vadd.f32 %v3198, %v3390
      %v3392 = vpop.f32.mrb[0].mxu0
      %v3393 = vadd.f32 %v3200, %v3392
      %v3394 = vpop.f32.mrb[0].mxu0
      %v3395 = vadd.f32 %v3202, %v3394
      %3396 = vmatprep.mubr.bf16.mxu0 0
      %3397 = vmatmul.mubr.bf16.gmra.mrb[0].mxu0 %v1903
      %v3398 = vpop.f32.mrb[0].mxu0
      %v3399 = vadd.f32 %v3206, %v3398
      %v3400 = vpop.f32.mrb[0].mxu0
      %v3401 = vadd.f32 %v3208, %v3400
      %v3402 = vpop.f32.mrb[0].mxu0
      %v3403 = vadd.f32 %v3210, %v3402
      %v3404 = vpop.f32.mrb[0].mxu0
      %v3405 = vadd.f32 %v3212, %v3404
      %3406 = vmatprep.mubr.bf16.mxu0 0
      %3407 = vmatmul.mubr.bf16.gmra.mrb[0].mxu0 %v1906
      %v3408 = vpop.f32.mrb[0].mxu0
      %v3409 = vadd.f32 %v3216, %v3408
      %v3410 = vpop.f32.mrb[0].mxu0
      %v3411 = vadd.f32 %v3218, %v3410
      %v3412 = vpop.f32.mrb[0].mxu0
      %v3413 = vadd.f32 %v3220, %v3412
      %v3414 = vpop.f32.mrb[0].mxu0
      %v3415 = vadd.f32 %v3222, %v3414
      %3416 = vmatprep.mubr.bf16.mxu0 0
      %3417 = vmatmul.mubr.bf16.gmra.mrb[0].mxu0 %v1909
      %v3418 = vpop.f32.mrb[0].mxu0
      %v3419 = vadd.f32 %v3226, %v3418
      %v3420 = vpop.f32.mrb[0].mxu0
      %v3421 = vadd.f32 %v3228, %v3420
      %v3422 = vpop.f32.mrb[0].mxu0
      %v3423 = vadd.f32 %v3230, %v3422
      %v3424 = vpop.f32.mrb[0].mxu0
      %v3425 = vadd.f32 %v3232, %v3424
      %3426 = vmatprep.mubr.bf16.mxu0 0
      %3427 = vmatmul.mubr.bf16.gmra.mrb[0].mxu0 %v1912
      %v3428 = vpop.f32.mrb[0].mxu0
      %v3429 = vadd.f32 %v3236, %v3428
      %v3430 = vpop.f32.mrb[0].mxu0
      %v3431 = vadd.f32 %v3238, %v3430
      %v3432 = vpop.f32.mrb[0].mxu0
      %v3433 = vadd.f32 %v3240, %v3432
      %v3434 = vpop.f32.mrb[0].mxu0
      %v3435 = vadd.f32 %v3242, %v3434
      %3436 = vmatprep.mubr.bf16.mxu0 0
      %3437 = vmatmul.mubr.bf16.gmra.mrb[0].mxu0 %v1915
      %v3438 = vpop.f32.mrb[0].mxu0
      %v3439 = vadd.f32 %v3246, %v3438
      %v3440 = vpop.f32.mrb[0].mxu0
      %v3441 = vadd.f32 %v3248, %v3440
      %v3442 = vpop.f32.mrb[0].mxu0
      %v3443 = vadd.f32 %v3250, %v3442
      %v3444 = vpop.f32.mrb[0].mxu0
      %v3445 = vadd.f32 %v3252, %v3444
      %3446 = vmatprep.mubr.bf16.mxu0 0
      %3447 = vmatmul.mubr.bf16.gmra.mrb[0].mxu0 %v1918
      %v3448 = vpop.f32.mrb[0].mxu0
      %v3449 = vadd.f32 %v3256, %v3448
      %v3450 = vpop.f32.mrb[0].mxu0
      %v3451 = vadd.f32 %v3258, %v3450
      %v3452 = vpop.f32.mrb[0].mxu0
      %v3453 = vadd.f32 %v3260, %v3452
      %v3454 = vpop.f32.mrb[0].mxu0
      %v3455 = vadd.f32 %v3262, %v3454
      %3456 = vmatprep.mubr.bf16.mxu0 0
      %3457 = vmatmul.mubr.bf16.gmra.mrb[0].mxu0 %v1921
      %v3458 = vpop.f32.mrb[0].mxu0
      %v3459 = vadd.f32 %v3266, %v3458
      %v3460 = vpop.f32.mrb[0].mxu0
      %v3461 = vadd.f32 %v3268, %v3460
      %v3462 = vpop.f32.mrb[0].mxu0
      %v3463 = vadd.f32 %v3270, %v3462
      %v3464 = vpop.f32.mrb[0].mxu0
      %v3465 = vadd.f32 %v3272, %v3464
      %3466 = vdwg.mxu0
      %v3467 = vmax.f32 %v2537, 0.0
      %v3468 = vmax.f32 %v2539, 0.0
      %v3469 = vmax.f32 %v3309, 0.0
      %v3470 = vmax.f32 %v3311, 0.0
      %v3471 = vmax.f32 %v2541, 0.0
      %v3472 = vmax.f32 %v2543, 0.0
      %v3473 = vmax.f32 %v3313, 0.0
      %v3474 = vmax.f32 %v3315, 0.0
      %v3475 = vmax.f32 %v2547, 0.0
      %v3476 = vmax.f32 %v2549, 0.0
      %v3477 = vmax.f32 %v3319, 0.0
      %v3478 = vmax.f32 %v3321, 0.0
      %v3479 = vmax.f32 %v2551, 0.0
      %v3480 = vmax.f32 %v2553, 0.0
      %v3481 = vmax.f32 %v3323, 0.0
      %v3482 = vmax.f32 %v3325, 0.0
      %v3483 = vmax.f32 %v2557, 0.0
      %v3484 = vmax.f32 %v2559, 0.0
      %v3485 = vmax.f32 %v3329, 0.0
      %v3486 = vmax.f32 %v3331, 0.0
      %v3487 = vmax.f32 %v2561, 0.0
      %v3488 = vmax.f32 %v2563, 0.0
      %v3489 = vmax.f32 %v3333, 0.0
      %v3490 = vmax.f32 %v3335, 0.0
      %v3491 = vmax.f32 %v2567, 0.0
      %v3492 = vmax.f32 %v2569, 0.0
      %v3493 = vmax.f32 %v3339, 0.0
      %v3494 = vmax.f32 %v3341, 0.0
      %v3495 = vmax.f32 %v2571, 0.0
      %v3496 = vmax.f32 %v2573, 0.0
      %v3497 = vmax.f32 %v3343, 0.0
      %v3498 = vmax.f32 %v3345, 0.0
      %v3499 = vmax.f32 %v2577, 0.0
      %v3500 = vmax.f32 %v2579, 0.0
      %v3501 = vmax.f32 %v3349, 0.0
      %v3502 = vmax.f32 %v3351, 0.0
      %v3503 = vmax.f32 %v2581, 0.0
      %v3504 = vmax.f32 %v2583, 0.0
      %v3505 = vmax.f32 %v3353, 0.0
      %v3506 = vmax.f32 %v3355, 0.0
      %v3507 = vmax.f32 %v2587, 0.0
      %v3508 = vmax.f32 %v2589, 0.0
      %v3509 = vmax.f32 %v3359, 0.0
      %v3510 = vmax.f32 %v3361, 0.0
      %v3511 = vmax.f32 %v2591, 0.0
      %v3512 = vmax.f32 %v2593, 0.0
      %v3513 = vmax.f32 %v3363, 0.0
      %v3514 = vmax.f32 %v3365, 0.0
      %v3515 = vmax.f32 %v2597, 0.0
      %v3516 = vmax.f32 %v2599, 0.0
      %v3517 = vmax.f32 %v3369, 0.0
      %v3518 = vmax.f32 %v3371, 0.0
      %v3519 = vmax.f32 %v2601, 0.0
      %v3520 = vmax.f32 %v2603, 0.0
      %v3521 = vmax.f32 %v3373, 0.0
      %v3522 = vmax.f32 %v3375, 0.0
      %v3523 = vmax.f32 %v2607, 0.0
      %v3524 = vmax.f32 %v2609, 0.0
      %v3525 = vmax.f32 %v3379, 0.0
      %v3526 = vmax.f32 %v3381, 0.0
      %v3527 = vmax.f32 %v2611, 0.0
      %v3528 = vmax.f32 %v2613, 0.0
      %v3529 = vmax.f32 %v3383, 0.0
      %v3530 = vmax.f32 %v3385, 0.0
      %v3531 = vmax.f32 %v2617, 0.0
      %v3532 = vmax.f32 %v2619, 0.0
      %v3533 = vmax.f32 %v3389, 0.0
      %v3534 = vmax.f32 %v3391, 0.0
      %v3535 = vmax.f32 %v2621, 0.0
      %v3536 = vmax.f32 %v2623, 0.0
      %v3537 = vmax.f32 %v3393, 0.0
      %v3538 = vmax.f32 %v3395, 0.0
      %v3539 = vmax.f32 %v2627, 0.0
      %v3540 = vmax.f32 %v2629, 0.0
      %v3541 = vmax.f32 %v3399, 0.0
      %v3542 = vmax.f32 %v3401, 0.0
      %v3543 = vmax.f32 %v2631, 0.0
      %v3544 = vmax.f32 %v2633, 0.0
      %v3545 = vmax.f32 %v3403, 0.0
      %v3546 = vmax.f32 %v3405, 0.0
      %v3547 = vmax.f32 %v2637, 0.0
      %v3548 = vmax.f32 %v2639, 0.0
      %v3549 = vmax.f32 %v3409, 0.0
      %v3550 = vmax.f32 %v3411, 0.0
      %v3551 = vmax.f32 %v2641, 0.0
      %v3552 = vmax.f32 %v2643, 0.0
      %v3553 = vmax.f32 %v3413, 0.0
      %v3554 = vmax.f32 %v3415, 0.0
      %v3555 = vmax.f32 %v2647, 0.0
      %v3556 = vmax.f32 %v2649, 0.0
      %v3557 = vmax.f32 %v3419, 0.0
      %v3558 = vmax.f32 %v3421, 0.0
      %v3559 = vmax.f32 %v2651, 0.0
      %v3560 = vmax.f32 %v2653, 0.0
      %v3561 = vmax.f32 %v3423, 0.0
      %v3562 = vmax.f32 %v3425, 0.0
      %v3563 = vmax.f32 %v2657, 0.0
      %v3564 = vmax.f32 %v2659, 0.0
      %v3565 = vmax.f32 %v3429, 0.0
      %v3566 = vmax.f32 %v3431, 0.0
      %v3567 = vmax.f32 %v2661, 0.0
      %v3568 = vmax.f32 %v2663, 0.0
      %v3569 = vmax.f32 %v3433, 0.0
      %v3570 = vmax.f32 %v3435, 0.0
      %v3571 = vmax.f32 %v2667, 0.0
      %v3572 = vmax.f32 %v2669, 0.0
      %v3573 = vmax.f32 %v3439, 0.0
      %v3574 = vmax.f32 %v3441, 0.0
      %v3575 = vmax.f32 %v2671, 0.0
      %v3576 = vmax.f32 %v2673, 0.0
      %v3577 = vmax.f32 %v3443, 0.0
      %v3578 = vmax.f32 %v3445, 0.0
      %v3579 = vmax.f32 %v2677, 0.0
      %v3580 = vmax.f32 %v2679, 0.0
      %v3581 = vmax.f32 %v3449, 0.0
      %v3582 = vmax.f32 %v3451, 0.0
      %v3583 = vmax.f32 %v2681, 0.0
      %v3584 = vmax.f32 %v2683, 0.0
      %v3585 = vmax.f32 %v3453, 0.0
      %v3586 = vmax.f32 %v3455, 0.0
      %v3587 = vmax.f32 %v2687, 0.0
      %v3588 = vmax.f32 %v2689, 0.0
      %v3589 = vmax.f32 %v3459, 0.0
      %v3590 = vmax.f32 %v3461, 0.0
      %v3591 = vmax.f32 %v2691, 0.0
      %v3592 = vmax.f32 %v2693, 0.0
      %v3593 = vmax.f32 %v3463, 0.0
      %v3594 = vmax.f32 %v3465, 0.0
      %v3595 = vpack.c.bf16 %v3471, %v3467
      %v3596 = vpack.c.bf16 %v3472, %v3468
      %v3597 = vpack.c.bf16 %v3473, %v3469
      %v3598 = vpack.c.bf16 %v3474, %v3470
      %v3599 = vpack.c.bf16 %v3479, %v3475
      %v3600 = vpack.c.bf16 %v3480, %v3476
      %v3601 = vpack.c.bf16 %v3481, %v3477
      %v3602 = vpack.c.bf16 %v3482, %v3478
      %v3603 = vpack.c.bf16 %v3487, %v3483
      %v3604 = vpack.c.bf16 %v3488, %v3484
      %v3605 = vpack.c.bf16 %v3489, %v3485
      %v3606 = vpack.c.bf16 %v3490, %v3486
      %v3607 = vpack.c.bf16 %v3495, %v3491
      %v3608 = vpack.c.bf16 %v3496, %v3492
      %v3609 = vpack.c.bf16 %v3497, %v3493
      %v3610 = vpack.c.bf16 %v3498, %v3494
      %v3611 = vpack.c.bf16 %v3503, %v3499
      %v3612 = vpack.c.bf16 %v3504, %v3500
      %v3613 = vpack.c.bf16 %v3505, %v3501
      %v3614 = vpack.c.bf16 %v3506, %v3502
      %v3615 = vpack.c.bf16 %v3511, %v3507
      %v3616 = vpack.c.bf16 %v3512, %v3508
      %v3617 = vpack.c.bf16 %v3513, %v3509
      %v3618 = vpack.c.bf16 %v3514, %v3510
      %v3619 = vpack.c.bf16 %v3519, %v3515
      %v3620 = vpack.c.bf16 %v3520, %v3516
      %v3621 = vpack.c.bf16 %v3521, %v3517
      %v3622 = vpack.c.bf16 %v3522, %v3518
      %v3623 = vpack.c.bf16 %v3527, %v3523
      %v3624 = vpack.c.bf16 %v3528, %v3524
      %v3625 = vpack.c.bf16 %v3529, %v3525
      %v3626 = vpack.c.bf16 %v3530, %v3526
      %v3627 = vpack.c.bf16 %v3535, %v3531
      %v3628 = vpack.c.bf16 %v3536, %v3532
      %v3629 = vpack.c.bf16 %v3537, %v3533
      %v3630 = vpack.c.bf16 %v3538, %v3534
      %v3631 = vpack.c.bf16 %v3543, %v3539
      %v3632 = vpack.c.bf16 %v3544, %v3540
      %v3633 = vpack.c.bf16 %v3545, %v3541
      %v3634 = vpack.c.bf16 %v3546, %v3542
      %v3635 = vpack.c.bf16 %v3551, %v3547
      %v3636 = vpack.c.bf16 %v3552, %v3548
      %v3637 = vpack.c.bf16 %v3553, %v3549
      %v3638 = vpack.c.bf16 %v3554, %v3550
      %v3639 = vpack.c.bf16 %v3559, %v3555
      %v3640 = vpack.c.bf16 %v3560, %v3556
      %v3641 = vpack.c.bf16 %v3561, %v3557
      %v3642 = vpack.c.bf16 %v3562, %v3558
      %v3643 = vpack.c.bf16 %v3567, %v3563
      %v3644 = vpack.c.bf16 %v3568, %v3564
      %v3645 = vpack.c.bf16 %v3569, %v3565
      %v3646 = vpack.c.bf16 %v3570, %v3566
      %v3647 = vpack.c.bf16 %v3575, %v3571
      %v3648 = vpack.c.bf16 %v3576, %v3572
      %v3649 = vpack.c.bf16 %v3577, %v3573
      %v3650 = vpack.c.bf16 %v3578, %v3574
      %v3651 = vpack.c.bf16 %v3583, %v3579
      %v3652 = vpack.c.bf16 %v3584, %v3580
      %v3653 = vpack.c.bf16 %v3585, %v3581
      %v3654 = vpack.c.bf16 %v3586, %v3582
      %v3655 = vpack.c.bf16 %v3591, %v3587
      %v3656 = vpack.c.bf16 %v3592, %v3588
      %v3657 = vpack.c.bf16 %v3593, %v3589
      %v3658 = vpack.c.bf16 %v3594, %v3590
      %v3659 = vld [vmem:[%s3] sm:$0xff]
      %v3660 = vld [vmem:[%s3 + $0x8] sm:$0xff]
      %v3661 = vld [vmem:[%s3 + $0x10] sm:$0xff]
      %v3662 = vld [vmem:[%s3 + $0x18] sm:$0xff]
      %v3663 = vld [vmem:[%s3 + $0x20] sm:$0xff]
      %v3664 = vld [vmem:[%s3 + $0x28] sm:$0xff]
      %v3665 = vld [vmem:[%s3 + $0x30] sm:$0xff]
      %v3666 = vld [vmem:[%s3 + $0x38] sm:$0xff]
      %v3667 = vld [vmem:[%s3 + $0x40] sm:$0xff]
      %v3668 = vld [vmem:[%s3 + $0x48] sm:$0xff]
      %v3669 = vld [vmem:[%s3 + $0x50] sm:$0xff]
      %v3670 = vld [vmem:[%s3 + $0x58] sm:$0xff]
      %v3671 = vld [vmem:[%s3 + $0x60] sm:$0xff]
      %v3672 = vld [vmem:[%s3 + $0x68] sm:$0xff]
      %v3673 = vld [vmem:[%s3 + $0x70] sm:$0xff]
      %v3674 = vld [vmem:[%s3 + $0x78] sm:$0xff]
      %v3675 = vld [vmem:[%s3 + $0x80] sm:$0xff]
      %v3676 = vld [vmem:[%s3 + $0x88] sm:$0xff]
      %v3677 = vld [vmem:[%s3 + $0x90] sm:$0xff]
      %v3678 = vld [vmem:[%s3 + $0x98] sm:$0xff]
      %v3679 = vld [vmem:[%s3 + $0xa0] sm:$0xff]
      %v3680 = vld [vmem:[%s3 + $0xa8] sm:$0xff]
      %v3681 = vld [vmem:[%s3 + $0xb0] sm:$0xff]
      %v3682 = vld [vmem:[%s3 + $0xb8] sm:$0xff]
      %v3683 = vld [vmem:[%s3 + $0xc0] sm:$0xff]
      %v3684 = vld [vmem:[%s3 + $0xc8] sm:$0xff]
      %v3685 = vld [vmem:[%s3 + $0xd0] sm:$0xff]
      %v3686 = vld [vmem:[%s3 + $0xd8] sm:$0xff]
      %v3687 = vld [vmem:[%s3 + $0xe0] sm:$0xff]
      %v3688 = vld [vmem:[%s3 + $0xe8] sm:$0xff]
      %v3689 = vld [vmem:[%s3 + $0xf0] sm:$0xff]
      %v3690 = vld [vmem:[%s3 + $0xf8] sm:$0xff]
      %v3691 = vld [vmem:[%s3 + $0x100] sm:$0xff]
      %v3692 = vld [vmem:[%s3 + $0x108] sm:$0xff]
      %v3693 = vld [vmem:[%s3 + $0x110] sm:$0xff]
      %v3694 = vld [vmem:[%s3 + $0x118] sm:$0xff]
      %v3695 = vld [vmem:[%s3 + $0x120] sm:$0xff]
      %v3696 = vld [vmem:[%s3 + $0x128] sm:$0xff]
      %v3697 = vld [vmem:[%s3 + $0x130] sm:$0xff]
      %v3698 = vld [vmem:[%s3 + $0x138] sm:$0xff]
      %v3699 = vld [vmem:[%s3 + $0x140] sm:$0xff]
      %v3700 = vld [vmem:[%s3 + $0x148] sm:$0xff]
      %v3701 = vld [vmem:[%s3 + $0x150] sm:$0xff]
      %v3702 = vld [vmem:[%s3 + $0x158] sm:$0xff]
      %v3703 = vld [vmem:[%s3 + $0x160] sm:$0xff]
      %v3704 = vld [vmem:[%s3 + $0x168] sm:$0xff]
      %v3705 = vld [vmem:[%s3 + $0x170] sm:$0xff]
      %v3706 = vld [vmem:[%s3 + $0x178] sm:$0xff]
      %v3707 = vld [vmem:[%s3 + $0x180] sm:$0xff]
      %v3708 = vld [vmem:[%s3 + $0x188] sm:$0xff]
      %v3709 = vld [vmem:[%s3 + $0x190] sm:$0xff]
      %v3710 = vld [vmem:[%s3 + $0x198] sm:$0xff]
      %v3711 = vld [vmem:[%s3 + $0x1a0] sm:$0xff]
      %v3712 = vld [vmem:[%s3 + $0x1a8] sm:$0xff]
      %v3713 = vld [vmem:[%s3 + $0x1b0] sm:$0xff]
      %v3714 = vld [vmem:[%s3 + $0x1b8] sm:$0xff]
      %v3715 = vld [vmem:[%s3 + $0x1c0] sm:$0xff]
      %v3716 = vld [vmem:[%s3 + $0x1c8] sm:$0xff]
      %v3717 = vld [vmem:[%s3 + $0x1d0] sm:$0xff]
      %v3718 = vld [vmem:[%s3 + $0x1d8] sm:$0xff]
      %v3719 = vld [vmem:[%s3 + $0x1e0] sm:$0xff]
      %v3720 = vld [vmem:[%s3 + $0x1e8] sm:$0xff]
      %v3721 = vld [vmem:[%s3 + $0x1f0] sm:$0xff]
      %v3722 = vld [vmem:[%s3 + $0x1f8] sm:$0xff]
      %v3723 = vld [vmem:[%s4] sm:$0x3]
      %v3725 = vlaneseq
      %v3726 = vshrl.u32 %v3725, 7
      %v3727 = vsub.s32 0, %v3726
      %v3728 = vrot.slane %v3723, %v3727
      %v3729 = vlaneseq
      %v3730 = vshrl.u32 %v3729, 7
      %v3731 = vsub.s32 1, %v3730
      %v3732 = vrot.slane %v3723, %v3731
      %v3799 = vunpack.c.l.b16 %v3659
      %v3800 = vunpack.c.h.b16 %v3659
      %v3801 = vunpack.c.l.b16 %v3660
      %v3802 = vunpack.c.h.b16 %v3660
      %v3803 = vunpack.c.l.b16 %v3661
      %v3804 = vunpack.c.h.b16 %v3661
      %v3805 = vunpack.c.l.b16 %v3662
      %v3806 = vunpack.c.h.b16 %v3662
      %v3807 = vunpack.c.l.b16 %v3663
      %v3808 = vunpack.c.h.b16 %v3663
      %v3809 = vunpack.c.l.b16 %v3664
      %v3810 = vunpack.c.h.b16 %v3664
      %v3811 = vunpack.c.l.b16 %v3665
      %v3812 = vunpack.c.h.b16 %v3665
      %v3813 = vunpack.c.l.b16 %v3666
      %v3814 = vunpack.c.h.b16 %v3666
      %v3815 = vunpack.c.l.b16 %v3667
      %v3816 = vunpack.c.h.b16 %v3667
      %v3817 = vunpack.c.l.b16 %v3668
      %v3818 = vunpack.c.h.b16 %v3668
      %v3819 = vunpack.c.l.b16 %v3669
      %v3820 = vunpack.c.h.b16 %v3669
      %v3821 = vunpack.c.l.b16 %v3670
      %v3822 = vunpack.c.h.b16 %v3670
      %v3823 = vunpack.c.l.b16 %v3671
      %v3824 = vunpack.c.h.b16 %v3671
      %v3825 = vunpack.c.l.b16 %v3672
      %v3826 = vunpack.c.h.b16 %v3672
      %v3827 = vunpack.c.l.b16 %v3673
      %v3828 = vunpack.c.h.b16 %v3673
      %v3829 = vunpack.c.l.b16 %v3674
      %v3830 = vunpack.c.h.b16 %v3674
      %v3831 = vunpack.c.l.b16 %v3675
      %v3832 = vunpack.c.h.b16 %v3675
      %v3833 = vunpack.c.l.b16 %v3676
      %v3834 = vunpack.c.h.b16 %v3676
      %v3835 = vunpack.c.l.b16 %v3677
      %v3836 = vunpack.c.h.b16 %v3677
      %v3837 = vunpack.c.l.b16 %v3678
      %v3838 = vunpack.c.h.b16 %v3678
      %v3839 = vunpack.c.l.b16 %v3679
      %v3840 = vunpack.c.h.b16 %v3679
      %v3841 = vunpack.c.l.b16 %v3680
      %v3842 = vunpack.c.h.b16 %v3680
      %v3843 = vunpack.c.l.b16 %v3681
      %v3844 = vunpack.c.h.b16 %v3681
      %v3845 = vunpack.c.l.b16 %v3682
      %v3846 = vunpack.c.h.b16 %v3682
      %v3847 = vunpack.c.l.b16 %v3683
      %v3848 = vunpack.c.h.b16 %v3683
      %v3849 = vunpack.c.l.b16 %v3684
      %v3850 = vunpack.c.h.b16 %v3684
      %v3851 = vunpack.c.l.b16 %v3685
      %v3852 = vunpack.c.h.b16 %v3685
      %v3853 = vunpack.c.l.b16 %v3686
      %v3854 = vunpack.c.h.b16 %v3686
      %v3855 = vunpack.c.l.b16 %v3687
      %v3856 = vunpack.c.h.b16 %v3687
      %v3857 = vunpack.c.l.b16 %v3688
      %v3858 = vunpack.c.h.b16 %v3688
      %v3859 = vunpack.c.l.b16 %v3689
      %v3860 = vunpack.c.h.b16 %v3689
      %v3861 = vunpack.c.l.b16 %v3690
      %v3862 = vunpack.c.h.b16 %v3690
      %v3863 = vunpack.c.l.b16 %v3691
      %v3864 = vunpack.c.h.b16 %v3691
      %v3865 = vunpack.c.l.b16 %v3692
      %v3866 = vunpack.c.h.b16 %v3692
      %v3867 = vunpack.c.l.b16 %v3693
      %v3868 = vunpack.c.h.b16 %v3693
      %v3869 = vunpack.c.l.b16 %v3694
      %v3870 = vunpack.c.h.b16 %v3694
      %v3871 = vunpack.c.l.b16 %v3695
      %v3872 = vunpack.c.h.b16 %v3695
      %v3873 = vunpack.c.l.b16 %v3696
      %v3874 = vunpack.c.h.b16 %v3696
      %v3875 = vunpack.c.l.b16 %v3697
      %v3876 = vunpack.c.h.b16 %v3697
      %v3877 = vunpack.c.l.b16 %v3698
      %v3878 = vunpack.c.h.b16 %v3698
      %v3879 = vunpack.c.l.b16 %v3699
      %v3880 = vunpack.c.h.b16 %v3699
      %v3881 = vunpack.c.l.b16 %v3700
      %v3882 = vunpack.c.h.b16 %v3700
      %v3883 = vunpack.c.l.b16 %v3701
      %v3884 = vunpack.c.h.b16 %v3701
      %v3885 = vunpack.c.l.b16 %v3702
      %v3886 = vunpack.c.h.b16 %v3702
      %v3887 = vunpack.c.l.b16 %v3703
      %v3888 = vunpack.c.h.b16 %v3703
      %v3889 = vunpack.c.l.b16 %v3704
      %v3890 = vunpack.c.h.b16 %v3704
      %v3891 = vunpack.c.l.b16 %v3705
      %v3892 = vunpack.c.h.b16 %v3705
      %v3893 = vunpack.c.l.b16 %v3706
      %v3894 = vunpack.c.h.b16 %v3706
      %v3895 = vunpack.c.l.b16 %v3707
      %v3896 = vunpack.c.h.b16 %v3707
      %v3897 = vunpack.c.l.b16 %v3708
      %v3898 = vunpack.c.h.b16 %v3708
      %v3899 = vunpack.c.l.b16 %v3709
      %v3900 = vunpack.c.h.b16 %v3709
      %v3901 = vunpack.c.l.b16 %v3710
      %v3902 = vunpack.c.h.b16 %v3710
      %v3903 = vunpack.c.l.b16 %v3711
      %v3904 = vunpack.c.h.b16 %v3711
      %v3905 = vunpack.c.l.b16 %v3712
      %v3906 = vunpack.c.h.b16 %v3712
      %v3907 = vunpack.c.l.b16 %v3713
      %v3908 = vunpack.c.h.b16 %v3713
      %v3909 = vunpack.c.l.b16 %v3714
      %v3910 = vunpack.c.h.b16 %v3714
      %v3911 = vunpack.c.l.b16 %v3715
      %v3912 = vunpack.c.h.b16 %v3715
      %v3913 = vunpack.c.l.b16 %v3716
      %v3914 = vunpack.c.h.b16 %v3716
      %v3915 = vunpack.c.l.b16 %v3717
      %v3916 = vunpack.c.h.b16 %v3717
      %v3917 = vunpack.c.l.b16 %v3718
      %v3918 = vunpack.c.h.b16 %v3718
      %v3919 = vunpack.c.l.b16 %v3719
      %v3920 = vunpack.c.h.b16 %v3719
      %v3921 = vunpack.c.l.b16 %v3720
      %v3922 = vunpack.c.h.b16 %v3720
      %v3923 = vunpack.c.l.b16 %v3721
      %v3924 = vunpack.c.h.b16 %v3721
      %v3925 = vunpack.c.l.b16 %v3722
      %v3926 = vunpack.c.h.b16 %v3722
      %v3927 = vpack.c.b16 %v3801, %v3799
      %v3928 = vpack.c.b16 %v3802, %v3800
      %v3929 = vpack.c.b16 %v3805, %v3803
      %v3930 = vpack.c.b16 %v3806, %v3804
      %v3931 = vpack.c.b16 %v3809, %v3807
      %v3932 = vpack.c.b16 %v3810, %v3808
      %v3933 = vpack.c.b16 %v3813, %v3811
      %v3934 = vpack.c.b16 %v3814, %v3812
      %v3935 = vpack.c.b16 %v3817, %v3815
      %v3936 = vpack.c.b16 %v3818, %v3816
      %v3937 = vpack.c.b16 %v3821, %v3819
      %v3938 = vpack.c.b16 %v3822, %v3820
      %v3939 = vpack.c.b16 %v3825, %v3823
      %v3940 = vpack.c.b16 %v3826, %v3824
      %v3941 = vpack.c.b16 %v3829, %v3827
      %v3942 = vpack.c.b16 %v3830, %v3828
      %v3943 = vpack.c.b16 %v3833, %v3831
      %v3944 = vpack.c.b16 %v3834, %v3832
      %v3945 = vpack.c.b16 %v3837, %v3835
      %v3946 = vpack.c.b16 %v3838, %v3836
      %v3947 = vpack.c.b16 %v3841, %v3839
      %v3948 = vpack.c.b16 %v3842, %v3840
      %v3949 = vpack.c.b16 %v3845, %v3843
      %v3950 = vpack.c.b16 %v3846, %v3844
      %v3951 = vpack.c.b16 %v3849, %v3847
      %v3952 = vpack.c.b16 %v3850, %v3848
      %v3953 = vpack.c.b16 %v3853, %v3851
      %v3954 = vpack.c.b16 %v3854, %v3852
      %v3955 = vpack.c.b16 %v3857, %v3855
      %v3956 = vpack.c.b16 %v3858, %v3856
      %v3957 = vpack.c.b16 %v3861, %v3859
      %v3958 = vpack.c.b16 %v3862, %v3860
      %v3959 = vpack.c.b16 %v3865, %v3863
      %v3960 = vpack.c.b16 %v3866, %v3864
      %v3961 = vpack.c.b16 %v3869, %v3867
      %v3962 = vpack.c.b16 %v3870, %v3868
      %v3963 = vpack.c.b16 %v3873, %v3871
      %v3964 = vpack.c.b16 %v3874, %v3872
      %v3965 = vpack.c.b16 %v3877, %v3875
      %v3966 = vpack.c.b16 %v3878, %v3876
      %v3967 = vpack.c.b16 %v3881, %v3879
      %v3968 = vpack.c.b16 %v3882, %v3880
      %v3969 = vpack.c.b16 %v3885, %v3883
      %v3970 = vpack.c.b16 %v3886, %v3884
      %v3971 = vpack.c.b16 %v3889, %v3887
      %v3972 = vpack.c.b16 %v3890, %v3888
      %v3973 = vpack.c.b16 %v3893, %v3891
      %v3974 = vpack.c.b16 %v3894, %v3892
      %v3975 = vpack.c.b16 %v3897, %v3895
      %v3976 = vpack.c.b16 %v3898, %v3896
      %v3977 = vpack.c.b16 %v3901, %v3899
      %v3978 = vpack.c.b16 %v3902, %v3900
      %v3979 = vpack.c.b16 %v3905, %v3903
      %v3980 = vpack.c.b16 %v3906, %v3904
      %v3981 = vpack.c.b16 %v3909, %v3907
      %v3982 = vpack.c.b16 %v3910, %v3908
      %v3983 = vpack.c.b16 %v3913, %v3911
      %v3984 = vpack.c.b16 %v3914, %v3912
      %v3985 = vpack.c.b16 %v3917, %v3915
      %v3986 = vpack.c.b16 %v3918, %v3916
      %v3987 = vpack.c.b16 %v3921, %v3919
      %v3988 = vpack.c.b16 %v3922, %v3920
      %v3989 = vpack.c.b16 %v3925, %v3923
      %v3990 = vpack.c.b16 %v3926, %v3924
      %4055 = vmatprep.subr.bf16.mxu0 %v3928
      %4056 = vmatpush1.bf16.msra.mxu0 %v3927
      %4057 = vmatprep.subr.bf16.mxu0 %v3930
      %4058 = vmatpush1.bf16.msra.mxu0 %v3929
      %4059 = vmatprep.subr.bf16.mxu0 %v3932
      %4060 = vmatpush1.bf16.msra.mxu0 %v3931
      %4061 = vmatprep.subr.bf16.mxu0 %v3934
      %4062 = vmatpush1.bf16.msra.mxu0 %v3933
      %4063 = vmatprep.subr.bf16.mxu0 %v3936
      %4064 = vmatpush1.bf16.msra.mxu0 %v3935
      %4065 = vmatprep.subr.bf16.mxu0 %v3938
      %4066 = vmatpush1.bf16.msra.mxu0 %v3937
      %4067 = vmatprep.subr.bf16.mxu0 %v3940
      %4068 = vmatpush1.bf16.msra.mxu0 %v3939
      %4069 = vmatprep.subr.bf16.mxu0 %v3942
      %4070 = vmatpush1.bf16.msra.mxu0 %v3941
      %4071 = vmatprep.subr.bf16.mxu0 %v3944
      %4072 = vmatpush1.bf16.msra.mxu0 %v3943
      %4073 = vmatprep.subr.bf16.mxu0 %v3946
      %4074 = vmatpush1.bf16.msra.mxu0 %v3945
      %4075 = vmatprep.subr.bf16.mxu0 %v3948
      %4076 = vmatpush1.bf16.msra.mxu0 %v3947
      %4077 = vmatprep.subr.bf16.mxu0 %v3950
      %4078 = vmatpush1.bf16.msra.mxu0 %v3949
      %4079 = vmatprep.subr.bf16.mxu0 %v3952
      %4080 = vmatpush1.bf16.msra.mxu0 %v3951
      %4081 = vmatprep.subr.bf16.mxu0 %v3954
      %4082 = vmatpush1.bf16.msra.mxu0 %v3953
      %4083 = vmatprep.subr.bf16.mxu0 %v3956
      %4084 = vmatpush1.bf16.msra.mxu0 %v3955
      %4085 = vmatprep.subr.bf16.mxu0 %v3958
      %4086 = vmatpush1.bf16.msra.mxu0 %v3957
      %4087 = vmatprep.mubr.bf16.mxu0 %v3596
      %4088 = vmatmul.mubr.bf16.gmra.mrb[0].mxu0 %v3595
      %v4089 = vpop.f32.mrb[0].mxu0
      %v4090 = vadd.f32 %v3728, %v4089
      %v4091 = vpop.f32.mrb[0].mxu0
      %v4092 = vadd.f32 %v3732, %v4091
      %v4093 = vpop.f32.mrb[0].mxu0
      %v4094 = vadd.f32 %v3728, %v4093
      %v4095 = vpop.f32.mrb[0].mxu0
      %v4096 = vadd.f32 %v3732, %v4095
      %4097 = vmatprep.mubr.bf16.mxu0 %v3600
      %4098 = vmatmul.mubr.bf16.gmra.mrb[0].mxu0 %v3599
      %v4099 = vpop.f32.mrb[0].mxu0
      %v4100 = vadd.f32 %v3728, %v4099
      %v4101 = vpop.f32.mrb[0].mxu0
      %v4102 = vadd.f32 %v3732, %v4101
      %v4103 = vpop.f32.mrb[0].mxu0
      %v4104 = vadd.f32 %v3728, %v4103
      %v4105 = vpop.f32.mrb[0].mxu0
      %v4106 = vadd.f32 %v3732, %v4105
      %4107 = vmatprep.mubr.bf16.mxu0 %v3604
      %4108 = vmatmul.mubr.bf16.gmra.mrb[0].mxu0 %v3603
      %v4109 = vpop.f32.mrb[0].mxu0
      %v4110 = vadd.f32 %v3728, %v4109
      %v4111 = vpop.f32.mrb[0].mxu0
      %v4112 = vadd.f32 %v3732, %v4111
      %v4113 = vpop.f32.mrb[0].mxu0
      %v4114 = vadd.f32 %v3728, %v4113
      %v4115 = vpop.f32.mrb[0].mxu0
      %v4116 = vadd.f32 %v3732, %v4115
      %4117 = vmatprep.mubr.bf16.mxu0 %v3608
      %4118 = vmatmul.mubr.bf16.gmra.mrb[0].mxu0 %v3607
      %v4119 = vpop.f32.mrb[0].mxu0
      %v4120 = vadd.f32 %v3728, %v4119
      %v4121 = vpop.f32.mrb[0].mxu0
      %v4122 = vadd.f32 %v3732, %v4121
      %v4123 = vpop.f32.mrb[0].mxu0
      %v4124 = vadd.f32 %v3728, %v4123
      %v4125 = vpop.f32.mrb[0].mxu0
      %v4126 = vadd.f32 %v3732, %v4125
      %4127 = vmatprep.mubr.bf16.mxu0 %v3612
      %4128 = vmatmul.mubr.bf16.gmra.mrb[0].mxu0 %v3611
      %v4129 = vpop.f32.mrb[0].mxu0
      %v4130 = vadd.f32 %v3728, %v4129
      %v4131 = vpop.f32.mrb[0].mxu0
      %v4132 = vadd.f32 %v3732, %v4131
      %v4133 = vpop.f32.mrb[0].mxu0
      %v4134 = vadd.f32 %v3728, %v4133
      %v4135 = vpop.f32.mrb[0].mxu0
      %v4136 = vadd.f32 %v3732, %v4135
      %4137 = vmatprep.mubr.bf16.mxu0 %v3616
      %4138 = vmatmul.mubr.bf16.gmra.mrb[0].mxu0 %v3615
      %v4139 = vpop.f32.mrb[0].mxu0
      %v4140 = vadd.f32 %v3728, %v4139
      %v4141 = vpop.f32.mrb[0].mxu0
      %v4142 = vadd.f32 %v3732, %v4141
      %v4143 = vpop.f32.mrb[0].mxu0
      %v4144 = vadd.f32 %v3728, %v4143
      %v4145 = vpop.f32.mrb[0].mxu0
      %v4146 = vadd.f32 %v3732, %v4145
      %4147 = vmatprep.mubr.bf16.mxu0 %v3620
      %4148 = vmatmul.mubr.bf16.gmra.mrb[0].mxu0 %v3619
      %v4149 = vpop.f32.mrb[0].mxu0
      %v4150 = vadd.f32 %v3728, %v4149
      %v4151 = vpop.f32.mrb[0].mxu0
      %v4152 = vadd.f32 %v3732, %v4151
      %v4153 = vpop.f32.mrb[0].mxu0
      %v4154 = vadd.f32 %v3728, %v4153
      %v4155 = vpop.f32.mrb[0].mxu0
      %v4156 = vadd.f32 %v3732, %v4155
      %4157 = vmatprep.mubr.bf16.mxu0 %v3624
      %4158 = vmatmul.mubr.bf16.gmra.mrb[0].mxu0 %v3623
      %v4159 = vpop.f32.mrb[0].mxu0
      %v4160 = vadd.f32 %v3728, %v4159
      %v4161 = vpop.f32.mrb[0].mxu0
      %v4162 = vadd.f32 %v3732, %v4161
      %v4163 = vpop.f32.mrb[0].mxu0
      %v4164 = vadd.f32 %v3728, %v4163
      %v4165 = vpop.f32.mrb[0].mxu0
      %v4166 = vadd.f32 %v3732, %v4165
      %4167 = vmatprep.mubr.bf16.mxu0 %v3628
      %4168 = vmatmul.mubr.bf16.gmra.mrb[0].mxu0 %v3627
      %v4169 = vpop.f32.mrb[0].mxu0
      %v4170 = vadd.f32 %v3728, %v4169
      %v4171 = vpop.f32.mrb[0].mxu0
      %v4172 = vadd.f32 %v3732, %v4171
      %v4173 = vpop.f32.mrb[0].mxu0
      %v4174 = vadd.f32 %v3728, %v4173
      %v4175 = vpop.f32.mrb[0].mxu0
      %v4176 = vadd.f32 %v3732, %v4175
      %4177 = vmatprep.mubr.bf16.mxu0 %v3632
      %4178 = vmatmul.mubr.bf16.gmra.mrb[0].mxu0 %v3631
      %v4179 = vpop.f32.mrb[0].mxu0
      %v4180 = vadd.f32 %v3728, %v4179
      %v4181 = vpop.f32.mrb[0].mxu0
      %v4182 = vadd.f32 %v3732, %v4181
      %v4183 = vpop.f32.mrb[0].mxu0
      %v4184 = vadd.f32 %v3728, %v4183
      %v4185 = vpop.f32.mrb[0].mxu0
      %v4186 = vadd.f32 %v3732, %v4185
      %4187 = vmatprep.mubr.bf16.mxu0 %v3636
      %4188 = vmatmul.mubr.bf16.gmra.mrb[0].mxu0 %v3635
      %v4189 = vpop.f32.mrb[0].mxu0
      %v4190 = vadd.f32 %v3728, %v4189
      %v4191 = vpop.f32.mrb[0].mxu0
      %v4192 = vadd.f32 %v3732, %v4191
      %v4193 = vpop.f32.mrb[0].mxu0
      %v4194 = vadd.f32 %v3728, %v4193
      %v4195 = vpop.f32.mrb[0].mxu0
      %v4196 = vadd.f32 %v3732, %v4195
      %4197 = vmatprep.mubr.bf16.mxu0 %v3640
      %4198 = vmatmul.mubr.bf16.gmra.mrb[0].mxu0 %v3639
      %v4199 = vpop.f32.mrb[0].mxu0
      %v4200 = vadd.f32 %v3728, %v4199
      %v4201 = vpop.f32.mrb[0].mxu0
      %v4202 = vadd.f32 %v3732, %v4201
      %v4203 = vpop.f32.mrb[0].mxu0
      %v4204 = vadd.f32 %v3728, %v4203
      %v4205 = vpop.f32.mrb[0].mxu0
      %v4206 = vadd.f32 %v3732, %v4205
      %4207 = vmatprep.mubr.bf16.mxu0 %v3644
      %4208 = vmatmul.mubr.bf16.gmra.mrb[0].mxu0 %v3643
      %v4209 = vpop.f32.mrb[0].mxu0
      %v4210 = vadd.f32 %v3728, %v4209
      %v4211 = vpop.f32.mrb[0].mxu0
      %v4212 = vadd.f32 %v3732, %v4211
      %v4213 = vpop.f32.mrb[0].mxu0
      %v4214 = vadd.f32 %v3728, %v4213
      %v4215 = vpop.f32.mrb[0].mxu0
      %v4216 = vadd.f32 %v3732, %v4215
      %4217 = vmatprep.mubr.bf16.mxu0 %v3648
      %4218 = vmatmul.mubr.bf16.gmra.mrb[0].mxu0 %v3647
      %v4219 = vpop.f32.mrb[0].mxu0
      %v4220 = vadd.f32 %v3728, %v4219
      %v4221 = vpop.f32.mrb[0].mxu0
      %v4222 = vadd.f32 %v3732, %v4221
      %v4223 = vpop.f32.mrb[0].mxu0
      %v4224 = vadd.f32 %v3728, %v4223
      %v4225 = vpop.f32.mrb[0].mxu0
      %v4226 = vadd.f32 %v3732, %v4225
      %4227 = vmatprep.mubr.bf16.mxu0 %v3652
      %4228 = vmatmul.mubr.bf16.gmra.mrb[0].mxu0 %v3651
      %v4229 = vpop.f32.mrb[0].mxu0
      %v4230 = vadd.f32 %v3728, %v4229
      %v4231 = vpop.f32.mrb[0].mxu0
      %v4232 = vadd.f32 %v3732, %v4231
      %v4233 = vpop.f32.mrb[0].mxu0
      %v4234 = vadd.f32 %v3728, %v4233
      %v4235 = vpop.f32.mrb[0].mxu0
      %v4236 = vadd.f32 %v3732, %v4235
      %4237 = vmatprep.mubr.bf16.mxu0 %v3656
      %4238 = vmatmul.mubr.bf16.gmra.mrb[0].mxu0 %v3655
      %v4239 = vpop.f32.mrb[0].mxu0
      %v4240 = vadd.f32 %v3728, %v4239
      %v4241 = vpop.f32.mrb[0].mxu0
      %v4242 = vadd.f32 %v3732, %v4241
      %v4243 = vpop.f32.mrb[0].mxu0
      %v4244 = vadd.f32 %v3728, %v4243
      %v4245 = vpop.f32.mrb[0].mxu0
      %v4246 = vadd.f32 %v3732, %v4245
      %4247 = vdwg.mxu0
      %4248 = vmatprep.subr.bf16.mxu0 %v3960
      %4249 = vmatpush1.bf16.msra.mxu0 %v3959
      %4250 = vmatprep.subr.bf16.mxu0 %v3962
      %4251 = vmatpush1.bf16.msra.mxu0 %v3961
      %4252 = vmatprep.subr.bf16.mxu0 %v3964
      %4253 = vmatpush1.bf16.msra.mxu0 %v3963
      %4254 = vmatprep.subr.bf16.mxu0 %v3966
      %4255 = vmatpush1.bf16.msra.mxu0 %v3965
      %4256 = vmatprep.subr.bf16.mxu0 %v3968
      %4257 = vmatpush1.bf16.msra.mxu0 %v3967
      %4258 = vmatprep.subr.bf16.mxu0 %v3970
      %4259 = vmatpush1.bf16.msra.mxu0 %v3969
      %4260 = vmatprep.subr.bf16.mxu0 %v3972
      %4261 = vmatpush1.bf16.msra.mxu0 %v3971
      %4262 = vmatprep.subr.bf16.mxu0 %v3974
      %4263 = vmatpush1.bf16.msra.mxu0 %v3973
      %4264 = vmatprep.subr.bf16.mxu0 %v3976
      %4265 = vmatpush1.bf16.msra.mxu0 %v3975
      %4266 = vmatprep.subr.bf16.mxu0 %v3978
      %4267 = vmatpush1.bf16.msra.mxu0 %v3977
      %4268 = vmatprep.subr.bf16.mxu0 %v3980
      %4269 = vmatpush1.bf16.msra.mxu0 %v3979
      %4270 = vmatprep.subr.bf16.mxu0 %v3982
      %4271 = vmatpush1.bf16.msra.mxu0 %v3981
      %4272 = vmatprep.subr.bf16.mxu0 %v3984
      %4273 = vmatpush1.bf16.msra.mxu0 %v3983
      %4274 = vmatprep.subr.bf16.mxu0 %v3986
      %4275 = vmatpush1.bf16.msra.mxu0 %v3985
      %4276 = vmatprep.subr.bf16.mxu0 %v3988
      %4277 = vmatpush1.bf16.msra.mxu0 %v3987
      %4278 = vmatprep.subr.bf16.mxu0 %v3990
      %4279 = vmatpush1.bf16.msra.mxu0 %v3989
      %4280 = vmatprep.mubr.bf16.mxu0 %v3598
      %4281 = vmatmul.mubr.bf16.gmra.mrb[0].mxu0 %v3597
      %v4282 = vpop.f32.mrb[0].mxu0
      %v4283 = vadd.f32 %v4090, %v4282
      %v4284 = vpop.f32.mrb[0].mxu0
      %v4285 = vadd.f32 %v4092, %v4284
      %v4286 = vpop.f32.mrb[0].mxu0
      %v4287 = vadd.f32 %v4094, %v4286
      %v4288 = vpop.f32.mrb[0].mxu0
      %v4289 = vadd.f32 %v4096, %v4288
      %4290 = vmatprep.mubr.bf16.mxu0 %v3602
      %4291 = vmatmul.mubr.bf16.gmra.mrb[0].mxu0 %v3601
      %v4292 = vpop.f32.mrb[0].mxu0
      %v4293 = vadd.f32 %v4100, %v4292
      %v4294 = vpop.f32.mrb[0].mxu0
      %v4295 = vadd.f32 %v4102, %v4294
      %v4296 = vpop.f32.mrb[0].mxu0
      %v4297 = vadd.f32 %v4104, %v4296
      %v4298 = vpop.f32.mrb[0].mxu0
      %v4299 = vadd.f32 %v4106, %v4298
      %4300 = vmatprep.mubr.bf16.mxu0 %v3606
      %4301 = vmatmul.mubr.bf16.gmra.mrb[0].mxu0 %v3605
      %v4302 = vpop.f32.mrb[0].mxu0
      %v4303 = vadd.f32 %v4110, %v4302
      %v4304 = vpop.f32.mrb[0].mxu0
      %v4305 = vadd.f32 %v4112, %v4304
      %v4306 = vpop.f32.mrb[0].mxu0
      %v4307 = vadd.f32 %v4114, %v4306
      %v4308 = vpop.f32.mrb[0].mxu0
      %v4309 = vadd.f32 %v4116, %v4308
      %4310 = vmatprep.mubr.bf16.mxu0 %v3610
      %4311 = vmatmul.mubr.bf16.gmra.mrb[0].mxu0 %v3609
      %v4312 = vpop.f32.mrb[0].mxu0
      %v4313 = vadd.f32 %v4120, %v4312
      %v4314 = vpop.f32.mrb[0].mxu0
      %v4315 = vadd.f32 %v4122, %v4314
      %v4316 = vpop.f32.mrb[0].mxu0
      %v4317 = vadd.f32 %v4124, %v4316
      %v4318 = vpop.f32.mrb[0].mxu0
      %v4319 = vadd.f32 %v4126, %v4318
      %4320 = vmatprep.mubr.bf16.mxu0 %v3614
      %4321 = vmatmul.mubr.bf16.gmra.mrb[0].mxu0 %v3613
      %v4322 = vpop.f32.mrb[0].mxu0
      %v4323 = vadd.f32 %v4130, %v4322
      %v4324 = vpop.f32.mrb[0].mxu0
      %v4325 = vadd.f32 %v4132, %v4324
      %v4326 = vpop.f32.mrb[0].mxu0
      %v4327 = vadd.f32 %v4134, %v4326
      %v4328 = vpop.f32.mrb[0].mxu0
      %v4329 = vadd.f32 %v4136, %v4328
      %4330 = vmatprep.mubr.bf16.mxu0 %v3618
      %4331 = vmatmul.mubr.bf16.gmra.mrb[0].mxu0 %v3617
      %v4332 = vpop.f32.mrb[0].mxu0
      %v4333 = vadd.f32 %v4140, %v4332
      %v4334 = vpop.f32.mrb[0].mxu0
      %v4335 = vadd.f32 %v4142, %v4334
      %v4336 = vpop.f32.mrb[0].mxu0
      %v4337 = vadd.f32 %v4144, %v4336
      %v4338 = vpop.f32.mrb[0].mxu0
      %v4339 = vadd.f32 %v4146, %v4338
      %4340 = vmatprep.mubr.bf16.mxu0 %v3622
      %4341 = vmatmul.mubr.bf16.gmra.mrb[0].mxu0 %v3621
      %v4342 = vpop.f32.mrb[0].mxu0
      %v4343 = vadd.f32 %v4150, %v4342
      %v4344 = vpop.f32.mrb[0].mxu0
      %v4345 = vadd.f32 %v4152, %v4344
      %v4346 = vpop.f32.mrb[0].mxu0
      %v4347 = vadd.f32 %v4154, %v4346
      %v4348 = vpop.f32.mrb[0].mxu0
      %v4349 = vadd.f32 %v4156, %v4348
      %4350 = vmatprep.mubr.bf16.mxu0 %v3626
      %4351 = vmatmul.mubr.bf16.gmra.mrb[0].mxu0 %v3625
      %v4352 = vpop.f32.mrb[0].mxu0
      %v4353 = vadd.f32 %v4160, %v4352
      %v4354 = vpop.f32.mrb[0].mxu0
      %v4355 = vadd.f32 %v4162, %v4354
      %v4356 = vpop.f32.mrb[0].mxu0
      %v4357 = vadd.f32 %v4164, %v4356
      %v4358 = vpop.f32.mrb[0].mxu0
      %v4359 = vadd.f32 %v4166, %v4358
      %4360 = vmatprep.mubr.bf16.mxu0 %v3630
      %4361 = vmatmul.mubr.bf16.gmra.mrb[0].mxu0 %v3629
      %v4362 = vpop.f32.mrb[0].mxu0
      %v4363 = vadd.f32 %v4170, %v4362
      %v4364 = vpop.f32.mrb[0].mxu0
      %v4365 = vadd.f32 %v4172, %v4364
      %v4366 = vpop.f32.mrb[0].mxu0
      %v4367 = vadd.f32 %v4174, %v4366
      %v4368 = vpop.f32.mrb[0].mxu0
      %v4369 = vadd.f32 %v4176, %v4368
      %4370 = vmatprep.mubr.bf16.mxu0 %v3634
      %4371 = vmatmul.mubr.bf16.gmra.mrb[0].mxu0 %v3633
      %v4372 = vpop.f32.mrb[0].mxu0
      %v4373 = vadd.f32 %v4180, %v4372
      %v4374 = vpop.f32.mrb[0].mxu0
      %v4375 = vadd.f32 %v4182, %v4374
      %v4376 = vpop.f32.mrb[0].mxu0
      %v4377 = vadd.f32 %v4184, %v4376
      %v4378 = vpop.f32.mrb[0].mxu0
      %v4379 = vadd.f32 %v4186, %v4378
      %4380 = vmatprep.mubr.bf16.mxu0 %v3638
      %4381 = vmatmul.mubr.bf16.gmra.mrb[0].mxu0 %v3637
      %v4382 = vpop.f32.mrb[0].mxu0
      %v4383 = vadd.f32 %v4190, %v4382
      %v4384 = vpop.f32.mrb[0].mxu0
      %v4385 = vadd.f32 %v4192, %v4384
      %v4386 = vpop.f32.mrb[0].mxu0
      %v4387 = vadd.f32 %v4194, %v4386
      %v4388 = vpop.f32.mrb[0].mxu0
      %v4389 = vadd.f32 %v4196, %v4388
      %4390 = vmatprep.mubr.bf16.mxu0 %v3642
      %4391 = vmatmul.mubr.bf16.gmra.mrb[0].mxu0 %v3641
      %v4392 = vpop.f32.mrb[0].mxu0
      %v4393 = vadd.f32 %v4200, %v4392
      %v4394 = vpop.f32.mrb[0].mxu0
      %v4395 = vadd.f32 %v4202, %v4394
      %v4396 = vpop.f32.mrb[0].mxu0
      %v4397 = vadd.f32 %v4204, %v4396
      %v4398 = vpop.f32.mrb[0].mxu0
      %v4399 = vadd.f32 %v4206, %v4398
      %4400 = vmatprep.mubr.bf16.mxu0 %v3646
      %4401 = vmatmul.mubr.bf16.gmra.mrb[0].mxu0 %v3645
      %v4402 = vpop.f32.mrb[0].mxu0
      %v4403 = vadd.f32 %v4210, %v4402
      %v4404 = vpop.f32.mrb[0].mxu0
      %v4405 = vadd.f32 %v4212, %v4404
      %v4406 = vpop.f32.mrb[0].mxu0
      %v4407 = vadd.f32 %v4214, %v4406
      %v4408 = vpop.f32.mrb[0].mxu0
      %v4409 = vadd.f32 %v4216, %v4408
      %4410 = vmatprep.mubr.bf16.mxu0 %v3650
      %4411 = vmatmul.mubr.bf16.gmra.mrb[0].mxu0 %v3649
      %v4412 = vpop.f32.mrb[0].mxu0
      %v4413 = vadd.f32 %v4220, %v4412
      %v4414 = vpop.f32.mrb[0].mxu0
      %v4415 = vadd.f32 %v4222, %v4414
      %v4416 = vpop.f32.mrb[0].mxu0
      %v4417 = vadd.f32 %v4224, %v4416
      %v4418 = vpop.f32.mrb[0].mxu0
      %v4419 = vadd.f32 %v4226, %v4418
      %4420 = vmatprep.mubr.bf16.mxu0 %v3654
      %4421 = vmatmul.mubr.bf16.gmra.mrb[0].mxu0 %v3653
      %v4422 = vpop.f32.mrb[0].mxu0
      %v4423 = vadd.f32 %v4230, %v4422
      %v4424 = vpop.f32.mrb[0].mxu0
      %v4425 = vadd.f32 %v4232, %v4424
      %v4426 = vpop.f32.mrb[0].mxu0
      %v4427 = vadd.f32 %v4234, %v4426
      %v4428 = vpop.f32.mrb[0].mxu0
      %v4429 = vadd.f32 %v4236, %v4428
      %4430 = vmatprep.mubr.bf16.mxu0 %v3658
      %4431 = vmatmul.mubr.bf16.gmra.mrb[0].mxu0 %v3657
      %v4432 = vpop.f32.mrb[0].mxu0
      %v4433 = vadd.f32 %v4240, %v4432
      %v4434 = vpop.f32.mrb[0].mxu0
      %v4435 = vadd.f32 %v4242, %v4434
      %v4436 = vpop.f32.mrb[0].mxu0
      %v4437 = vadd.f32 %v4244, %v4436
      %v4438 = vpop.f32.mrb[0].mxu0
      %v4439 = vadd.f32 %v4246, %v4438
      %4440 = vdwg.mxu0
      %v4441 = vmax.f32 %v4283, 0.0
      %v4442 = vmax.f32 %v4285, 0.0
      %v4443 = vmax.f32 %v4287, 0.0
      %v4444 = vmax.f32 %v4289, 0.0
      %v4445 = vmax.f32 %v4293, 0.0
      %v4446 = vmax.f32 %v4295, 0.0
      %v4447 = vmax.f32 %v4297, 0.0
      %v4448 = vmax.f32 %v4299, 0.0
      %v4449 = vmax.f32 %v4303, 0.0
      %v4450 = vmax.f32 %v4305, 0.0
      %v4451 = vmax.f32 %v4307, 0.0
      %v4452 = vmax.f32 %v4309, 0.0
      %v4453 = vmax.f32 %v4313, 0.0
      %v4454 = vmax.f32 %v4315, 0.0
      %v4455 = vmax.f32 %v4317, 0.0
      %v4456 = vmax.f32 %v4319, 0.0
      %v4457 = vmax.f32 %v4323, 0.0
      %v4458 = vmax.f32 %v4325, 0.0
      %v4459 = vmax.f32 %v4327, 0.0
      %v4460 = vmax.f32 %v4329, 0.0
      %v4461 = vmax.f32 %v4333, 0.0
      %v4462 = vmax.f32 %v4335, 0.0
      %v4463 = vmax.f32 %v4337, 0.0
      %v4464 = vmax.f32 %v4339, 0.0
      %v4465 = vmax.f32 %v4343, 0.0
      %v4466 = vmax.f32 %v4345, 0.0
      %v4467 = vmax.f32 %v4347, 0.0
      %v4468 = vmax.f32 %v4349, 0.0
      %v4469 = vmax.f32 %v4353, 0.0
      %v4470 = vmax.f32 %v4355, 0.0
      %v4471 = vmax.f32 %v4357, 0.0
      %v4472 = vmax.f32 %v4359, 0.0
      %v4473 = vmax.f32 %v4363, 0.0
      %v4474 = vmax.f32 %v4365, 0.0
      %v4475 = vmax.f32 %v4367, 0.0
      %v4476 = vmax.f32 %v4369, 0.0
      %v4477 = vmax.f32 %v4373, 0.0
      %v4478 = vmax.f32 %v4375, 0.0
      %v4479 = vmax.f32 %v4377, 0.0
      %v4480 = vmax.f32 %v4379, 0.0
      %v4481 = vmax.f32 %v4383, 0.0
      %v4482 = vmax.f32 %v4385, 0.0
      %v4483 = vmax.f32 %v4387, 0.0
      %v4484 = vmax.f32 %v4389, 0.0
      %v4485 = vmax.f32 %v4393, 0.0
      %v4486 = vmax.f32 %v4395, 0.0
      %v4487 = vmax.f32 %v4397, 0.0
      %v4488 = vmax.f32 %v4399, 0.0
      %v4489 = vmax.f32 %v4403, 0.0
      %v4490 = vmax.f32 %v4405, 0.0
      %v4491 = vmax.f32 %v4407, 0.0
      %v4492 = vmax.f32 %v4409, 0.0
      %v4493 = vmax.f32 %v4413, 0.0
      %v4494 = vmax.f32 %v4415, 0.0
      %v4495 = vmax.f32 %v4417, 0.0
      %v4496 = vmax.f32 %v4419, 0.0
      %v4497 = vmax.f32 %v4423, 0.0
      %v4498 = vmax.f32 %v4425, 0.0
      %v4499 = vmax.f32 %v4427, 0.0
      %v4500 = vmax.f32 %v4429, 0.0
      %v4501 = vmax.f32 %v4433, 0.0
      %v4502 = vmax.f32 %v4435, 0.0
      %v4503 = vmax.f32 %v4437, 0.0
      %v4504 = vmax.f32 %v4439, 0.0
      %v4505 = vpack.c.bf16 %v4443, %v4441
      %v4506 = vpack.c.bf16 %v4444, %v4442
      %v4507 = vpack.c.bf16 %v4447, %v4445
      %v4508 = vpack.c.bf16 %v4448, %v4446
      %v4509 = vpack.c.bf16 %v4451, %v4449
      %v4510 = vpack.c.bf16 %v4452, %v4450
      %v4511 = vpack.c.bf16 %v4455, %v4453
      %v4512 = vpack.c.bf16 %v4456, %v4454
      %v4513 = vpack.c.bf16 %v4459, %v4457
      %v4514 = vpack.c.bf16 %v4460, %v4458
      %v4515 = vpack.c.bf16 %v4463, %v4461
      %v4516 = vpack.c.bf16 %v4464, %v4462
      %v4517 = vpack.c.bf16 %v4467, %v4465
      %v4518 = vpack.c.bf16 %v4468, %v4466
      %v4519 = vpack.c.bf16 %v4471, %v4469
      %v4520 = vpack.c.bf16 %v4472, %v4470
      %v4521 = vpack.c.bf16 %v4475, %v4473
      %v4522 = vpack.c.bf16 %v4476, %v4474
      %v4523 = vpack.c.bf16 %v4479, %v4477
      %v4524 = vpack.c.bf16 %v4480, %v4478
      %v4525 = vpack.c.bf16 %v4483, %v4481
      %v4526 = vpack.c.bf16 %v4484, %v4482
      %v4527 = vpack.c.bf16 %v4487, %v4485
      %v4528 = vpack.c.bf16 %v4488, %v4486
      %v4529 = vpack.c.bf16 %v4491, %v4489
      %v4530 = vpack.c.bf16 %v4492, %v4490
      %v4531 = vpack.c.bf16 %v4495, %v4493
      %v4532 = vpack.c.bf16 %v4496, %v4494
      %v4533 = vpack.c.bf16 %v4499, %v4497
      %v4534 = vpack.c.bf16 %v4500, %v4498
      %v4535 = vpack.c.bf16 %v4503, %v4501
      %v4536 = vpack.c.bf16 %v4504, %v4502
      %v4537 = vld [vmem:[%s5] sm:$0xf]
      %v4538 = vld [vmem:[%s5 + $0x4] sm:$0xf]
      %v4539 = vld [vmem:[%s5 + $0x8] sm:$0xf]
      %v4540 = vld [vmem:[%s5 + $0xc] sm:$0xf]
      %v4541 = vld [vmem:[%s5 + $0x10] sm:$0xf]
      %v4542 = vld [vmem:[%s5 + $0x14] sm:$0xf]
      %v4543 = vld [vmem:[%s5 + $0x18] sm:$0xf]
      %v4544 = vld [vmem:[%s5 + $0x1c] sm:$0xf]
      %v4545 = vld [vmem:[%s5 + $0x20] sm:$0xf]
      %v4546 = vld [vmem:[%s5 + $0x24] sm:$0xf]
      %v4547 = vld [vmem:[%s5 + $0x28] sm:$0xf]
      %v4548 = vld [vmem:[%s5 + $0x2c] sm:$0xf]
      %v4549 = vld [vmem:[%s5 + $0x30] sm:$0xf]
      %v4550 = vld [vmem:[%s5 + $0x34] sm:$0xf]
      %v4551 = vld [vmem:[%s5 + $0x38] sm:$0xf]
      %v4552 = vld [vmem:[%s5 + $0x3c] sm:$0xf]
      %v4553 = vld [vmem:[%s5 + $0x40] sm:$0xf]
      %v4554 = vld [vmem:[%s5 + $0x44] sm:$0xf]
      %v4555 = vld [vmem:[%s5 + $0x48] sm:$0xf]
      %v4556 = vld [vmem:[%s5 + $0x4c] sm:$0xf]
      %v4557 = vld [vmem:[%s5 + $0x50] sm:$0xf]
      %v4558 = vld [vmem:[%s5 + $0x54] sm:$0xf]
      %v4559 = vld [vmem:[%s5 + $0x58] sm:$0xf]
      %v4560 = vld [vmem:[%s5 + $0x5c] sm:$0xf]
      %v4561 = vld [vmem:[%s5 + $0x60] sm:$0xf]
      %v4562 = vld [vmem:[%s5 + $0x64] sm:$0xf]
      %v4563 = vld [vmem:[%s5 + $0x68] sm:$0xf]
      %v4564 = vld [vmem:[%s5 + $0x6c] sm:$0xf]
      %v4565 = vld [vmem:[%s5 + $0x70] sm:$0xf]
      %v4566 = vld [vmem:[%s5 + $0x74] sm:$0xf]
      %v4567 = vld [vmem:[%s5 + $0x78] sm:$0xf]
      %v4568 = vld [vmem:[%s5 + $0x7c] sm:$0xf]
      %v4569 = vld [vmem:[%s6] sm:$0x1]
      %v4571 = vlaneseq
      %v4572 = vshrl.u32 %v4571, 7
      %v4573 = vsub.s32 0, %v4572
      %v4574 = vrot.slane %v4569, %v4573
      %v4608 = vunpack.c.l.b16 %v4537
      %v4609 = vunpack.c.l.b16 %v4538
      %v4610 = vunpack.c.l.b16 %v4539
      %v4611 = vunpack.c.l.b16 %v4540
      %v4612 = vunpack.c.l.b16 %v4541
      %v4613 = vunpack.c.l.b16 %v4542
      %v4614 = vunpack.c.l.b16 %v4543
      %v4615 = vunpack.c.l.b16 %v4544
      %v4616 = vunpack.c.l.b16 %v4545
      %v4617 = vunpack.c.l.b16 %v4546
      %v4618 = vunpack.c.l.b16 %v4547
      %v4619 = vunpack.c.l.b16 %v4548
      %v4620 = vunpack.c.l.b16 %v4549
      %v4621 = vunpack.c.l.b16 %v4550
      %v4622 = vunpack.c.l.b16 %v4551
      %v4623 = vunpack.c.l.b16 %v4552
      %v4624 = vunpack.c.l.b16 %v4553
      %v4625 = vunpack.c.l.b16 %v4554
      %v4626 = vunpack.c.l.b16 %v4555
      %v4627 = vunpack.c.l.b16 %v4556
      %v4628 = vunpack.c.l.b16 %v4557
      %v4629 = vunpack.c.l.b16 %v4558
      %v4630 = vunpack.c.l.b16 %v4559
      %v4631 = vunpack.c.l.b16 %v4560
      %v4632 = vunpack.c.l.b16 %v4561
      %v4633 = vunpack.c.l.b16 %v4562
      %v4634 = vunpack.c.l.b16 %v4563
      %v4635 = vunpack.c.l.b16 %v4564
      %v4636 = vunpack.c.l.b16 %v4565
      %v4637 = vunpack.c.l.b16 %v4566
      %v4638 = vunpack.c.l.b16 %v4567
      %v4639 = vunpack.c.l.b16 %v4568
      %v4640 = vpack.c.b16 %v4609, %v4608
      %v4641 = vpack.c.b16 %v4611, %v4610
      %v4642 = vpack.c.b16 %v4613, %v4612
      %v4643 = vpack.c.b16 %v4615, %v4614
      %v4644 = vpack.c.b16 %v4617, %v4616
      %v4645 = vpack.c.b16 %v4619, %v4618
      %v4646 = vpack.c.b16 %v4621, %v4620
      %v4647 = vpack.c.b16 %v4623, %v4622
      %v4648 = vpack.c.b16 %v4625, %v4624
      %v4649 = vpack.c.b16 %v4627, %v4626
      %v4650 = vpack.c.b16 %v4629, %v4628
      %v4651 = vpack.c.b16 %v4631, %v4630
      %v4652 = vpack.c.b16 %v4633, %v4632
      %v4653 = vpack.c.b16 %v4635, %v4634
      %v4654 = vpack.c.b16 %v4637, %v4636
      %v4655 = vpack.c.b16 %v4639, %v4638
      %4672 = vmatprep.subr.bf16.mxu0 0
      %4673 = vmatpush1.bf16.msra.mxu0 %v4640
      %4674 = vmatprep.subr.bf16.mxu0 0
      %4675 = vmatpush1.bf16.msra.mxu0 %v4641
      %4676 = vmatprep.subr.bf16.mxu0 0
      %4677 = vmatpush1.bf16.msra.mxu0 %v4642
      %4678 = vmatprep.subr.bf16.mxu0 0
      %4679 = vmatpush1.bf16.msra.mxu0 %v4643
      %4680 = vmatprep.subr.bf16.mxu0 0
      %4681 = vmatpush1.bf16.msra.mxu0 %v4644
      %4682 = vmatprep.subr.bf16.mxu0 0
      %4683 = vmatpush1.bf16.msra.mxu0 %v4645
      %4684 = vmatprep.subr.bf16.mxu0 0
      %4685 = vmatpush1.bf16.msra.mxu0 %v4646
      %4686 = vmatprep.subr.bf16.mxu0 0
      %4687 = vmatpush1.bf16.msra.mxu0 %v4647
      %4688 = vmatprep.subr.bf16.mxu0 0
      %4689 = vmatpush1.bf16.msra.mxu0 %v4648
      %4690 = vmatprep.subr.bf16.mxu0 0
      %4691 = vmatpush1.bf16.msra.mxu0 %v4649
      %4692 = vmatprep.subr.bf16.mxu0 0
      %4693 = vmatpush1.bf16.msra.mxu0 %v4650
      %4694 = vmatprep.subr.bf16.mxu0 0
      %4695 = vmatpush1.bf16.msra.mxu0 %v4651
      %4696 = vmatprep.subr.bf16.mxu0 0
      %4697 = vmatpush1.bf16.msra.mxu0 %v4652
      %4698 = vmatprep.subr.bf16.mxu0 0
      %4699 = vmatpush1.bf16.msra.mxu0 %v4653
      %4700 = vmatprep.subr.bf16.mxu0 0
      %4701 = vmatpush1.bf16.msra.mxu0 %v4654
      %4702 = vmatprep.subr.bf16.mxu0 0
      %4703 = vmatpush1.bf16.msra.mxu0 %v4655
      %4704 = vmatprep.mubr.bf16.mxu0 %v4506
      %4705 = vmatmul.mubr.bf16.gmra.mrb[0].mxu0 %v4505
      %v4706 = vpop.f32.mrb[0].mxu0
      %v4707 = vadd.f32 %v4574, %v4706
      %v4708 = vpop.f32.mrb[0].mxu0
      %v4709 = vpop.f32.mrb[0].mxu0
      %v4710 = vadd.f32 %v4574, %v4709
      %v4711 = vpop.f32.mrb[0].mxu0
      %4712 = vmatprep.mubr.bf16.mxu0 %v4508
      %4713 = vmatmul.mubr.bf16.gmra.mrb[0].mxu0 %v4507
      %v4714 = vpop.f32.mrb[0].mxu0
      %v4715 = vadd.f32 %v4574, %v4714
      %v4716 = vpop.f32.mrb[0].mxu0
      %v4717 = vpop.f32.mrb[0].mxu0
      %v4718 = vadd.f32 %v4574, %v4717
      %v4719 = vpop.f32.mrb[0].mxu0
      %4720 = vmatprep.mubr.bf16.mxu0 %v4510
      %4721 = vmatmul.mubr.bf16.gmra.mrb[0].mxu0 %v4509
      %v4722 = vpop.f32.mrb[0].mxu0
      %v4723 = vadd.f32 %v4574, %v4722
      %v4724 = vpop.f32.mrb[0].mxu0
      %v4725 = vpop.f32.mrb[0].mxu0
      %v4726 = vadd.f32 %v4574, %v4725
      %v4727 = vpop.f32.mrb[0].mxu0
      %4728 = vmatprep.mubr.bf16.mxu0 %v4512
      %4729 = vmatmul.mubr.bf16.gmra.mrb[0].mxu0 %v4511
      %v4730 = vpop.f32.mrb[0].mxu0
      %v4731 = vadd.f32 %v4574, %v4730
      %v4732 = vpop.f32.mrb[0].mxu0
      %v4733 = vpop.f32.mrb[0].mxu0
      %v4734 = vadd.f32 %v4574, %v4733
      %v4735 = vpop.f32.mrb[0].mxu0
      %4736 = vmatprep.mubr.bf16.mxu0 %v4514
      %4737 = vmatmul.mubr.bf16.gmra.mrb[0].mxu0 %v4513
      %v4738 = vpop.f32.mrb[0].mxu0
      %v4739 = vadd.f32 %v4574, %v4738
      %v4740 = vpop.f32.mrb[0].mxu0
      %v4741 = vpop.f32.mrb[0].mxu0
      %v4742 = vadd.f32 %v4574, %v4741
      %v4743 = vpop.f32.mrb[0].mxu0
      %4744 = vmatprep.mubr.bf16.mxu0 %v4516
      %4745 = vmatmul.mubr.bf16.gmra.mrb[0].mxu0 %v4515
      %v4746 = vpop.f32.mrb[0].mxu0
      %v4747 = vadd.f32 %v4574, %v4746
      %v4748 = vpop.f32.mrb[0].mxu0
      %v4749 = vpop.f32.mrb[0].mxu0
      %v4750 = vadd.f32 %v4574, %v4749
      %v4751 = vpop.f32.mrb[0].mxu0
      %4752 = vmatprep.mubr.bf16.mxu0 %v4518
      %4753 = vmatmul.mubr.bf16.gmra.mrb[0].mxu0 %v4517
      %v4754 = vpop.f32.mrb[0].mxu0
      %v4755 = vadd.f32 %v4574, %v4754
      %v4756 = vpop.f32.mrb[0].mxu0
      %v4757 = vpop.f32.mrb[0].mxu0
      %v4758 = vadd.f32 %v4574, %v4757
      %v4759 = vpop.f32.mrb[0].mxu0
      %4760 = vmatprep.mubr.bf16.mxu0 %v4520
      %4761 = vmatmul.mubr.bf16.gmra.mrb[0].mxu0 %v4519
      %v4762 = vpop.f32.mrb[0].mxu0
      %v4763 = vadd.f32 %v4574, %v4762
      %v4764 = vpop.f32.mrb[0].mxu0
      %v4765 = vpop.f32.mrb[0].mxu0
      %v4766 = vadd.f32 %v4574, %v4765
      %v4767 = vpop.f32.mrb[0].mxu0
      %4768 = vmatprep.mubr.bf16.mxu0 %v4522
      %4769 = vmatmul.mubr.bf16.gmra.mrb[0].mxu0 %v4521
      %v4770 = vpop.f32.mrb[0].mxu0
      %v4771 = vadd.f32 %v4574, %v4770
      %v4772 = vpop.f32.mrb[0].mxu0
      %v4773 = vpop.f32.mrb[0].mxu0
      %v4774 = vadd.f32 %v4574, %v4773
      %v4775 = vpop.f32.mrb[0].mxu0
      %4776 = vmatprep.mubr.bf16.mxu0 %v4524
      %4777 = vmatmul.mubr.bf16.gmra.mrb[0].mxu0 %v4523
      %v4778 = vpop.f32.mrb[0].mxu0
      %v4779 = vadd.f32 %v4574, %v4778
      %v4780 = vpop.f32.mrb[0].mxu0
      %v4781 = vpop.f32.mrb[0].mxu0
      %v4782 = vadd.f32 %v4574, %v4781
      %v4783 = vpop.f32.mrb[0].mxu0
      %4784 = vmatprep.mubr.bf16.mxu0 %v4526
      %4785 = vmatmul.mubr.bf16.gmra.mrb[0].mxu0 %v4525
      %v4786 = vpop.f32.mrb[0].mxu0
      %v4787 = vadd.f32 %v4574, %v4786
      %v4788 = vpop.f32.mrb[0].mxu0
      %v4789 = vpop.f32.mrb[0].mxu0
      %v4790 = vadd.f32 %v4574, %v4789
      %v4791 = vpop.f32.mrb[0].mxu0
      %4792 = vmatprep.mubr.bf16.mxu0 %v4528
      %4793 = vmatmul.mubr.bf16.gmra.mrb[0].mxu0 %v4527
      %v4794 = vpop.f32.mrb[0].mxu0
      %v4795 = vadd.f32 %v4574, %v4794
      %v4796 = vpop.f32.mrb[0].mxu0
      %v4797 = vpop.f32.mrb[0].mxu0
      %v4798 = vadd.f32 %v4574, %v4797
      %v4799 = vpop.f32.mrb[0].mxu0
      %4800 = vmatprep.mubr.bf16.mxu0 %v4530
      %4801 = vmatmul.mubr.bf16.gmra.mrb[0].mxu0 %v4529
      %v4802 = vpop.f32.mrb[0].mxu0
      %v4803 = vadd.f32 %v4574, %v4802
      %v4804 = vpop.f32.mrb[0].mxu0
      %v4805 = vpop.f32.mrb[0].mxu0
      %v4806 = vadd.f32 %v4574, %v4805
      %v4807 = vpop.f32.mrb[0].mxu0
      %4808 = vmatprep.mubr.bf16.mxu0 %v4532
      %4809 = vmatmul.mubr.bf16.gmra.mrb[0].mxu0 %v4531
      %v4810 = vpop.f32.mrb[0].mxu0
      %v4811 = vadd.f32 %v4574, %v4810
      %v4812 = vpop.f32.mrb[0].mxu0
      %v4813 = vpop.f32.mrb[0].mxu0
      %v4814 = vadd.f32 %v4574, %v4813
      %v4815 = vpop.f32.mrb[0].mxu0
      %4816 = vmatprep.mubr.bf16.mxu0 %v4534
      %4817 = vmatmul.mubr.bf16.gmra.mrb[0].mxu0 %v4533
      %v4818 = vpop.f32.mrb[0].mxu0
      %v4819 = vadd.f32 %v4574, %v4818
      %v4820 = vpop.f32.mrb[0].mxu0
      %v4821 = vpop.f32.mrb[0].mxu0
      %v4822 = vadd.f32 %v4574, %v4821
      %v4823 = vpop.f32.mrb[0].mxu0
      %4824 = vmatprep.mubr.bf16.mxu0 %v4536
      %4825 = vmatmul.mubr.bf16.gmra.mrb[0].mxu0 %v4535
      %v4826 = vpop.f32.mrb[0].mxu0
      %v4827 = vadd.f32 %v4574, %v4826
      %v4828 = vpop.f32.mrb[0].mxu0
      %v4829 = vpop.f32.mrb[0].mxu0
      %v4830 = vadd.f32 %v4574, %v4829
      %v4831 = vpop.f32.mrb[0].mxu0
      %4832 = vdwg.mxu0
      %v4833 = vmax.f32 %v4707, 0.0
      %v4834 = vmax.f32 %v4710, 0.0
      %v4835 = vmax.f32 %v4715, 0.0
      %v4836 = vmax.f32 %v4718, 0.0
      %v4837 = vmax.f32 %v4723, 0.0
      %v4838 = vmax.f32 %v4726, 0.0
      %v4839 = vmax.f32 %v4731, 0.0
      %v4840 = vmax.f32 %v4734, 0.0
      %v4841 = vmax.f32 %v4739, 0.0
      %v4842 = vmax.f32 %v4742, 0.0
      %v4843 = vmax.f32 %v4747, 0.0
      %v4844 = vmax.f32 %v4750, 0.0
      %v4845 = vmax.f32 %v4755, 0.0
      %v4846 = vmax.f32 %v4758, 0.0
      %v4847 = vmax.f32 %v4763, 0.0
      %v4848 = vmax.f32 %v4766, 0.0
      %v4849 = vmax.f32 %v4771, 0.0
      %v4850 = vmax.f32 %v4774, 0.0
      %v4851 = vmax.f32 %v4779, 0.0
      %v4852 = vmax.f32 %v4782, 0.0
      %v4853 = vmax.f32 %v4787, 0.0
      %v4854 = vmax.f32 %v4790, 0.0
      %v4855 = vmax.f32 %v4795, 0.0
      %v4856 = vmax.f32 %v4798, 0.0
      %v4857 = vmax.f32 %v4803, 0.0
      %v4858 = vmax.f32 %v4806, 0.0
      %v4859 = vmax.f32 %v4811, 0.0
      %v4860 = vmax.f32 %v4814, 0.0
      %v4861 = vmax.f32 %v4819, 0.0
      %v4862 = vmax.f32 %v4822, 0.0
      %v4863 = vmax.f32 %v4827, 0.0
      %v4864 = vmax.f32 %v4830, 0.0
      %v4865 = vpack.c.bf16 %v4834, %v4833
      %v4866 = vpack.c.bf16 %v4836, %v4835
      %v4867 = vpack.c.bf16 %v4838, %v4837
      %v4868 = vpack.c.bf16 %v4840, %v4839
      %v4869 = vpack.c.bf16 %v4842, %v4841
      %v4870 = vpack.c.bf16 %v4844, %v4843
      %v4871 = vpack.c.bf16 %v4846, %v4845
      %v4872 = vpack.c.bf16 %v4848, %v4847
      %v4873 = vpack.c.bf16 %v4850, %v4849
      %v4874 = vpack.c.bf16 %v4852, %v4851
      %v4875 = vpack.c.bf16 %v4854, %v4853
      %v4876 = vpack.c.bf16 %v4856, %v4855
      %v4877 = vpack.c.bf16 %v4858, %v4857
      %v4878 = vpack.c.bf16 %v4860, %v4859
      %v4879 = vpack.c.bf16 %v4862, %v4861
      %v4880 = vpack.c.bf16 %v4864, %v4863
      %v4881 = vld [vmem:[%s7] sm:$0xf]
      %v4882 = vld [vmem:[%s7 + $0x4] sm:$0xf]
      %v4883 = vld [vmem:[%s7 + $0x8] sm:$0xf]
      %v4884 = vld [vmem:[%s7 + $0xc] sm:$0xf]
      %v4885 = vld [vmem:[%s7 + $0x10] sm:$0xf]
      %v4886 = vld [vmem:[%s7 + $0x14] sm:$0xf]
      %v4887 = vld [vmem:[%s7 + $0x18] sm:$0xf]
      %v4888 = vld [vmem:[%s7 + $0x1c] sm:$0xf]
      %v4889 = vld [vmem:[%s7 + $0x20] sm:$0xf]
      %v4890 = vld [vmem:[%s7 + $0x24] sm:$0xf]
      %v4891 = vld [vmem:[%s7 + $0x28] sm:$0xf]
      %v4892 = vld [vmem:[%s7 + $0x2c] sm:$0xf]
      %v4893 = vld [vmem:[%s7 + $0x30] sm:$0xf]
      %v4894 = vld [vmem:[%s7 + $0x34] sm:$0xf]
      %v4895 = vld [vmem:[%s7 + $0x38] sm:$0xf]
      %v4896 = vld [vmem:[%s7 + $0x3c] sm:$0xf]
      %v4897 = vld [vmem:[%s8] sm:$0x1]
      %v4899 = vlaneseq
      %v4900 = vshrl.u32 %v4899, 7
      %v4901 = vsub.s32 0, %v4900
      %v4902 = vrot.slane %v4897, %v4901
      %v4920 = vunpack.c.l.b16 %v4881
      %v4921 = vunpack.c.l.b16 %v4882
      %v4922 = vunpack.c.l.b16 %v4883
      %v4923 = vunpack.c.l.b16 %v4884
      %v4924 = vunpack.c.l.b16 %v4885
      %v4925 = vunpack.c.l.b16 %v4886
      %v4926 = vunpack.c.l.b16 %v4887
      %v4927 = vunpack.c.l.b16 %v4888
      %v4928 = vunpack.c.l.b16 %v4889
      %v4929 = vunpack.c.l.b16 %v4890
      %v4930 = vunpack.c.l.b16 %v4891
      %v4931 = vunpack.c.l.b16 %v4892
      %v4932 = vunpack.c.l.b16 %v4893
      %v4933 = vunpack.c.l.b16 %v4894
      %v4934 = vunpack.c.l.b16 %v4895
      %v4935 = vunpack.c.l.b16 %v4896
      %v4936 = vpack.c.b16 %v4921, %v4920
      %v4937 = vpack.c.b16 %v4923, %v4922
      %v4938 = vpack.c.b16 %v4925, %v4924
      %v4939 = vpack.c.b16 %v4927, %v4926
      %v4940 = vpack.c.b16 %v4929, %v4928
      %v4941 = vpack.c.b16 %v4931, %v4930
      %v4942 = vpack.c.b16 %v4933, %v4932
      %v4943 = vpack.c.b16 %v4935, %v4934
      %4952 = vmatprep.subr.bf16.mxu0 0
      %4953 = vmatpush1.bf16.msra.mxu0 %v4936
      %4954 = vmatprep.subr.bf16.mxu0 0
      %4955 = vmatpush1.bf16.msra.mxu0 %v4937
      %4956 = vmatprep.subr.bf16.mxu0 0
      %4957 = vmatpush1.bf16.msra.mxu0 %v4938
      %4958 = vmatprep.subr.bf16.mxu0 0
      %4959 = vmatpush1.bf16.msra.mxu0 %v4939
      %4960 = vmatprep.subr.bf16.mxu0 0
      %4961 = vmatpush1.bf16.msra.mxu0 %v4940
      %4962 = vmatprep.subr.bf16.mxu0 0
      %4963 = vmatpush1.bf16.msra.mxu0 %v4941
      %4964 = vmatprep.subr.bf16.mxu0 0
      %4965 = vmatpush1.bf16.msra.mxu0 %v4942
      %4966 = vmatprep.subr.bf16.mxu0 0
      %4967 = vmatpush1.bf16.msra.mxu0 %v4943
      %4968 = vmatprep.subr.bf16.mxu0 0
      %4969 = vmatpush1.bf16.msra.mxu0 0
      %4970 = vmatprep.subr.bf16.mxu0 0
      %4971 = vmatpush1.bf16.msra.mxu0 0
      %4972 = vmatprep.subr.bf16.mxu0 0
      %4973 = vmatpush1.bf16.msra.mxu0 0
      %4974 = vmatprep.subr.bf16.mxu0 0
      %4975 = vmatpush1.bf16.msra.mxu0 0
      %4976 = vmatprep.subr.bf16.mxu0 0
      %4977 = vmatpush1.bf16.msra.mxu0 0
      %4978 = vmatprep.subr.bf16.mxu0 0
      %4979 = vmatpush1.bf16.msra.mxu0 0
      %4980 = vmatprep.subr.bf16.mxu0 0
      %4981 = vmatpush1.bf16.msra.mxu0 0
      %4982 = vmatprep.subr.bf16.mxu0 0
      %4983 = vmatpush1.bf16.msra.mxu0 0
      %4984 = vmatprep.mubr.bf16.mxu0 0
      %4985 = vmatmul.mubr.bf16.gmra.mrb[0].mxu0 %v4865
      %v4986 = vpop.f32.mrb[0].mxu0
      %v4987 = vadd.f32 %v4902, %v4986
      %v4988 = vpop.f32.mrb[0].mxu0
      %v4989 = vpop.f32.mrb[0].mxu0
      %v4990 = vadd.f32 %v4902, %v4989
      %v4991 = vpop.f32.mrb[0].mxu0
      %4992 = vmatprep.mubr.bf16.mxu0 0
      %4993 = vmatmul.mubr.bf16.gmra.mrb[0].mxu0 %v4866
      %v4994 = vpop.f32.mrb[0].mxu0
      %v4995 = vadd.f32 %v4902, %v4994
      %v4996 = vpop.f32.mrb[0].mxu0
      %v4997 = vpop.f32.mrb[0].mxu0
      %v4998 = vadd.f32 %v4902, %v4997
      %v4999 = vpop.f32.mrb[0].mxu0
      %5000 = vmatprep.mubr.bf16.mxu0 0
      %5001 = vmatmul.mubr.bf16.gmra.mrb[0].mxu0 %v4867
      %v5002 = vpop.f32.mrb[0].mxu0
      %v5003 = vadd.f32 %v4902, %v5002
      %v5004 = vpop.f32.mrb[0].mxu0
      %v5005 = vpop.f32.mrb[0].mxu0
      %v5006 = vadd.f32 %v4902, %v5005
      %v5007 = vpop.f32.mrb[0].mxu0
      %5008 = vmatprep.mubr.bf16.mxu0 0
      %5009 = vmatmul.mubr.bf16.gmra.mrb[0].mxu0 %v4868
      %v5010 = vpop.f32.mrb[0].mxu0
      %v5011 = vadd.f32 %v4902, %v5010
      %v5012 = vpop.f32.mrb[0].mxu0
      %v5013 = vpop.f32.mrb[0].mxu0
      %v5014 = vadd.f32 %v4902, %v5013
      %v5015 = vpop.f32.mrb[0].mxu0
      %5016 = vmatprep.mubr.bf16.mxu0 0
      %5017 = vmatmul.mubr.bf16.gmra.mrb[0].mxu0 %v4869
      %v5018 = vpop.f32.mrb[0].mxu0
      %v5019 = vadd.f32 %v4902, %v5018
      %v5020 = vpop.f32.mrb[0].mxu0
      %v5021 = vpop.f32.mrb[0].mxu0
      %v5022 = vadd.f32 %v4902, %v5021
      %v5023 = vpop.f32.mrb[0].mxu0
      %5024 = vmatprep.mubr.bf16.mxu0 0
      %5025 = vmatmul.mubr.bf16.gmra.mrb[0].mxu0 %v4870
      %v5026 = vpop.f32.mrb[0].mxu0
      %v5027 = vadd.f32 %v4902, %v5026
      %v5028 = vpop.f32.mrb[0].mxu0
      %v5029 = vpop.f32.mrb[0].mxu0
      %v5030 = vadd.f32 %v4902, %v5029
      %v5031 = vpop.f32.mrb[0].mxu0
      %5032 = vmatprep.mubr.bf16.mxu0 0
      %5033 = vmatmul.mubr.bf16.gmra.mrb[0].mxu0 %v4871
      %v5034 = vpop.f32.mrb[0].mxu0
      %v5035 = vadd.f32 %v4902, %v5034
      %v5036 = vpop.f32.mrb[0].mxu0
      %v5037 = vpop.f32.mrb[0].mxu0
      %v5038 = vadd.f32 %v4902, %v5037
      %v5039 = vpop.f32.mrb[0].mxu0
      %5040 = vmatprep.mubr.bf16.mxu0 0
      %5041 = vmatmul.mubr.bf16.gmra.mrb[0].mxu0 %v4872
      %v5042 = vpop.f32.mrb[0].mxu0
      %v5043 = vadd.f32 %v4902, %v5042
      %v5044 = vpop.f32.mrb[0].mxu0
      %v5045 = vpop.f32.mrb[0].mxu0
      %v5046 = vadd.f32 %v4902, %v5045
      %v5047 = vpop.f32.mrb[0].mxu0
      %5048 = vmatprep.mubr.bf16.mxu0 0
      %5049 = vmatmul.mubr.bf16.gmra.mrb[0].mxu0 %v4873
      %v5050 = vpop.f32.mrb[0].mxu0
      %v5051 = vadd.f32 %v4902, %v5050
      %v5052 = vpop.f32.mrb[0].mxu0
      %v5053 = vpop.f32.mrb[0].mxu0
      %v5054 = vadd.f32 %v4902, %v5053
      %v5055 = vpop.f32.mrb[0].mxu0
      %5056 = vmatprep.mubr.bf16.mxu0 0
      %5057 = vmatmul.mubr.bf16.gmra.mrb[0].mxu0 %v4874
      %v5058 = vpop.f32.mrb[0].mxu0
      %v5059 = vadd.f32 %v4902, %v5058
      %v5060 = vpop.f32.mrb[0].mxu0
      %v5061 = vpop.f32.mrb[0].mxu0
      %v5062 = vadd.f32 %v4902, %v5061
      %v5063 = vpop.f32.mrb[0].mxu0
      %5064 = vmatprep.mubr.bf16.mxu0 0
      %5065 = vmatmul.mubr.bf16.gmra.mrb[0].mxu0 %v4875
      %v5066 = vpop.f32.mrb[0].mxu0
      %v5067 = vadd.f32 %v4902, %v5066
      %v5068 = vpop.f32.mrb[0].mxu0
      %v5069 = vpop.f32.mrb[0].mxu0
      %v5070 = vadd.f32 %v4902, %v5069
      %v5071 = vpop.f32.mrb[0].mxu0
      %5072 = vmatprep.mubr.bf16.mxu0 0
      %5073 = vmatmul.mubr.bf16.gmra.mrb[0].mxu0 %v4876
      %v5074 = vpop.f32.mrb[0].mxu0
      %v5075 = vadd.f32 %v4902, %v5074
      %v5076 = vpop.f32.mrb[0].mxu0
      %v5077 = vpop.f32.mrb[0].mxu0
      %v5078 = vadd.f32 %v4902, %v5077
      %v5079 = vpop.f32.mrb[0].mxu0
      %5080 = vmatprep.mubr.bf16.mxu0 0
      %5081 = vmatmul.mubr.bf16.gmra.mrb[0].mxu0 %v4877
      %v5082 = vpop.f32.mrb[0].mxu0
      %v5083 = vadd.f32 %v4902, %v5082
      %v5084 = vpop.f32.mrb[0].mxu0
      %v5085 = vpop.f32.mrb[0].mxu0
      %v5086 = vadd.f32 %v4902, %v5085
      %v5087 = vpop.f32.mrb[0].mxu0
      %5088 = vmatprep.mubr.bf16.mxu0 0
      %5089 = vmatmul.mubr.bf16.gmra.mrb[0].mxu0 %v4878
      %v5090 = vpop.f32.mrb[0].mxu0
      %v5091 = vadd.f32 %v4902, %v5090
      %v5092 = vpop.f32.mrb[0].mxu0
      %v5093 = vpop.f32.mrb[0].mxu0
      %v5094 = vadd.f32 %v4902, %v5093
      %v5095 = vpop.f32.mrb[0].mxu0
      %5096 = vmatprep.mubr.bf16.mxu0 0
      %5097 = vmatmul.mubr.bf16.gmra.mrb[0].mxu0 %v4879
      %v5098 = vpop.f32.mrb[0].mxu0
      %v5099 = vadd.f32 %v4902, %v5098
      %v5100 = vpop.f32.mrb[0].mxu0
      %v5101 = vpop.f32.mrb[0].mxu0
      %v5102 = vadd.f32 %v4902, %v5101
      %v5103 = vpop.f32.mrb[0].mxu0
      %5104 = vmatprep.mubr.bf16.mxu0 0
      %5105 = vmatmul.mubr.bf16.gmra.mrb[0].mxu0 %v4880
      %v5106 = vpop.f32.mrb[0].mxu0
      %v5107 = vadd.f32 %v4902, %v5106
      %v5108 = vpop.f32.mrb[0].mxu0
      %v5109 = vpop.f32.mrb[0].mxu0
      %v5110 = vadd.f32 %v4902, %v5109
      %v5111 = vpop.f32.mrb[0].mxu0
      %5112 = vdwg.mxu0
      %5113 = vst [vmem:[%s337] sm:$0xff] %v4987
      %5114 = vst [vmem:[%s337 + $0x8] sm:$0xff] %v4990
      %5115 = vst [vmem:[%s337 + $0x10] sm:$0xff] %v4995
      %5116 = vst [vmem:[%s337 + $0x18] sm:$0xff] %v4998
      %5117 = vst [vmem:[%s337 + $0x20] sm:$0xff] %v5003
      %5118 = vst [vmem:[%s337 + $0x28] sm:$0xff] %v5006
      %5119 = vst [vmem:[%s337 + $0x30] sm:$0xff] %v5011
      %5120 = vst [vmem:[%s337 + $0x38] sm:$0xff] %v5014
      %5121 = vst [vmem:[%s337 + $0x40] sm:$0xff] %v5019
      %5122 = vst [vmem:[%s337 + $0x48] sm:$0xff] %v5022
      %5123 = vst [vmem:[%s337 + $0x50] sm:$0xff] %v5027
      %5124 = vst [vmem:[%s337 + $0x58] sm:$0xff] %v5030
      %5125 = vst [vmem:[%s337 + $0x60] sm:$0xff] %v5035
      %5126 = vst [vmem:[%s337 + $0x68] sm:$0xff] %v5038
      %5127 = vst [vmem:[%s337 + $0x70] sm:$0xff] %v5043
      %5128 = vst [vmem:[%s337 + $0x78] sm:$0xff] %v5046
      %5129 = vst [vmem:[%s337 + $0x80] sm:$0xff] %v5051
      %5130 = vst [vmem:[%s337 + $0x88] sm:$0xff] %v5054
      %5131 = vst [vmem:[%s337 + $0x90] sm:$0xff] %v5059
      %5132 = vst [vmem:[%s337 + $0x98] sm:$0xff] %v5062
      %5133 = vst [vmem:[%s337 + $0xa0] sm:$0xff] %v5067
      %5134 = vst [vmem:[%s337 + $0xa8] sm:$0xff] %v5070
      %5135 = vst [vmem:[%s337 + $0xb0] sm:$0xff] %v5075
      %5136 = vst [vmem:[%s337 + $0xb8] sm:$0xff] %v5078
      %5137 = vst [vmem:[%s337 + $0xc0] sm:$0xff] %v5083
      %5138 = vst [vmem:[%s337 + $0xc8] sm:$0xff] %v5086
      %5139 = vst [vmem:[%s337 + $0xd0] sm:$0xff] %v5091
      %5140 = vst [vmem:[%s337 + $0xd8] sm:$0xff] %v5094
      %5141 = vst [vmem:[%s337 + $0xe0] sm:$0xff] %v5099
      %5142 = vst [vmem:[%s337 + $0xe8] sm:$0xff] %v5102
      %5143 = vst [vmem:[%s337 + $0xf0] sm:$0xff] %v5107
      %5144 = vst [vmem:[%s337 + $0xf8] sm:$0xff] %v5110
      %s5145 = smul.u32 32, %s20
      %p5146 = scmp.lt.s32.totalorder %s5145, 63
      %s5147 = scalar_select %p5146, %s5145, 63
      %s5148 = smul.addr %s5147, 8
      %s5149 = scalar_lea.vmem %s9, %s5148
      // Predicated region
      $region57: #{autoencoder_forward.1} parent=55 // pred_check
        %p5150 = pneg %p232
      $region58: #{autoencoder_forward.1} parent=55 // pred_check_branch
        %5152 = sbr.rel (%p5150) target = $region60
      $region59: #{autoencoder_forward.1} parent=55 // pred_region
        %s5153 = smul.u32 32, %s20
      $region60: #{autoencoder_forward.1} parent=55 // pred_fallthru
        _
    $region56: #{autoencoder_forward.1} parent=5 // pred_fallthru
      _
    %p5154 = scmp.le.s32.totalorder 2, %s15
    // Predicated region
    $region61: #{autoencoder_forward.1} parent=5 // pred_check
      %p5155 = pneg %p5154
    $region62: #{autoencoder_forward.1} parent=5 // pred_check_branch
      %5157 = sbr.rel (%p5155) target = $region64
    $region63: #{autoencoder_forward.1} parent=5 // pred_region
      %s5158 = ssub.s32 %s15, 2
      // Predicated region
      $region65: #{autoencoder_forward.1} parent=63 // pred_check
        %p5159 = pneg %p238
      $region66: #{autoencoder_forward.1} parent=63 // pred_check_branch
        %5161 = sbr.rel (%p5159) target = $region68
      $region67: #{autoencoder_forward.1} parent=63 // pred_region
        %s5162 = smul.u32 32, %s21
        %p5163 = scmp.lt.s32.totalorder %s5162, 63
        %s5164 = scalar_select %p5163, %s5162, 63
        %s5165 = smul.addr %s5164, 8
        %s5166 = scalar_lea.vmem %s9, %s5165
      $region68: #{autoencoder_forward.1} parent=63 // pred_fallthru
        _
    $region64: #{autoencoder_forward.1} parent=5 // pred_fallthru
      _
  $region6: #{autoencoder_forward.1} parent=0 // loop_footer
    %s19 = sadd.s32 1, %s15
  $region7: #{autoencoder_forward.1} parent=0 // loop_footer_branch
    %14 = sbr.rel target = $region3
  $region8: #{autoencoder_forward.1} parent=0 // loop_exit
    _

</llo_original>
